<compile_context>
chip_gen: v5e
topology: v5e:2x2
jax: 0.10.0
libtpu: 0.0.40
codegen_flags: <defaults>
</compile_context>

<pallas_src>
import functools

import numpy as np
import jax
import jax.numpy as jnp
from jax.experimental import pallas as pl
from jax.experimental.pallas import tpu as pltpu

EPS = 1e-5  # nn.BatchNorm3d default


def _resblock3d_kernel(x_ref, mask_ref, w1_ref, b1_ref, g1_ref, be1_ref,
                       w2_ref, b2_ref, g2_ref, be2_ref,
                       o_ref, patches_ref, *, K, P, D, H, W):
    C, M = x_ref.shape
    KT = K * K * K
    KC = KT * C
    KC_PAD = patches_ref.shape[0]
    CHUNK = 128                     # contraction depth per MXU dot (v5e MXU depth)
    taps_per_chunk = CHUNK // C

    # Zero the contraction-padding rows of the im2col buffer once (the KC live
    # rows are fully overwritten by every conv).
    if KC_PAD > KC:
        patches_ref[KC:, :] = jnp.zeros((KC_PAD - KC, M), jnp.float32)

    inv_m = 1.0 / M

    def bn_relu(v, g_ref, be_ref):
        # BatchNorm3d (training-mode batch stats, biased variance) + ReLU.
        # Two-pass mean/variance: same op count, no catastrophic cancellation.
        mu = jnp.sum(v, axis=1, keepdims=True) * inv_m            # (C, 1)
        c = v - mu
        var = jnp.sum(c * c, axis=1, keepdims=True) * inv_m       # (C, 1)
        scale = jax.lax.rsqrt(var + EPS) * g_ref[...]             # (C, 1)
        return jnp.maximum(c * scale + be_ref[...], 0.0)

    taps = [(kd, kh, kw) for kd in range(K) for kh in range(K) for kw in range(K)]

    def conv(act, w_ref, b_ref):
        # im2col: tap t's rows are the in-register activation rolled by its
        # flat offset, multiplied by the precomputed (1, M) halo-mask row
        # (the roll's wraparound positions are exactly the masked-out ones).
        # The contraction is chunked 128-deep so each MXU dot can start as
        # soon as its 16 taps of patches rows have been written.
        out = None
        for c0 in range(0, KC_PAD, CHUNK):
            t_lo = c0 // C
            t_hi = min(t_lo + taps_per_chunk, KT)
            for t in range(t_lo, t_hi):
                kd, kh, kw = taps[t]
                off = (kd - P) * H * W + (kh - P) * W + (kw - P)
                shifted = act if off == 0 else pltpu.roll(
                    act, shift=(-off) % M, axis=1)
                patches_ref[t * C:(t + 1) * C, :] = shifted * mask_ref[t:t + 1, :]
            part = jnp.dot(w_ref[:, c0:c0 + CHUNK], patches_ref[c0:c0 + CHUNK, :],
                           preferred_element_type=jnp.float32)
            out = part if out is None else out + part
        return out + b_ref[...]

    x = x_ref[...]
    h1 = conv(bn_relu(x, g1_ref, be1_ref), w1_ref, b1_ref)
    h2 = conv(bn_relu(h1, g2_ref, be2_ref), w2_ref, b2_ref)
    o_ref[...] = h2 + x   # residual add; lane-dense unmasked store

    # TODO(synk): BatchNorm running-stats update is a training-time side effect
    # with no influence on this forward output; not modeled here.
    # TODO(synk): at real sizes, restructure as two pallas_calls (pass 1: BN
    # stats; pass 2: normalize+im2col+matmul with a "parallel" grid over M,
    # vmem_limit_bytes set explicitly) so both v7x TensorCores are used and
    # patches_ref stays within scoped VMEM.


def _pack_conv(w_pt, b_pt, kc_pad):
    # PyTorch Conv3d weight (Cout, Cin, kD, kH, kW) -> (Cout, K^3*Cin), columns
    # ordered as (tap, Cin) to match the im2col rows; pad contraction to kc_pad.
    c_out, c_in, K, _, _ = w_pt.shape
    w = jnp.transpose(w_pt, (0, 2, 3, 4, 1)).reshape(c_out, K * K * K * c_in)
    w = jnp.pad(w, ((0, 0), (0, kc_pad - w.shape[1]))).astype(jnp.float32)
    return w, b_pt.reshape(c_out, 1).astype(jnp.float32)


def _halo_mask(N, D, H, W, K, P):
    # Static (K^3, N*D*H*W) f32 mask: 1 where the 3-D neighbor for tap
    # (kd, kh, kw) at flat position m is in range, else 0.  Computed once with
    # numpy in the wrapper (it depends only on shapes, not data).
    M = N * D * H * W
    m = np.arange(M, dtype=np.int64)
    w = m % W
    h = (m // W) % H
    d = (m // (W * H)) % D
    rows = []
    for kd in range(K):
        for kh in range(K):
            for kw in range(K):
                dd, dh, dw = kd - P, kh - P, kw - P
                valid = ((d + dd >= 0) & (d + dd < D) &
                         (h + dh >= 0) & (h + dh < H) &
                         (w + dw >= 0) & (w + dw < W))
                rows.append(valid)
    return np.stack(rows, axis=0).astype(np.float32)


def resblock3d(x_ncdhw, params, *, kernel_size, padding):
    """x_ncdhw: (N, C, D, H, W) float32; params in PyTorch layouts."""
    K, P = kernel_size, padding
    w1_pt, b1_pt, g1, be1, w2_pt, b2_pt, g2, be2 = params
    N, C, D, H, W = x_ncdhw.shape
    M = N * D * H * W
    KC = K * K * K * C
    KC_PAD = ((KC + 127) // 128) * 128

    # Layout plumbing (wrapper side): NCDHW -> (C, M) with M lane-dense.
    # TODO(synk): when chaining blocks, keep activations in (C, M) between
    # blocks instead of transposing around every call.
    x_cm = jnp.transpose(x_ncdhw.astype(jnp.float32),
                         (1, 0, 2, 3, 4)).reshape(C, M)
    mask = jnp.asarray(_halo_mask(N, D, H, W, K, P))           # (K^3, M)
    w1, b1 = _pack_conv(w1_pt, b1_pt, KC_PAD)
    w2, b2 = _pack_conv(w2_pt, b2_pt, KC_PAD)
    g1c = g1.reshape(C, 1).astype(jnp.float32)
    be1c = be1.reshape(C, 1).astype(jnp.float32)
    g2c = g2.reshape(C, 1).astype(jnp.float32)
    be2c = be2.reshape(C, 1).astype(jnp.float32)

    kern = functools.partial(_resblock3d_kernel, K=K, P=P, D=D, H=H, W=W)
    vmem = pl.BlockSpec(memory_space=pltpu.MemorySpace.VMEM)
    out_cm = pl.pallas_call(
        kern,
        out_shape=jax.ShapeDtypeStruct((C, M), jnp.float32),
        in_specs=[vmem] * 10,
        out_specs=vmem,
        scratch_shapes=[
            pltpu.VMEM((KC_PAD, M), jnp.float32),   # im2col buffer (~1 MiB here)
        ],
    )(x_cm, mask, w1, b1, g1c, be1c, w2, b2, g2c, be2c)
    return jnp.transpose(out_cm.reshape(C, N, D, H, W), (1, 0, 2, 3, 4))


def resblock3d_reference(x_ncdhw, params, *, kernel_size, padding):
    """Pure-JAX reference (lax.conv) used only for validation."""
    K, P = kernel_size, padding
    w1, b1, g1, be1, w2, b2, g2, be2 = params
    x = jnp.transpose(x_ncdhw, (0, 2, 3, 4, 1)).astype(jnp.float32)  # NDHWC

    def bn_relu(v, g, be):
        mu = v.mean(axis=(0, 1, 2, 3), keepdims=True)
        var = ((v - mu) ** 2).mean(axis=(0, 1, 2, 3), keepdims=True)
        return jnp.maximum((v - mu) * jax.lax.rsqrt(var + EPS) * g + be, 0.0)

    def conv(a, w_pt, b):
        w = jnp.transpose(w_pt, (2, 3, 4, 1, 0))  # DHWIO
        y = jax.lax.conv_general_dilated(
            a, w, window_strides=(1, 1, 1), padding=[(P, P)] * 3,
            dimension_numbers=('NDHWC', 'DHWIO', 'NDHWC'),
            precision=jax.lax.Precision.HIGHEST)
        return y + b

    h = conv(bn_relu(x, g1, be1), w1, b1)
    h = conv(bn_relu(h, g2, be2), w2, b2)
    return jnp.transpose(h + x, (0, 4, 1, 2, 3))


if __name__ == "__main__":
    # Module config: ResBlock3d(in_features=8, kernel_size=3, padding=1)
    N, C, D, H, W = 2, 8, 8, 8, 8
    K, P = 3, 1

    key = jax.random.PRNGKey(0)
    keys = jax.random.split(key, 9)

    x = jax.random.normal(keys[0], (N, C, D, H, W), jnp.float32)  # NCDHW input

    # Deterministic params (PyTorch layouts / init ranges).
    fan_in = C * K ** 3
    bound = 1.0 / (fan_in ** 0.5)
    w1_pt = jax.random.uniform(keys[1], (C, C, K, K, K), jnp.float32, -bound, bound)
    b1_pt = jax.random.uniform(keys[2], (C,), jnp.float32, -bound, bound)
    w2_pt = jax.random.uniform(keys[3], (C, C, K, K, K), jnp.float32, -bound, bound)
    b2_pt = jax.random.uniform(keys[4], (C,), jnp.float32, -bound, bound)
    g1 = 1.0 + 0.1 * jax.random.normal(keys[5], (C,), jnp.float32)
    be1 = 0.1 * jax.random.normal(keys[6], (C,), jnp.float32)
    g2 = 1.0 + 0.1 * jax.random.normal(keys[7], (C,), jnp.float32)
    be2 = 0.1 * jax.random.normal(keys[8], (C,), jnp.float32)
    params = (w1_pt, b1_pt, g1, be1, w2_pt, b2_pt, g2, be2)

    out = jax.block_until_ready(resblock3d(x, params, kernel_size=K, padding=P))
    assert out.shape == (N, C, D, H, W) and out.dtype == jnp.float32

    ref = jax.block_until_ready(
        resblock3d_reference(x, params, kernel_size=K, padding=P))
    max_err = float(jnp.max(jnp.abs(out - ref)))
    assert max_err < 1e-3, f"mismatch vs reference: max_err={max_err}"

    print("KERNEL_OK")
</pallas_src>

<mosaic_0001>
module attributes {stable_mosaic.version = 11 : i64} {
  func.func @_resblock3d_kernel(%arg0: memref<8x1024xf32, #tpu.memory_space<vmem>>, %arg1: memref<27x1024xf32, #tpu.memory_space<vmem>>, %arg2: memref<8x256xf32, #tpu.memory_space<vmem>>, %arg3: memref<8x1xf32, #tpu.memory_space<vmem>>, %arg4: memref<8x1xf32, #tpu.memory_space<vmem>>, %arg5: memref<8x1xf32, #tpu.memory_space<vmem>>, %arg6: memref<8x256xf32, #tpu.memory_space<vmem>>, %arg7: memref<8x1xf32, #tpu.memory_space<vmem>>, %arg8: memref<8x1xf32, #tpu.memory_space<vmem>>, %arg9: memref<8x1xf32, #tpu.memory_space<vmem>>, %arg10: memref<8x1024xf32, #tpu.memory_space<vmem>>, %arg11: memref<256x1024xf32, #tpu.memory_space<vmem>>) attributes {dimension_semantics = [], scalar_prefetch = 0 : i64, scratch_operands = 1 : i64, tpu.core_type = #tpu.core_type<tc>} {
    %cst = arith.constant 0.000000e+00 : f32
    %0 = vector.broadcast %cst : f32 to vector<40x1024xf32>
    %c216 = arith.constant 216 : index
    %c0 = arith.constant 0 : index
    %1 = vector.load %arg11[%c216, %c0] : memref<256x1024xf32, #tpu.memory_space<vmem>>, vector<40x1024xf32>
    tpu.vector_store %arg11[%c216, %c0], %0 {strides = array<i32>} : memref<256x1024xf32, #tpu.memory_space<vmem>>, vector<40x1024xf32>,
    %c0_0 = arith.constant 0 : index
    %c0_1 = arith.constant 0 : index
    %2 = vector.load %arg0[%c0_0, %c0_1] : memref<8x1024xf32, #tpu.memory_space<vmem>>, vector<8x1024xf32>
    %cst_2 = arith.constant dense<0.000000e+00> : vector<8xf32>
    %3 = vector.multi_reduction <add>, %2, %cst_2 [1] : vector<8x1024xf32> to vector<8xf32>
    %4 = vector.shape_cast %3 : vector<8xf32> to vector<8x1xf32>
    %cst_3 = arith.constant 9.765625E-4 : f32
    %5 = vector.broadcast %cst_3 : f32 to vector<8x1xf32>
    %6 = arith.mulf %4, %5 : vector<8x1xf32>
    %7 = vector.broadcast %6 : vector<8x1xf32> to vector<8x1024xf32>
    %8 = arith.subf %2, %7 : vector<8x1024xf32>
    %9 = arith.mulf %8, %8 : vector<8x1024xf32>
    %cst_4 = arith.constant dense<0.000000e+00> : vector<8xf32>
    %10 = vector.multi_reduction <add>, %9, %cst_4 [1] : vector<8x1024xf32> to vector<8xf32>
    %11 = vector.shape_cast %10 : vector<8xf32> to vector<8x1xf32>
    %cst_5 = arith.constant 9.765625E-4 : f32
    %12 = vector.broadcast %cst_5 : f32 to vector<8x1xf32>
    %13 = arith.mulf %11, %12 : vector<8x1xf32>
    %cst_6 = arith.constant 9.99999974E-6 : f32
    %14 = vector.broadcast %cst_6 : f32 to vector<8x1xf32>
    %15 = arith.addf %13, %14 : vector<8x1xf32>
    %16 = math.rsqrt %15 : vector<8x1xf32>
    %c0_7 = arith.constant 0 : index
    %c0_8 = arith.constant 0 : index
    %17 = vector.load %arg4[%c0_7, %c0_8] : memref<8x1xf32, #tpu.memory_space<vmem>>, vector<8x1xf32>
    %18 = arith.mulf %16, %17 : vector<8x1xf32>
    %19 = vector.broadcast %18 : vector<8x1xf32> to vector<8x1024xf32>
    %20 = arith.mulf %8, %19 : vector<8x1024xf32>
    %c0_9 = arith.constant 0 : index
    %c0_10 = arith.constant 0 : index
    %21 = vector.load %arg5[%c0_9, %c0_10] : memref<8x1xf32, #tpu.memory_space<vmem>>, vector<8x1xf32>
    %22 = vector.broadcast %21 : vector<8x1xf32> to vector<8x1024xf32>
    %23 = arith.addf %20, %22 : vector<8x1024xf32>
    %cst_11 = arith.constant 0.000000e+00 : f32
    %24 = vector.broadcast %cst_11 : f32 to vector<8x1024xf32>
    %25 = arith.maximumf %23, %24 : vector<8x1024xf32>
    %c73_i32 = arith.constant 73 : i32
    %26 = tpu.dynamic_rotate %25 by %c73_i32 dim 1 : vector<8x1024xf32>, i32 -> vector<8x1024xf32>
    %c0_12 = arith.constant 0 : index
    %c0_13 = arith.constant 0 : index
    %27 = vector.load %arg1[%c0_12, %c0_13] : memref<27x1024xf32, #tpu.memory_space<vmem>>, vector<1x1024xf32>
    %28 = vector.broadcast %27 : vector<1x1024xf32> to vector<8x1024xf32>
    %29 = arith.mulf %26, %28 : vector<8x1024xf32>
    %c0_14 = arith.constant 0 : index
    %c0_15 = arith.constant 0 : index
    %30 = vector.load %arg11[%c0_14, %c0_15] : memref<256x1024xf32, #tpu.memory_space<vmem>>, vector<8x1024xf32>
    tpu.vector_store %arg11[%c0_14, %c0_15], %29 {strides = array<i32>} : memref<256x1024xf32, #tpu.memory_space<vmem>>, vector<8x1024xf32>,
    %c72_i32 = arith.constant 72 : i32
    %31 = tpu.dynamic_rotate %25 by %c72_i32 dim 1 : vector<8x1024xf32>, i32 -> vector<8x1024xf32>
    %c1 = arith.constant 1 : index
    %c0_16 = arith.constant 0 : index
    %32 = vector.load %arg1[%c1, %c0_16] : memref<27x1024xf32, #tpu.memory_space<vmem>>, vector<1x1024xf32>
    %33 = vector.broadcast %32 : vector<1x1024xf32> to vector<8x1024xf32>
    %34 = arith.mulf %31, %33 : vector<8x1024xf32>
    %c8 = arith.constant 8 : index
    %c0_17 = arith.constant 0 : index
    %35 = vector.load %arg11[%c8, %c0_17] : memref<256x1024xf32, #tpu.memory_space<vmem>>, vector<8x1024xf32>
    tpu.vector_store %arg11[%c8, %c0_17], %34 {strides = array<i32>} : memref<256x1024xf32, #tpu.memory_space<vmem>>, vector<8x1024xf32>,
    %c71_i32 = arith.constant 71 : i32
    %36 = tpu.dynamic_rotate %25 by %c71_i32 dim 1 : vector<8x1024xf32>, i32 -> vector<8x1024xf32>
    %c2 = arith.constant 2 : index
    %c0_18 = arith.constant 0 : index
    %37 = vector.load %arg1[%c2, %c0_18] : memref<27x1024xf32, #tpu.memory_space<vmem>>, vector<1x1024xf32>
    %38 = vector.broadcast %37 : vector<1x1024xf32> to vector<8x1024xf32>
    %39 = arith.mulf %36, %38 : vector<8x1024xf32>
    %c16 = arith.constant 16 : index
    %c0_19 = arith.constant 0 : index
    %40 = vector.load %arg11[%c16, %c0_19] : memref<256x1024xf32, #tpu.memory_space<vmem>>, vector<8x1024xf32>
    tpu.vector_store %arg11[%c16, %c0_19], %39 {strides = array<i32>} : memref<256x1024xf32, #tpu.memory_space<vmem>>, vector<8x1024xf32>,
    %c65_i32 = arith.constant 65 : i32
    %41 = tpu.dynamic_rotate %25 by %c65_i32 dim 1 : vector<8x1024xf32>, i32 -> vector<8x1024xf32>
    %c3 = arith.constant 3 : index
    %c0_20 = arith.constant 0 : index
    %42 = vector.load %arg1[%c3, %c0_20] : memref<27x1024xf32, #tpu.memory_space<vmem>>, vector<1x1024xf32>
    %43 = vector.broadcast %42 : vector<1x1024xf32> to vector<8x1024xf32>
    %44 = arith.mulf %41, %43 : vector<8x1024xf32>
    %c24 = arith.constant 24 : index
    %c0_21 = arith.constant 0 : index
    %45 = vector.load %arg11[%c24, %c0_21] : memref<256x1024xf32, #tpu.memory_space<vmem>>, vector<8x1024xf32>
    tpu.vector_store %arg11[%c24, %c0_21], %44 {strides = array<i32>} : memref<256x1024xf32, #tpu.memory_space<vmem>>, vector<8x1024xf32>,
    %c64_i32 = arith.constant 64 : i32
    %46 = tpu.dynamic_rotate %25 by %c64_i32 dim 1 : vector<8x1024xf32>, i32 -> vector<8x1024xf32>
    %c4 = arith.constant 4 : index
    %c0_22 = arith.constant 0 : index
    %47 = vector.load %arg1[%c4, %c0_22] : memref<27x1024xf32, #tpu.memory_space<vmem>>, vector<1x1024xf32>
    %48 = vector.broadcast %47 : vector<1x1024xf32> to vector<8x1024xf32>
    %49 = arith.mulf %46, %48 : vector<8x1024xf32>
    %c32 = arith.constant 32 : index
    %c0_23 = arith.constant 0 : index
    %50 = vector.load %arg11[%c32, %c0_23] : memref<256x1024xf32, #tpu.memory_space<vmem>>, vector<8x1024xf32>
    tpu.vector_store %arg11[%c32, %c0_23], %49 {strides = array<i32>} : memref<256x1024xf32, #tpu.memory_space<vmem>>, vector<8x1024xf32>,
    %c63_i32 = arith.constant 63 : i32
    %51 = tpu.dynamic_rotate %25 by %c63_i32 dim 1 : vector<8x1024xf32>, i32 -> vector<8x1024xf32>
    %c5 = arith.constant 5 : index
    %c0_24 = arith.constant 0 : index
    %52 = vector.load %arg1[%c5, %c0_24] : memref<27x1024xf32, #tpu.memory_space<vmem>>, vector<1x1024xf32>
    %53 = vector.broadcast %52 : vector<1x1024xf32> to vector<8x1024xf32>
    %54 = arith.mulf %51, %53 : vector<8x1024xf32>
    %c40 = arith.constant 40 : index
    %c0_25 = arith.constant 0 : index
    %55 = vector.load %arg11[%c40, %c0_25] : memref<256x1024xf32, #tpu.memory_space<vmem>>, vector<8x1024xf32>
    tpu.vector_store %arg11[%c40, %c0_25], %54 {strides = array<i32>} : memref<256x1024xf32, #tpu.memory_space<vmem>>, vector<8x1024xf32>,
    %c57_i32 = arith.constant 57 : i32
    %56 = tpu.dynamic_rotate %25 by %c57_i32 dim 1 : vector<8x1024xf32>, i32 -> vector<8x1024xf32>
    %c6 = arith.constant 6 : index
    %c0_26 = arith.constant 0 : index
    %57 = vector.load %arg1[%c6, %c0_26] : memref<27x1024xf32, #tpu.memory_space<vmem>>, vector<1x1024xf32>
    %58 = vector.broadcast %57 : vector<1x1024xf32> to vector<8x1024xf32>
    %59 = arith.mulf %56, %58 : vector<8x1024xf32>
    %c48 = arith.constant 48 : index
    %c0_27 = arith.constant 0 : index
    %60 = vector.load %arg11[%c48, %c0_27] : memref<256x1024xf32, #tpu.memory_space<vmem>>, vector<8x1024xf32>
    tpu.vector_store %arg11[%c48, %c0_27], %59 {strides = array<i32>} : memref<256x1024xf32, #tpu.memory_space<vmem>>, vector<8x1024xf32>,
    %c56_i32 = arith.constant 56 : i32
    %61 = tpu.dynamic_rotate %25 by %c56_i32 dim 1 : vector<8x1024xf32>, i32 -> vector<8x1024xf32>
    %c7 = arith.constant 7 : index
    %c0_28 = arith.constant 0 : index
    %62 = vector.load %arg1[%c7, %c0_28] : memref<27x1024xf32, #tpu.memory_space<vmem>>, vector<1x1024xf32>
    %63 = vector.broadcast %62 : vector<1x1024xf32> to vector<8x1024xf32>
    %64 = arith.mulf %61, %63 : vector<8x1024xf32>
    %c56 = arith.constant 56 : index
    %c0_29 = arith.constant 0 : index
    %65 = vector.load %arg11[%c56, %c0_29] : memref<256x1024xf32, #tpu.memory_space<vmem>>, vector<8x1024xf32>
    tpu.vector_store %arg11[%c56, %c0_29], %64 {strides = array<i32>} : memref<256x1024xf32, #tpu.memory_space<vmem>>, vector<8x1024xf32>,
    %c55_i32 = arith.constant 55 : i32
    %66 = tpu.dynamic_rotate %25 by %c55_i32 dim 1 : vector<8x1024xf32>, i32 -> vector<8x1024xf32>
    %c8_30 = arith.constant 8 : index
    %c0_31 = arith.constant 0 : index
    %67 = vector.load %arg1[%c8_30, %c0_31] : memref<27x1024xf32, #tpu.memory_space<vmem>>, vector<1x1024xf32>
    %68 = vector.broadcast %67 : vector<1x1024xf32> to vector<8x1024xf32>
    %69 = arith.mulf %66, %68 : vector<8x1024xf32>
    %c64 = arith.constant 64 : index
    %c0_32 = arith.constant 0 : index
    %70 = vector.load %arg11[%c64, %c0_32] : memref<256x1024xf32, #tpu.memory_space<vmem>>, vector<8x1024xf32>
    tpu.vector_store %arg11[%c64, %c0_32], %69 {strides = array<i32>} : memref<256x1024xf32, #tpu.memory_space<vmem>>, vector<8x1024xf32>,
    %c9_i32 = arith.constant 9 : i32
    %71 = tpu.dynamic_rotate %25 by %c9_i32 dim 1 : vector<8x1024xf32>, i32 -> vector<8x1024xf32>
    %c9 = arith.constant 9 : index
    %c0_33 = arith.constant 0 : index
    %72 = vector.load %arg1[%c9, %c0_33] : memref<27x1024xf32, #tpu.memory_space<vmem>>, vector<1x1024xf32>
    %73 = vector.broadcast %72 : vector<1x1024xf32> to vector<8x1024xf32>
    %74 = arith.mulf %71, %73 : vector<8x1024xf32>
    %c72 = arith.constant 72 : index
    %c0_34 = arith.constant 0 : index
    %75 = vector.load %arg11[%c72, %c0_34] : memref<256x1024xf32, #tpu.memory_space<vmem>>, vector<8x1024xf32>
    tpu.vector_store %arg11[%c72, %c0_34], %74 {strides = array<i32>} : memref<256x1024xf32, #tpu.memory_space<vmem>>, vector<8x1024xf32>,
    %c8_i32 = arith.constant 8 : i32
    %76 = tpu.dynamic_rotate %25 by %c8_i32 dim 1 : vector<8x1024xf32>, i32 -> vector<8x1024xf32>
    %c10 = arith.constant 10 : index
    %c0_35 = arith.constant 0 : index
    %77 = vector.load %arg1[%c10, %c0_35] : memref<27x1024xf32, #tpu.memory_space<vmem>>, vector<1x1024xf32>
    %78 = vector.broadcast %77 : vector<1x1024xf32> to vector<8x1024xf32>
    %79 = arith.mulf %76, %78 : vector<8x1024xf32>
    %c80 = arith.constant 80 : index
    %c0_36 = arith.constant 0 : index
    %80 = vector.load %arg11[%c80, %c0_36] : memref<256x1024xf32, #tpu.memory_space<vmem>>, vector<8x1024xf32>
    tpu.vector_store %arg11[%c80, %c0_36], %79 {strides = array<i32>} : memref<256x1024xf32, #tpu.memory_space<vmem>>, vector<8x1024xf32>,
    %c7_i32 = arith.constant 7 : i32
    %81 = tpu.dynamic_rotate %25 by %c7_i32 dim 1 : vector<8x1024xf32>, i32 -> vector<8x1024xf32>
    %c11 = arith.constant 11 : index
    %c0_37 = arith.constant 0 : index
    %82 = vector.load %arg1[%c11, %c0_37] : memref<27x1024xf32, #tpu.memory_space<vmem>>, vector<1x1024xf32>
    %83 = vector.broadcast %82 : vector<1x1024xf32> to vector<8x1024xf32>
    %84 = arith.mulf %81, %83 : vector<8x1024xf32>
    %c88 = arith.constant 88 : index
    %c0_38 = arith.constant 0 : index
    %85 = vector.load %arg11[%c88, %c0_38] : memref<256x1024xf32, #tpu.memory_space<vmem>>, vector<8x1024xf32>
    tpu.vector_store %arg11[%c88, %c0_38], %84 {strides = array<i32>} : memref<256x1024xf32, #tpu.memory_space<vmem>>, vector<8x1024xf32>,
    %c1_i32 = arith.constant 1 : i32
    %86 = tpu.dynamic_rotate %25 by %c1_i32 dim 1 : vector<8x1024xf32>, i32 -> vector<8x1024xf32>
    %c12 = arith.constant 12 : index
    %c0_39 = arith.constant 0 : index
    %87 = vector.load %arg1[%c12, %c0_39] : memref<27x1024xf32, #tpu.memory_space<vmem>>, vector<1x1024xf32>
    %88 = vector.broadcast %87 : vector<1x1024xf32> to vector<8x1024xf32>
    %89 = arith.mulf %86, %88 : vector<8x1024xf32>
    %c96 = arith.constant 96 : index
    %c0_40 = arith.constant 0 : index
    %90 = vector.load %arg11[%c96, %c0_40] : memref<256x1024xf32, #tpu.memory_space<vmem>>, vector<8x1024xf32>
    tpu.vector_store %arg11[%c96, %c0_40], %89 {strides = array<i32>} : memref<256x1024xf32, #tpu.memory_space<vmem>>, vector<8x1024xf32>,
    %c13 = arith.constant 13 : index
    %c0_41 = arith.constant 0 : index
    %91 = vector.load %arg1[%c13, %c0_41] : memref<27x1024xf32, #tpu.memory_space<vmem>>, vector<1x1024xf32>
    %92 = vector.broadcast %91 : vector<1x1024xf32> to vector<8x1024xf32>
    %93 = arith.mulf %25, %92 : vector<8x1024xf32>
    %c104 = arith.constant 104 : index
    %c0_42 = arith.constant 0 : index
    %94 = vector.load %arg11[%c104, %c0_42] : memref<256x1024xf32, #tpu.memory_space<vmem>>, vector<8x1024xf32>
    tpu.vector_store %arg11[%c104, %c0_42], %93 {strides = array<i32>} : memref<256x1024xf32, #tpu.memory_space<vmem>>, vector<8x1024xf32>,
    %c1023_i32 = arith.constant 1023 : i32
    %95 = tpu.dynamic_rotate %25 by %c1023_i32 dim 1 : vector<8x1024xf32>, i32 -> vector<8x1024xf32>
    %c14 = arith.constant 14 : index
    %c0_43 = arith.constant 0 : index
    %96 = vector.load %arg1[%c14, %c0_43] : memref<27x1024xf32, #tpu.memory_space<vmem>>, vector<1x1024xf32>
    %97 = vector.broadcast %96 : vector<1x1024xf32> to vector<8x1024xf32>
    %98 = arith.mulf %95, %97 : vector<8x1024xf32>
    %c112 = arith.constant 112 : index
    %c0_44 = arith.constant 0 : index
    %99 = vector.load %arg11[%c112, %c0_44] : memref<256x1024xf32, #tpu.memory_space<vmem>>, vector<8x1024xf32>
    tpu.vector_store %arg11[%c112, %c0_44], %98 {strides = array<i32>} : memref<256x1024xf32, #tpu.memory_space<vmem>>, vector<8x1024xf32>,
    %c1017_i32 = arith.constant 1017 : i32
    %100 = tpu.dynamic_rotate %25 by %c1017_i32 dim 1 : vector<8x1024xf32>, i32 -> vector<8x1024xf32>
    %c15 = arith.constant 15 : index
    %c0_45 = arith.constant 0 : index
    %101 = vector.load %arg1[%c15, %c0_45] : memref<27x1024xf32, #tpu.memory_space<vmem>>, vector<1x1024xf32>
    %102 = vector.broadcast %101 : vector<1x1024xf32> to vector<8x1024xf32>
    %103 = arith.mulf %100, %102 : vector<8x1024xf32>
    %c120 = arith.constant 120 : index
    %c0_46 = arith.constant 0 : index
    %104 = vector.load %arg11[%c120, %c0_46] : memref<256x1024xf32, #tpu.memory_space<vmem>>, vector<8x1024xf32>
    tpu.vector_store %arg11[%c120, %c0_46], %103 {strides = array<i32>} : memref<256x1024xf32, #tpu.memory_space<vmem>>, vector<8x1024xf32>,
    %c0_47 = arith.constant 0 : index
    %c0_48 = arith.constant 0 : index
    %105 = vector.load %arg2[%c0_47, %c0_48] : memref<8x256xf32, #tpu.memory_space<vmem>>, vector<8x128xf32>
    %c0_49 = arith.constant 0 : index
    %c0_50 = arith.constant 0 : index
    %106 = vector.load %arg11[%c0_49, %c0_50] : memref<256x1024xf32, #tpu.memory_space<vmem>>, vector<128x1024xf32>
    %cst_51 = arith.constant dense<0.000000e+00> : vector<8x1024xf32>
    %107 = tpu.matmul %105, %106, %cst_51 {dimension_numbers = #tpu.dot_dimension_numbers<[1], [0], [0], [1], [0, 0, 1, 1], [], []>} : vector<8x128xf32>, vector<128x1024xf32>, vector<8x1024xf32> -> vector<8x1024xf32>
    %c1016_i32 = arith.constant 1016 : i32
    %108 = tpu.dynamic_rotate %25 by %c1016_i32 dim 1 : vector<8x1024xf32>, i32 -> vector<8x1024xf32>
    %c16_52 = arith.constant 16 : index
    %c0_53 = arith.constant 0 : index
    %109 = vector.load %arg1[%c16_52, %c0_53] : memref<27x1024xf32, #tpu.memory_space<vmem>>, vector<1x1024xf32>
    %110 = vector.broadcast %109 : vector<1x1024xf32> to vector<8x1024xf32>
    %111 = arith.mulf %108, %110 : vector<8x1024xf32>
    %c128 = arith.constant 128 : index
    %c0_54 = arith.constant 0 : index
    %112 = vector.load %arg11[%c128, %c0_54] : memref<256x1024xf32, #tpu.memory_space<vmem>>, vector<8x1024xf32>
    tpu.vector_store %arg11[%c128, %c0_54], %111 {strides = array<i32>} : memref<256x1024xf32, #tpu.memory_space<vmem>>, vector<8x1024xf32>,
    %c1015_i32 = arith.constant 1015 : i32
    %113 = tpu.dynamic_rotate %25 by %c1015_i32 dim 1 : vector<8x1024xf32>, i32 -> vector<8x1024xf32>
    %c17 = arith.constant 17 : index
    %c0_55 = arith.constant 0 : index
    %114 = vector.load %arg1[%c17, %c0_55] : memref<27x1024xf32, #tpu.memory_space<vmem>>, vector<1x1024xf32>
    %115 = vector.broadcast %114 : vector<1x1024xf32> to vector<8x1024xf32>
    %116 = arith.mulf %113, %115 : vector<8x1024xf32>
    %c136 = arith.constant 136 : index
    %c0_56 = arith.constant 0 : index
    %117 = vector.load %arg11[%c136, %c0_56] : memref<256x1024xf32, #tpu.memory_space<vmem>>, vector<8x1024xf32>
    tpu.vector_store %arg11[%c136, %c0_56], %116 {strides = array<i32>} : memref<256x1024xf32, #tpu.memory_space<vmem>>, vector<8x1024xf32>,
    %c969_i32 = arith.constant 969 : i32
    %118 = tpu.dynamic_rotate %25 by %c969_i32 dim 1 : vector<8x1024xf32>, i32 -> vector<8x1024xf32>
    %c18 = arith.constant 18 : index
    %c0_57 = arith.constant 0 : index
    %119 = vector.load %arg1[%c18, %c0_57] : memref<27x1024xf32, #tpu.memory_space<vmem>>, vector<1x1024xf32>
    %120 = vector.broadcast %119 : vector<1x1024xf32> to vector<8x1024xf32>
    %121 = arith.mulf %118, %120 : vector<8x1024xf32>
    %c144 = arith.constant 144 : index
    %c0_58 = arith.constant 0 : index
    %122 = vector.load %arg11[%c144, %c0_58] : memref<256x1024xf32, #tpu.memory_space<vmem>>, vector<8x1024xf32>
    tpu.vector_store %arg11[%c144, %c0_58], %121 {strides = array<i32>} : memref<256x1024xf32, #tpu.memory_space<vmem>>, vector<8x1024xf32>,
    %c968_i32 = arith.constant 968 : i32
    %123 = tpu.dynamic_rotate %25 by %c968_i32 dim 1 : vector<8x1024xf32>, i32 -> vector<8x1024xf32>
    %c19 = arith.constant 19 : index
    %c0_59 = arith.constant 0 : index
    %124 = vector.load %arg1[%c19, %c0_59] : memref<27x1024xf32, #tpu.memory_space<vmem>>, vector<1x1024xf32>
    %125 = vector.broadcast %124 : vector<1x1024xf32> to vector<8x1024xf32>
    %126 = arith.mulf %123, %125 : vector<8x1024xf32>
    %c152 = arith.constant 152 : index
    %c0_60 = arith.constant 0 : index
    %127 = vector.load %arg11[%c152, %c0_60] : memref<256x1024xf32, #tpu.memory_space<vmem>>, vector<8x1024xf32>
    tpu.vector_store %arg11[%c152, %c0_60], %126 {strides = array<i32>} : memref<256x1024xf32, #tpu.memory_space<vmem>>, vector<8x1024xf32>,
    %c967_i32 = arith.constant 967 : i32
    %128 = tpu.dynamic_rotate %25 by %c967_i32 dim 1 : vector<8x1024xf32>, i32 -> vector<8x1024xf32>
    %c20 = arith.constant 20 : index
    %c0_61 = arith.constant 0 : index
    %129 = vector.load %arg1[%c20, %c0_61] : memref<27x1024xf32, #tpu.memory_space<vmem>>, vector<1x1024xf32>
    %130 = vector.broadcast %129 : vector<1x1024xf32> to vector<8x1024xf32>
    %131 = arith.mulf %128, %130 : vector<8x1024xf32>
    %c160 = arith.constant 160 : index
    %c0_62 = arith.constant 0 : index
    %132 = vector.load %arg11[%c160, %c0_62] : memref<256x1024xf32, #tpu.memory_space<vmem>>, vector<8x1024xf32>
    tpu.vector_store %arg11[%c160, %c0_62], %131 {strides = array<i32>} : memref<256x1024xf32, #tpu.memory_space<vmem>>, vector<8x1024xf32>,
    %c961_i32 = arith.constant 961 : i32
    %133 = tpu.dynamic_rotate %25 by %c961_i32 dim 1 : vector<8x1024xf32>, i32 -> vector<8x1024xf32>
    %c21 = arith.constant 21 : index
    %c0_63 = arith.constant 0 : index
    %134 = vector.load %arg1[%c21, %c0_63] : memref<27x1024xf32, #tpu.memory_space<vmem>>, vector<1x1024xf32>
    %135 = vector.broadcast %134 : vector<1x1024xf32> to vector<8x1024xf32>
    %136 = arith.mulf %133, %135 : vector<8x1024xf32>
    %c168 = arith.constant 168 : index
    %c0_64 = arith.constant 0 : index
    %137 = vector.load %arg11[%c168, %c0_64] : memref<256x1024xf32, #tpu.memory_space<vmem>>, vector<8x1024xf32>
    tpu.vector_store %arg11[%c168, %c0_64], %136 {strides = array<i32>} : memref<256x1024xf32, #tpu.memory_space<vmem>>, vector<8x1024xf32>,
    %c960_i32 = arith.constant 960 : i32
    %138 = tpu.dynamic_rotate %25 by %c960_i32 dim 1 : vector<8x1024xf32>, i32 -> vector<8x1024xf32>
    %c22 = arith.constant 22 : index
    %c0_65 = arith.constant 0 : index
    %139 = vector.load %arg1[%c22, %c0_65] : memref<27x1024xf32, #tpu.memory_space<vmem>>, vector<1x1024xf32>
    %140 = vector.broadcast %139 : vector<1x1024xf32> to vector<8x1024xf32>
    %141 = arith.mulf %138, %140 : vector<8x1024xf32>
    %c176 = arith.constant 176 : index
    %c0_66 = arith.constant 0 : index
    %142 = vector.load %arg11[%c176, %c0_66] : memref<256x1024xf32, #tpu.memory_space<vmem>>, vector<8x1024xf32>
    tpu.vector_store %arg11[%c176, %c0_66], %141 {strides = array<i32>} : memref<256x1024xf32, #tpu.memory_space<vmem>>, vector<8x1024xf32>,
    %c959_i32 = arith.constant 959 : i32
    %143 = tpu.dynamic_rotate %25 by %c959_i32 dim 1 : vector<8x1024xf32>, i32 -> vector<8x1024xf32>
    %c23 = arith.constant 23 : index
    %c0_67 = arith.constant 0 : index
    %144 = vector.load %arg1[%c23, %c0_67] : memref<27x1024xf32, #tpu.memory_space<vmem>>, vector<1x1024xf32>
    %145 = vector.broadcast %144 : vector<1x1024xf32> to vector<8x1024xf32>
    %146 = arith.mulf %143, %145 : vector<8x1024xf32>
    %c184 = arith.constant 184 : index
    %c0_68 = arith.constant 0 : index
    %147 = vector.load %arg11[%c184, %c0_68] : memref<256x1024xf32, #tpu.memory_space<vmem>>, vector<8x1024xf32>
    tpu.vector_store %arg11[%c184, %c0_68], %146 {strides = array<i32>} : memref<256x1024xf32, #tpu.memory_space<vmem>>, vector<8x1024xf32>,
    %c953_i32 = arith.constant 953 : i32
    %148 = tpu.dynamic_rotate %25 by %c953_i32 dim 1 : vector<8x1024xf32>, i32 -> vector<8x1024xf32>
    %c24_69 = arith.constant 24 : index
    %c0_70 = arith.constant 0 : index
    %149 = vector.load %arg1[%c24_69, %c0_70] : memref<27x1024xf32, #tpu.memory_space<vmem>>, vector<1x1024xf32>
    %150 = vector.broadcast %149 : vector<1x1024xf32> to vector<8x1024xf32>
    %151 = arith.mulf %148, %150 : vector<8x1024xf32>
    %c192 = arith.constant 192 : index
    %c0_71 = arith.constant 0 : index
    %152 = vector.load %arg11[%c192, %c0_71] : memref<256x1024xf32, #tpu.memory_space<vmem>>, vector<8x1024xf32>
    tpu.vector_store %arg11[%c192, %c0_71], %151 {strides = array<i32>} : memref<256x1024xf32, #tpu.memory_space<vmem>>, vector<8x1024xf32>,
    %c952_i32 = arith.constant 952 : i32
    %153 = tpu.dynamic_rotate %25 by %c952_i32 dim 1 : vector<8x1024xf32>, i32 -> vector<8x1024xf32>
    %c25 = arith.constant 25 : index
    %c0_72 = arith.constant 0 : index
    %154 = vector.load %arg1[%c25, %c0_72] : memref<27x1024xf32, #tpu.memory_space<vmem>>, vector<1x1024xf32>
    %155 = vector.broadcast %154 : vector<1x1024xf32> to vector<8x1024xf32>
    %156 = arith.mulf %153, %155 : vector<8x1024xf32>
    %c200 = arith.constant 200 : index
    %c0_73 = arith.constant 0 : index
    %157 = vector.load %arg11[%c200, %c0_73] : memref<256x1024xf32, #tpu.memory_space<vmem>>, vector<8x1024xf32>
    tpu.vector_store %arg11[%c200, %c0_73], %156 {strides = array<i32>} : memref<256x1024xf32, #tpu.memory_space<vmem>>, vector<8x1024xf32>,
    %c951_i32 = arith.constant 951 : i32
    %158 = tpu.dynamic_rotate %25 by %c951_i32 dim 1 : vector<8x1024xf32>, i32 -> vector<8x1024xf32>
    %c26 = arith.constant 26 : index
    %c0_74 = arith.constant 0 : index
    %159 = vector.load %arg1[%c26, %c0_74] : memref<27x1024xf32, #tpu.memory_space<vmem>>, vector<1x1024xf32>
    %160 = vector.broadcast %159 : vector<1x1024xf32> to vector<8x1024xf32>
    %161 = arith.mulf %158, %160 : vector<8x1024xf32>
    %c208 = arith.constant 208 : index
    %c0_75 = arith.constant 0 : index
    %162 = vector.load %arg11[%c208, %c0_75] : memref<256x1024xf32, #tpu.memory_space<vmem>>, vector<8x1024xf32>
    tpu.vector_store %arg11[%c208, %c0_75], %161 {strides = array<i32>} : memref<256x1024xf32, #tpu.memory_space<vmem>>, vector<8x1024xf32>,
    %c0_76 = arith.constant 0 : index
    %c128_77 = arith.constant 128 : index
    %163 = vector.load %arg2[%c0_76, %c128_77] : memref<8x256xf32, #tpu.memory_space<vmem>>, vector<8x128xf32>
    %c128_78 = arith.constant 128 : index
    %c0_79 = arith.constant 0 : index
    %164 = vector.load %arg11[%c128_78, %c0_79] : memref<256x1024xf32, #tpu.memory_space<vmem>>, vector<128x1024xf32>
    %cst_80 = arith.constant dense<0.000000e+00> : vector<8x1024xf32>
    %165 = tpu.matmul %163, %164, %cst_80 {dimension_numbers = #tpu.dot_dimension_numbers<[1], [0], [0], [1], [0, 0, 1, 1], [], []>} : vector<8x128xf32>, vector<128x1024xf32>, vector<8x1024xf32> -> vector<8x1024xf32>
    %166 = arith.addf %107, %165 : vector<8x1024xf32>
    %c0_81 = arith.constant 0 : index
    %c0_82 = arith.constant 0 : index
    %167 = vector.load %arg3[%c0_81, %c0_82] : memref<8x1xf32, #tpu.memory_space<vmem>>, vector<8x1xf32>
    %168 = vector.broadcast %167 : vector<8x1xf32> to vector<8x1024xf32>
    %169 = arith.addf %166, %168 : vector<8x1024xf32>
    %cst_83 = arith.constant dense<0.000000e+00> : vector<8xf32>
    %170 = vector.multi_reduction <add>, %169, %cst_83 [1] : vector<8x1024xf32> to vector<8xf32>
    %171 = vector.shape_cast %170 : vector<8xf32> to vector<8x1xf32>
    %cst_84 = arith.constant 9.765625E-4 : f32
    %172 = vector.broadcast %cst_84 : f32 to vector<8x1xf32>
    %173 = arith.mulf %171, %172 : vector<8x1xf32>
    %174 = vector.broadcast %173 : vector<8x1xf32> to vector<8x1024xf32>
    %175 = arith.subf %169, %174 : vector<8x1024xf32>
    %176 = arith.mulf %175, %175 : vector<8x1024xf32>
    %cst_85 = arith.constant dense<0.000000e+00> : vector<8xf32>
    %177 = vector.multi_reduction <add>, %176, %cst_85 [1] : vector<8x1024xf32> to vector<8xf32>
    %178 = vector.shape_cast %177 : vector<8xf32> to vector<8x1xf32>
    %cst_86 = arith.constant 9.765625E-4 : f32
    %179 = vector.broadcast %cst_86 : f32 to vector<8x1xf32>
    %180 = arith.mulf %178, %179 : vector<8x1xf32>
    %cst_87 = arith.constant 9.99999974E-6 : f32
    %181 = vector.broadcast %cst_87 : f32 to vector<8x1xf32>
    %182 = arith.addf %180, %181 : vector<8x1xf32>
    %183 = math.rsqrt %182 : vector<8x1xf32>
    %c0_88 = arith.constant 0 : index
    %c0_89 = arith.constant 0 : index
    %184 = vector.load %arg8[%c0_88, %c0_89] : memref<8x1xf32, #tpu.memory_space<vmem>>, vector<8x1xf32>
    %185 = arith.mulf %183, %184 : vector<8x1xf32>
    %186 = vector.broadcast %185 : vector<8x1xf32> to vector<8x1024xf32>
    %187 = arith.mulf %175, %186 : vector<8x1024xf32>
    %c0_90 = arith.constant 0 : index
    %c0_91 = arith.constant 0 : index
    %188 = vector.load %arg9[%c0_90, %c0_91] : memref<8x1xf32, #tpu.memory_space<vmem>>, vector<8x1xf32>
    %189 = vector.broadcast %188 : vector<8x1xf32> to vector<8x1024xf32>
    %190 = arith.addf %187, %189 : vector<8x1024xf32>
    %cst_92 = arith.constant 0.000000e+00 : f32
    %191 = vector.broadcast %cst_92 : f32 to vector<8x1024xf32>
    %192 = arith.maximumf %190, %191 : vector<8x1024xf32>
    %c73_i32_93 = arith.constant 73 : i32
    %193 = tpu.dynamic_rotate %192 by %c73_i32_93 dim 1 : vector<8x1024xf32>, i32 -> vector<8x1024xf32>
    %c0_94 = arith.constant 0 : index
    %c0_95 = arith.constant 0 : index
    %194 = vector.load %arg1[%c0_94, %c0_95] : memref<27x1024xf32, #tpu.memory_space<vmem>>, vector<1x1024xf32>
    %195 = vector.broadcast %194 : vector<1x1024xf32> to vector<8x1024xf32>
    %196 = arith.mulf %193, %195 : vector<8x1024xf32>
    %c0_96 = arith.constant 0 : index
    %c0_97 = arith.constant 0 : index
    %197 = vector.load %arg11[%c0_96, %c0_97] : memref<256x1024xf32, #tpu.memory_space<vmem>>, vector<8x1024xf32>
    tpu.vector_store %arg11[%c0_96, %c0_97], %196 {strides = array<i32>} : memref<256x1024xf32, #tpu.memory_space<vmem>>, vector<8x1024xf32>,
    %c72_i32_98 = arith.constant 72 : i32
    %198 = tpu.dynamic_rotate %192 by %c72_i32_98 dim 1 : vector<8x1024xf32>, i32 -> vector<8x1024xf32>
    %c1_99 = arith.constant 1 : index
    %c0_100 = arith.constant 0 : index
    %199 = vector.load %arg1[%c1_99, %c0_100] : memref<27x1024xf32, #tpu.memory_space<vmem>>, vector<1x1024xf32>
    %200 = vector.broadcast %199 : vector<1x1024xf32> to vector<8x1024xf32>
    %201 = arith.mulf %198, %200 : vector<8x1024xf32>
    %c8_101 = arith.constant 8 : index
    %c0_102 = arith.constant 0 : index
    %202 = vector.load %arg11[%c8_101, %c0_102] : memref<256x1024xf32, #tpu.memory_space<vmem>>, vector<8x1024xf32>
    tpu.vector_store %arg11[%c8_101, %c0_102], %201 {strides = array<i32>} : memref<256x1024xf32, #tpu.memory_space<vmem>>, vector<8x1024xf32>,
    %c71_i32_103 = arith.constant 71 : i32
    %203 = tpu.dynamic_rotate %192 by %c71_i32_103 dim 1 : vector<8x1024xf32>, i32 -> vector<8x1024xf32>
    %c2_104 = arith.constant 2 : index
    %c0_105 = arith.constant 0 : index
    %204 = vector.load %arg1[%c2_104, %c0_105] : memref<27x1024xf32, #tpu.memory_space<vmem>>, vector<1x1024xf32>
    %205 = vector.broadcast %204 : vector<1x1024xf32> to vector<8x1024xf32>
    %206 = arith.mulf %203, %205 : vector<8x1024xf32>
    %c16_106 = arith.constant 16 : index
    %c0_107 = arith.constant 0 : index
    %207 = vector.load %arg11[%c16_106, %c0_107] : memref<256x1024xf32, #tpu.memory_space<vmem>>, vector<8x1024xf32>
    tpu.vector_store %arg11[%c16_106, %c0_107], %206 {strides = array<i32>} : memref<256x1024xf32, #tpu.memory_space<vmem>>, vector<8x1024xf32>,
    %c65_i32_108 = arith.constant 65 : i32
    %208 = tpu.dynamic_rotate %192 by %c65_i32_108 dim 1 : vector<8x1024xf32>, i32 -> vector<8x1024xf32>
    %c3_109 = arith.constant 3 : index
    %c0_110 = arith.constant 0 : index
    %209 = vector.load %arg1[%c3_109, %c0_110] : memref<27x1024xf32, #tpu.memory_space<vmem>>, vector<1x1024xf32>
    %210 = vector.broadcast %209 : vector<1x1024xf32> to vector<8x1024xf32>
    %211 = arith.mulf %208, %210 : vector<8x1024xf32>
    %c24_111 = arith.constant 24 : index
    %c0_112 = arith.constant 0 : index
    %212 = vector.load %arg11[%c24_111, %c0_112] : memref<256x1024xf32, #tpu.memory_space<vmem>>, vector<8x1024xf32>
    tpu.vector_store %arg11[%c24_111, %c0_112], %211 {strides = array<i32>} : memref<256x1024xf32, #tpu.memory_space<vmem>>, vector<8x1024xf32>,
    %c64_i32_113 = arith.constant 64 : i32
    %213 = tpu.dynamic_rotate %192 by %c64_i32_113 dim 1 : vector<8x1024xf32>, i32 -> vector<8x1024xf32>
    %c4_114 = arith.constant 4 : index
    %c0_115 = arith.constant 0 : index
    %214 = vector.load %arg1[%c4_114, %c0_115] : memref<27x1024xf32, #tpu.memory_space<vmem>>, vector<1x1024xf32>
    %215 = vector.broadcast %214 : vector<1x1024xf32> to vector<8x1024xf32>
    %216 = arith.mulf %213, %215 : vector<8x1024xf32>
    %c32_116 = arith.constant 32 : index
    %c0_117 = arith.constant 0 : index
    %217 = vector.load %arg11[%c32_116, %c0_117] : memref<256x1024xf32, #tpu.memory_space<vmem>>, vector<8x1024xf32>
    tpu.vector_store %arg11[%c32_116, %c0_117], %216 {strides = array<i32>} : memref<256x1024xf32, #tpu.memory_space<vmem>>, vector<8x1024xf32>,
    %c63_i32_118 = arith.constant 63 : i32
    %218 = tpu.dynamic_rotate %192 by %c63_i32_118 dim 1 : vector<8x1024xf32>, i32 -> vector<8x1024xf32>
    %c5_119 = arith.constant 5 : index
    %c0_120 = arith.constant 0 : index
    %219 = vector.load %arg1[%c5_119, %c0_120] : memref<27x1024xf32, #tpu.memory_space<vmem>>, vector<1x1024xf32>
    %220 = vector.broadcast %219 : vector<1x1024xf32> to vector<8x1024xf32>
    %221 = arith.mulf %218, %220 : vector<8x1024xf32>
    %c40_121 = arith.constant 40 : index
    %c0_122 = arith.constant 0 : index
    %222 = vector.load %arg11[%c40_121, %c0_122] : memref<256x1024xf32, #tpu.memory_space<vmem>>, vector<8x1024xf32>
    tpu.vector_store %arg11[%c40_121, %c0_122], %221 {strides = array<i32>} : memref<256x1024xf32, #tpu.memory_space<vmem>>, vector<8x1024xf32>,
    %c57_i32_123 = arith.constant 57 : i32
    %223 = tpu.dynamic_rotate %192 by %c57_i32_123 dim 1 : vector<8x1024xf32>, i32 -> vector<8x1024xf32>
    %c6_124 = arith.constant 6 : index
    %c0_125 = arith.constant 0 : index
    %224 = vector.load %arg1[%c6_124, %c0_125] : memref<27x1024xf32, #tpu.memory_space<vmem>>, vector<1x1024xf32>
    %225 = vector.broadcast %224 : vector<1x1024xf32> to vector<8x1024xf32>
    %226 = arith.mulf %223, %225 : vector<8x1024xf32>
    %c48_126 = arith.constant 48 : index
    %c0_127 = arith.constant 0 : index
    %227 = vector.load %arg11[%c48_126, %c0_127] : memref<256x1024xf32, #tpu.memory_space<vmem>>, vector<8x1024xf32>
    tpu.vector_store %arg11[%c48_126, %c0_127], %226 {strides = array<i32>} : memref<256x1024xf32, #tpu.memory_space<vmem>>, vector<8x1024xf32>,
    %c56_i32_128 = arith.constant 56 : i32
    %228 = tpu.dynamic_rotate %192 by %c56_i32_128 dim 1 : vector<8x1024xf32>, i32 -> vector<8x1024xf32>
    %c7_129 = arith.constant 7 : index
    %c0_130 = arith.constant 0 : index
    %229 = vector.load %arg1[%c7_129, %c0_130] : memref<27x1024xf32, #tpu.memory_space<vmem>>, vector<1x1024xf32>
    %230 = vector.broadcast %229 : vector<1x1024xf32> to vector<8x1024xf32>
    %231 = arith.mulf %228, %230 : vector<8x1024xf32>
    %c56_131 = arith.constant 56 : index
    %c0_132 = arith.constant 0 : index
    %232 = vector.load %arg11[%c56_131, %c0_132] : memref<256x1024xf32, #tpu.memory_space<vmem>>, vector<8x1024xf32>
    tpu.vector_store %arg11[%c56_131, %c0_132], %231 {strides = array<i32>} : memref<256x1024xf32, #tpu.memory_space<vmem>>, vector<8x1024xf32>,
    %c55_i32_133 = arith.constant 55 : i32
    %233 = tpu.dynamic_rotate %192 by %c55_i32_133 dim 1 : vector<8x1024xf32>, i32 -> vector<8x1024xf32>
    %c8_134 = arith.constant 8 : index
    %c0_135 = arith.constant 0 : index
    %234 = vector.load %arg1[%c8_134, %c0_135] : memref<27x1024xf32, #tpu.memory_space<vmem>>, vector<1x1024xf32>
    %235 = vector.broadcast %234 : vector<1x1024xf32> to vector<8x1024xf32>
    %236 = arith.mulf %233, %235 : vector<8x1024xf32>
    %c64_136 = arith.constant 64 : index
    %c0_137 = arith.constant 0 : index
    %237 = vector.load %arg11[%c64_136, %c0_137] : memref<256x1024xf32, #tpu.memory_space<vmem>>, vector<8x1024xf32>
    tpu.vector_store %arg11[%c64_136, %c0_137], %236 {strides = array<i32>} : memref<256x1024xf32, #tpu.memory_space<vmem>>, vector<8x1024xf32>,
    %c9_i32_138 = arith.constant 9 : i32
    %238 = tpu.dynamic_rotate %192 by %c9_i32_138 dim 1 : vector<8x1024xf32>, i32 -> vector<8x1024xf32>
    %c9_139 = arith.constant 9 : index
    %c0_140 = arith.constant 0 : index
    %239 = vector.load %arg1[%c9_139, %c0_140] : memref<27x1024xf32, #tpu.memory_space<vmem>>, vector<1x1024xf32>
    %240 = vector.broadcast %239 : vector<1x1024xf32> to vector<8x1024xf32>
    %241 = arith.mulf %238, %240 : vector<8x1024xf32>
    %c72_141 = arith.constant 72 : index
    %c0_142 = arith.constant 0 : index
    %242 = vector.load %arg11[%c72_141, %c0_142] : memref<256x1024xf32, #tpu.memory_space<vmem>>, vector<8x1024xf32>
    tpu.vector_store %arg11[%c72_141, %c0_142], %241 {strides = array<i32>} : memref<256x1024xf32, #tpu.memory_space<vmem>>, vector<8x1024xf32>,
    %c8_i32_143 = arith.constant 8 : i32
    %243 = tpu.dynamic_rotate %192 by %c8_i32_143 dim 1 : vector<8x1024xf32>, i32 -> vector<8x1024xf32>
    %c10_144 = arith.constant 10 : index
    %c0_145 = arith.constant 0 : index
    %244 = vector.load %arg1[%c10_144, %c0_145] : memref<27x1024xf32, #tpu.memory_space<vmem>>, vector<1x1024xf32>
    %245 = vector.broadcast %244 : vector<1x1024xf32> to vector<8x1024xf32>
    %246 = arith.mulf %243, %245 : vector<8x1024xf32>
    %c80_146 = arith.constant 80 : index
    %c0_147 = arith.constant 0 : index
    %247 = vector.load %arg11[%c80_146, %c0_147] : memref<256x1024xf32, #tpu.memory_space<vmem>>, vector<8x1024xf32>
    tpu.vector_store %arg11[%c80_146, %c0_147], %246 {strides = array<i32>} : memref<256x1024xf32, #tpu.memory_space<vmem>>, vector<8x1024xf32>,
    %c7_i32_148 = arith.constant 7 : i32
    %248 = tpu.dynamic_rotate %192 by %c7_i32_148 dim 1 : vector<8x1024xf32>, i32 -> vector<8x1024xf32>
    %c11_149 = arith.constant 11 : index
    %c0_150 = arith.constant 0 : index
    %249 = vector.load %arg1[%c11_149, %c0_150] : memref<27x1024xf32, #tpu.memory_space<vmem>>, vector<1x1024xf32>
    %250 = vector.broadcast %249 : vector<1x1024xf32> to vector<8x1024xf32>
    %251 = arith.mulf %248, %250 : vector<8x1024xf32>
    %c88_151 = arith.constant 88 : index
    %c0_152 = arith.constant 0 : index
    %252 = vector.load %arg11[%c88_151, %c0_152] : memref<256x1024xf32, #tpu.memory_space<vmem>>, vector<8x1024xf32>
    tpu.vector_store %arg11[%c88_151, %c0_152], %251 {strides = array<i32>} : memref<256x1024xf32, #tpu.memory_space<vmem>>, vector<8x1024xf32>,
    %c1_i32_153 = arith.constant 1 : i32
    %253 = tpu.dynamic_rotate %192 by %c1_i32_153 dim 1 : vector<8x1024xf32>, i32 -> vector<8x1024xf32>
    %c12_154 = arith.constant 12 : index
    %c0_155 = arith.constant 0 : index
    %254 = vector.load %arg1[%c12_154, %c0_155] : memref<27x1024xf32, #tpu.memory_space<vmem>>, vector<1x1024xf32>
    %255 = vector.broadcast %254 : vector<1x1024xf32> to vector<8x1024xf32>
    %256 = arith.mulf %253, %255 : vector<8x1024xf32>
    %c96_156 = arith.constant 96 : index
    %c0_157 = arith.constant 0 : index
    %257 = vector.load %arg11[%c96_156, %c0_157] : memref<256x1024xf32, #tpu.memory_space<vmem>>, vector<8x1024xf32>
    tpu.vector_store %arg11[%c96_156, %c0_157], %256 {strides = array<i32>} : memref<256x1024xf32, #tpu.memory_space<vmem>>, vector<8x1024xf32>,
    %c13_158 = arith.constant 13 : index
    %c0_159 = arith.constant 0 : index
    %258 = vector.load %arg1[%c13_158, %c0_159] : memref<27x1024xf32, #tpu.memory_space<vmem>>, vector<1x1024xf32>
    %259 = vector.broadcast %258 : vector<1x1024xf32> to vector<8x1024xf32>
    %260 = arith.mulf %192, %259 : vector<8x1024xf32>
    %c104_160 = arith.constant 104 : index
    %c0_161 = arith.constant 0 : index
    %261 = vector.load %arg11[%c104_160, %c0_161] : memref<256x1024xf32, #tpu.memory_space<vmem>>, vector<8x1024xf32>
    tpu.vector_store %arg11[%c104_160, %c0_161], %260 {strides = array<i32>} : memref<256x1024xf32, #tpu.memory_space<vmem>>, vector<8x1024xf32>,
    %c1023_i32_162 = arith.constant 1023 : i32
    %262 = tpu.dynamic_rotate %192 by %c1023_i32_162 dim 1 : vector<8x1024xf32>, i32 -> vector<8x1024xf32>
    %c14_163 = arith.constant 14 : index
    %c0_164 = arith.constant 0 : index
    %263 = vector.load %arg1[%c14_163, %c0_164] : memref<27x1024xf32, #tpu.memory_space<vmem>>, vector<1x1024xf32>
    %264 = vector.broadcast %263 : vector<1x1024xf32> to vector<8x1024xf32>
    %265 = arith.mulf %262, %264 : vector<8x1024xf32>
    %c112_165 = arith.constant 112 : index
    %c0_166 = arith.constant 0 : index
    %266 = vector.load %arg11[%c112_165, %c0_166] : memref<256x1024xf32, #tpu.memory_space<vmem>>, vector<8x1024xf32>
    tpu.vector_store %arg11[%c112_165, %c0_166], %265 {strides = array<i32>} : memref<256x1024xf32, #tpu.memory_space<vmem>>, vector<8x1024xf32>,
    %c1017_i32_167 = arith.constant 1017 : i32
    %267 = tpu.dynamic_rotate %192 by %c1017_i32_167 dim 1 : vector<8x1024xf32>, i32 -> vector<8x1024xf32>
    %c15_168 = arith.constant 15 : index
    %c0_169 = arith.constant 0 : index
    %268 = vector.load %arg1[%c15_168, %c0_169] : memref<27x1024xf32, #tpu.memory_space<vmem>>, vector<1x1024xf32>
    %269 = vector.broadcast %268 : vector<1x1024xf32> to vector<8x1024xf32>
    %270 = arith.mulf %267, %269 : vector<8x1024xf32>
    %c120_170 = arith.constant 120 : index
    %c0_171 = arith.constant 0 : index
    %271 = vector.load %arg11[%c120_170, %c0_171] : memref<256x1024xf32, #tpu.memory_space<vmem>>, vector<8x1024xf32>
    tpu.vector_store %arg11[%c120_170, %c0_171], %270 {strides = array<i32>} : memref<256x1024xf32, #tpu.memory_space<vmem>>, vector<8x1024xf32>,
    %c0_172 = arith.constant 0 : index
    %c0_173 = arith.constant 0 : index
    %272 = vector.load %arg6[%c0_172, %c0_173] : memref<8x256xf32, #tpu.memory_space<vmem>>, vector<8x128xf32>
    %c0_174 = arith.constant 0 : index
    %c0_175 = arith.constant 0 : index
    %273 = vector.load %arg11[%c0_174, %c0_175] : memref<256x1024xf32, #tpu.memory_space<vmem>>, vector<128x1024xf32>
    %cst_176 = arith.constant dense<0.000000e+00> : vector<8x1024xf32>
    %274 = tpu.matmul %272, %273, %cst_176 {dimension_numbers = #tpu.dot_dimension_numbers<[1], [0], [0], [1], [0, 0, 1, 1], [], []>} : vector<8x128xf32>, vector<128x1024xf32>, vector<8x1024xf32> -> vector<8x1024xf32>
    %c1016_i32_177 = arith.constant 1016 : i32
    %275 = tpu.dynamic_rotate %192 by %c1016_i32_177 dim 1 : vector<8x1024xf32>, i32 -> vector<8x1024xf32>
    %c16_178 = arith.constant 16 : index
    %c0_179 = arith.constant 0 : index
    %276 = vector.load %arg1[%c16_178, %c0_179] : memref<27x1024xf32, #tpu.memory_space<vmem>>, vector<1x1024xf32>
    %277 = vector.broadcast %276 : vector<1x1024xf32> to vector<8x1024xf32>
    %278 = arith.mulf %275, %277 : vector<8x1024xf32>
    %c128_180 = arith.constant 128 : index
    %c0_181 = arith.constant 0 : index
    %279 = vector.load %arg11[%c128_180, %c0_181] : memref<256x1024xf32, #tpu.memory_space<vmem>>, vector<8x1024xf32>
    tpu.vector_store %arg11[%c128_180, %c0_181], %278 {strides = array<i32>} : memref<256x1024xf32, #tpu.memory_space<vmem>>, vector<8x1024xf32>,
    %c1015_i32_182 = arith.constant 1015 : i32
    %280 = tpu.dynamic_rotate %192 by %c1015_i32_182 dim 1 : vector<8x1024xf32>, i32 -> vector<8x1024xf32>
    %c17_183 = arith.constant 17 : index
    %c0_184 = arith.constant 0 : index
    %281 = vector.load %arg1[%c17_183, %c0_184] : memref<27x1024xf32, #tpu.memory_space<vmem>>, vector<1x1024xf32>
    %282 = vector.broadcast %281 : vector<1x1024xf32> to vector<8x1024xf32>
    %283 = arith.mulf %280, %282 : vector<8x1024xf32>
    %c136_185 = arith.constant 136 : index
    %c0_186 = arith.constant 0 : index
    %284 = vector.load %arg11[%c136_185, %c0_186] : memref<256x1024xf32, #tpu.memory_space<vmem>>, vector<8x1024xf32>
    tpu.vector_store %arg11[%c136_185, %c0_186], %283 {strides = array<i32>} : memref<256x1024xf32, #tpu.memory_space<vmem>>, vector<8x1024xf32>,
    %c969_i32_187 = arith.constant 969 : i32
    %285 = tpu.dynamic_rotate %192 by %c969_i32_187 dim 1 : vector<8x1024xf32>, i32 -> vector<8x1024xf32>
    %c18_188 = arith.constant 18 : index
    %c0_189 = arith.constant 0 : index
    %286 = vector.load %arg1[%c18_188, %c0_189] : memref<27x1024xf32, #tpu.memory_space<vmem>>, vector<1x1024xf32>
    %287 = vector.broadcast %286 : vector<1x1024xf32> to vector<8x1024xf32>
    %288 = arith.mulf %285, %287 : vector<8x1024xf32>
    %c144_190 = arith.constant 144 : index
    %c0_191 = arith.constant 0 : index
    %289 = vector.load %arg11[%c144_190, %c0_191] : memref<256x1024xf32, #tpu.memory_space<vmem>>, vector<8x1024xf32>
    tpu.vector_store %arg11[%c144_190, %c0_191], %288 {strides = array<i32>} : memref<256x1024xf32, #tpu.memory_space<vmem>>, vector<8x1024xf32>,
    %c968_i32_192 = arith.constant 968 : i32
    %290 = tpu.dynamic_rotate %192 by %c968_i32_192 dim 1 : vector<8x1024xf32>, i32 -> vector<8x1024xf32>
    %c19_193 = arith.constant 19 : index
    %c0_194 = arith.constant 0 : index
    %291 = vector.load %arg1[%c19_193, %c0_194] : memref<27x1024xf32, #tpu.memory_space<vmem>>, vector<1x1024xf32>
    %292 = vector.broadcast %291 : vector<1x1024xf32> to vector<8x1024xf32>
    %293 = arith.mulf %290, %292 : vector<8x1024xf32>
    %c152_195 = arith.constant 152 : index
    %c0_196 = arith.constant 0 : index
    %294 = vector.load %arg11[%c152_195, %c0_196] : memref<256x1024xf32, #tpu.memory_space<vmem>>, vector<8x1024xf32>
    tpu.vector_store %arg11[%c152_195, %c0_196], %293 {strides = array<i32>} : memref<256x1024xf32, #tpu.memory_space<vmem>>, vector<8x1024xf32>,
    %c967_i32_197 = arith.constant 967 : i32
    %295 = tpu.dynamic_rotate %192 by %c967_i32_197 dim 1 : vector<8x1024xf32>, i32 -> vector<8x1024xf32>
    %c20_198 = arith.constant 20 : index
    %c0_199 = arith.constant 0 : index
    %296 = vector.load %arg1[%c20_198, %c0_199] : memref<27x1024xf32, #tpu.memory_space<vmem>>, vector<1x1024xf32>
    %297 = vector.broadcast %296 : vector<1x1024xf32> to vector<8x1024xf32>
    %298 = arith.mulf %295, %297 : vector<8x1024xf32>
    %c160_200 = arith.constant 160 : index
    %c0_201 = arith.constant 0 : index
    %299 = vector.load %arg11[%c160_200, %c0_201] : memref<256x1024xf32, #tpu.memory_space<vmem>>, vector<8x1024xf32>
    tpu.vector_store %arg11[%c160_200, %c0_201], %298 {strides = array<i32>} : memref<256x1024xf32, #tpu.memory_space<vmem>>, vector<8x1024xf32>,
    %c961_i32_202 = arith.constant 961 : i32
    %300 = tpu.dynamic_rotate %192 by %c961_i32_202 dim 1 : vector<8x1024xf32>, i32 -> vector<8x1024xf32>
    %c21_203 = arith.constant 21 : index
    %c0_204 = arith.constant 0 : index
    %301 = vector.load %arg1[%c21_203, %c0_204] : memref<27x1024xf32, #tpu.memory_space<vmem>>, vector<1x1024xf32>
    %302 = vector.broadcast %301 : vector<1x1024xf32> to vector<8x1024xf32>
    %303 = arith.mulf %300, %302 : vector<8x1024xf32>
    %c168_205 = arith.constant 168 : index
    %c0_206 = arith.constant 0 : index
    %304 = vector.load %arg11[%c168_205, %c0_206] : memref<256x1024xf32, #tpu.memory_space<vmem>>, vector<8x1024xf32>
    tpu.vector_store %arg11[%c168_205, %c0_206], %303 {strides = array<i32>} : memref<256x1024xf32, #tpu.memory_space<vmem>>, vector<8x1024xf32>,
    %c960_i32_207 = arith.constant 960 : i32
    %305 = tpu.dynamic_rotate %192 by %c960_i32_207 dim 1 : vector<8x1024xf32>, i32 -> vector<8x1024xf32>
    %c22_208 = arith.constant 22 : index
    %c0_209 = arith.constant 0 : index
    %306 = vector.load %arg1[%c22_208, %c0_209] : memref<27x1024xf32, #tpu.memory_space<vmem>>, vector<1x1024xf32>
    %307 = vector.broadcast %306 : vector<1x1024xf32> to vector<8x1024xf32>
    %308 = arith.mulf %305, %307 : vector<8x1024xf32>
    %c176_210 = arith.constant 176 : index
    %c0_211 = arith.constant 0 : index
    %309 = vector.load %arg11[%c176_210, %c0_211] : memref<256x1024xf32, #tpu.memory_space<vmem>>, vector<8x1024xf32>
    tpu.vector_store %arg11[%c176_210, %c0_211], %308 {strides = array<i32>} : memref<256x1024xf32, #tpu.memory_space<vmem>>, vector<8x1024xf32>,
    %c959_i32_212 = arith.constant 959 : i32
    %310 = tpu.dynamic_rotate %192 by %c959_i32_212 dim 1 : vector<8x1024xf32>, i32 -> vector<8x1024xf32>
    %c23_213 = arith.constant 23 : index
    %c0_214 = arith.constant 0 : index
    %311 = vector.load %arg1[%c23_213, %c0_214] : memref<27x1024xf32, #tpu.memory_space<vmem>>, vector<1x1024xf32>
    %312 = vector.broadcast %311 : vector<1x1024xf32> to vector<8x1024xf32>
    %313 = arith.mulf %310, %312 : vector<8x1024xf32>
    %c184_215 = arith.constant 184 : index
    %c0_216 = arith.constant 0 : index
    %314 = vector.load %arg11[%c184_215, %c0_216] : memref<256x1024xf32, #tpu.memory_space<vmem>>, vector<8x1024xf32>
    tpu.vector_store %arg11[%c184_215, %c0_216], %313 {strides = array<i32>} : memref<256x1024xf32, #tpu.memory_space<vmem>>, vector<8x1024xf32>,
    %c953_i32_217 = arith.constant 953 : i32
    %315 = tpu.dynamic_rotate %192 by %c953_i32_217 dim 1 : vector<8x1024xf32>, i32 -> vector<8x1024xf32>
    %c24_218 = arith.constant 24 : index
    %c0_219 = arith.constant 0 : index
    %316 = vector.load %arg1[%c24_218, %c0_219] : memref<27x1024xf32, #tpu.memory_space<vmem>>, vector<1x1024xf32>
    %317 = vector.broadcast %316 : vector<1x1024xf32> to vector<8x1024xf32>
    %318 = arith.mulf %315, %317 : vector<8x1024xf32>
    %c192_220 = arith.constant 192 : index
    %c0_221 = arith.constant 0 : index
    %319 = vector.load %arg11[%c192_220, %c0_221] : memref<256x1024xf32, #tpu.memory_space<vmem>>, vector<8x1024xf32>
    tpu.vector_store %arg11[%c192_220, %c0_221], %318 {strides = array<i32>} : memref<256x1024xf32, #tpu.memory_space<vmem>>, vector<8x1024xf32>,
    %c952_i32_222 = arith.constant 952 : i32
    %320 = tpu.dynamic_rotate %192 by %c952_i32_222 dim 1 : vector<8x1024xf32>, i32 -> vector<8x1024xf32>
    %c25_223 = arith.constant 25 : index
    %c0_224 = arith.constant 0 : index
    %321 = vector.load %arg1[%c25_223, %c0_224] : memref<27x1024xf32, #tpu.memory_space<vmem>>, vector<1x1024xf32>
    %322 = vector.broadcast %321 : vector<1x1024xf32> to vector<8x1024xf32>
    %323 = arith.mulf %320, %322 : vector<8x1024xf32>
    %c200_225 = arith.constant 200 : index
    %c0_226 = arith.constant 0 : index
    %324 = vector.load %arg11[%c200_225, %c0_226] : memref<256x1024xf32, #tpu.memory_space<vmem>>, vector<8x1024xf32>
    tpu.vector_store %arg11[%c200_225, %c0_226], %323 {strides = array<i32>} : memref<256x1024xf32, #tpu.memory_space<vmem>>, vector<8x1024xf32>,
    %c951_i32_227 = arith.constant 951 : i32
    %325 = tpu.dynamic_rotate %192 by %c951_i32_227 dim 1 : vector<8x1024xf32>, i32 -> vector<8x1024xf32>
    %c26_228 = arith.constant 26 : index
    %c0_229 = arith.constant 0 : index
    %326 = vector.load %arg1[%c26_228, %c0_229] : memref<27x1024xf32, #tpu.memory_space<vmem>>, vector<1x1024xf32>
    %327 = vector.broadcast %326 : vector<1x1024xf32> to vector<8x1024xf32>
    %328 = arith.mulf %325, %327 : vector<8x1024xf32>
    %c208_230 = arith.constant 208 : index
    %c0_231 = arith.constant 0 : index
    %329 = vector.load %arg11[%c208_230, %c0_231] : memref<256x1024xf32, #tpu.memory_space<vmem>>, vector<8x1024xf32>
    tpu.vector_store %arg11[%c208_230, %c0_231], %328 {strides = array<i32>} : memref<256x1024xf32, #tpu.memory_space<vmem>>, vector<8x1024xf32>,
    %c0_232 = arith.constant 0 : index
    %c128_233 = arith.constant 128 : index
    %330 = vector.load %arg6[%c0_232, %c128_233] : memref<8x256xf32, #tpu.memory_space<vmem>>, vector<8x128xf32>
    %c128_234 = arith.constant 128 : index
    %c0_235 = arith.constant 0 : index
    %331 = vector.load %arg11[%c128_234, %c0_235] : memref<256x1024xf32, #tpu.memory_space<vmem>>, vector<128x1024xf32>
    %cst_236 = arith.constant dense<0.000000e+00> : vector<8x1024xf32>
    %332 = tpu.matmul %330, %331, %cst_236 {dimension_numbers = #tpu.dot_dimension_numbers<[1], [0], [0], [1], [0, 0, 1, 1], [], []>} : vector<8x128xf32>, vector<128x1024xf32>, vector<8x1024xf32> -> vector<8x1024xf32>
    %333 = arith.addf %274, %332 : vector<8x1024xf32>
    %c0_237 = arith.constant 0 : index
    %c0_238 = arith.constant 0 : index
    %334 = vector.load %arg7[%c0_237, %c0_238] : memref<8x1xf32, #tpu.memory_space<vmem>>, vector<8x1xf32>
    %335 = vector.broadcast %334 : vector<8x1xf32> to vector<8x1024xf32>
    %336 = arith.addf %333, %335 : vector<8x1024xf32>
    %337 = arith.addf %336, %2 : vector<8x1024xf32>
    %c0_239 = arith.constant 0 : index
    %c0_240 = arith.constant 0 : index
    %338 = vector.load %arg10[%c0_239, %c0_240] : memref<8x1024xf32, #tpu.memory_space<vmem>>, vector<8x1024xf32>
    tpu.vector_store %arg10[%c0_239, %c0_240], %337 {strides = array<i32>} : memref<8x1024xf32, #tpu.memory_space<vmem>>, vector<8x1024xf32>,
    return
  }
}

</mosaic_0001>

<llo_original>
// kernel: tpu_custom_call.1
$region0: #{tpu_custom_call.1}
  #allocation0 [shape = 'u32[]', space=smem, size = 0x4, offset = 0x4, fixed_abs, tag = 'smem constant byte address 0x4 - core index']
  #allocation1 [shape = 'u32[72,128]{1,0:T(1,128)}', space=vmem, size = 0x9000, scoped, tag = 'internal scratch']
  #allocation2 [shape = 'f32[256,1024]{1,0:T(8,128)}', space=vmem, size = 0x100000, scoped, tag = 'scratch operand']
  %s0 = inlined_call_operand.hbm [shape: f32[8,1024], index: 0, kind: input, shape index: {}]
  %s1 = inlined_call_operand.hbm [shape: f32[27,1024], index: 1, kind: input, shape index: {}]
  %s2 = inlined_call_operand.vmem [shape: f32[8,256], index: 2, kind: input, shape index: {}]
  %s3 = inlined_call_operand.vmem [shape: f32[8,1], index: 3, kind: input, shape index: {}]
  %s4 = inlined_call_operand.vmem [shape: f32[8,1], index: 4, kind: input, shape index: {}]
  %s5 = inlined_call_operand.vmem [shape: f32[8,1], index: 5, kind: input, shape index: {}]
  %s6 = inlined_call_operand.vmem [shape: f32[8,256], index: 6, kind: input, shape index: {}]
  %s7 = inlined_call_operand.vmem [shape: f32[8,1], index: 7, kind: input, shape index: {}]
  %s8 = inlined_call_operand.vmem [shape: f32[8,1], index: 8, kind: input, shape index: {}]
  %s9 = inlined_call_operand.vmem [shape: f32[8,1], index: 9, kind: input, shape index: {}]
  %s10 = inlined_call_operand.hbm [shape: f32[8,1024], index: 10, kind: output, shape index: {}]
  %s11 = sld [smem:[#allocation0]]
  $region58: #{tpu_custom_call.1} parent=0
    _
  %s13 = ssub.s32 1, %s11
  %s14 = scalar_select 0, %s13, %s11
  $region1: #{tpu_custom_call.1} parent=0
    #allocation3 [shape = 'u8[32768]{0}', space=vmem, size = 0x8000, scoped, tag = 'input window, operand 0, single buffered']
    #allocation4 [shape = 's32[1]{0}', space=sflag, size = 0x4, scoped, tag = 'scoped memory for tpu_custom_call.1']
    #allocation5 [shape = 's32[1]{0}', space=sflag, size = 0x4, scoped, tag = 'scoped memory for tpu_custom_call.1']
    #allocation6 [shape = 'u8[131072]{0}', space=vmem, size = 0x20000, scoped, tag = 'input window, operand 1, single buffered']
    #allocation7 [shape = 's32[1]{0}', space=sflag, size = 0x4, scoped, tag = 'scoped memory for tpu_custom_call.1']
    #allocation8 [shape = 'u8[32768]{0}', space=vmem, size = 0x8000, scoped, tag = 'output window, operand 0, single buffered']
    %15 = vsyncpa [#allocation4], 0
    %16 = vsyncpa [#allocation7], 0
    %17 = vsyncpa [#allocation5], 0
    // Predicated region
    $region2: #{tpu_custom_call.1} parent=1 // pred_check
      _
    $region3: #{tpu_custom_call.1} parent=1 // pred_check_branch
      %19 = sbr.rel (0) target = $region5
    $region4: #{tpu_custom_call.1} parent=1 // pred_region
      %21 = vsyncadd [#allocation4], 0
      %s23 = sshll.u32 %s0, 4
      %s24 = int_to_ptr.hbm [resolvable:$true] %s23
      %s25 = sshll.u32 [#allocation3], 4
      %s26 = int_to_ptr.vmem [resolvable:$true] %s25
      %28 = dma.hbm_to_vmem [thread:$0]  %s24, 1024, %s26, [#allocation4]
    $region5: #{tpu_custom_call.1} parent=1 // pred_fallthru
      _
    // Predicated region
    $region6: #{tpu_custom_call.1} parent=1 // pred_check
      _
    $region7: #{tpu_custom_call.1} parent=1 // pred_check_branch
      %30 = sbr.rel (0) target = $region9
    $region8: #{tpu_custom_call.1} parent=1 // pred_region
      %32 = vsyncadd [#allocation7], 0
      %s33 = sshll.u32 %s1, 4
      %s34 = int_to_ptr.hbm [resolvable:$true] %s33
      %s35 = sshll.u32 [#allocation6], 4
      %s36 = int_to_ptr.vmem [resolvable:$true] %s35
      %41 = dma.hbm_to_vmem [thread:$0]  %s34, 4096, %s36, [#allocation7], 1024, 1024, 64
    $region9: #{tpu_custom_call.1} parent=1 // pred_fallthru
      _
    // Predicated region
    $region10: #{tpu_custom_call.1} parent=1 // pred_check
      _
    $region11: #{tpu_custom_call.1} parent=1 // pred_check_branch
      %43 = sbr.rel (0) target = $region13
    $region12: #{tpu_custom_call.1} parent=1 // pred_region
      _
    $region13: #{tpu_custom_call.1} parent=1 // pred_fallthru
      _
    // Predicated region
    $region14: #{tpu_custom_call.1} parent=1 // pred_check
      _
    $region15: #{tpu_custom_call.1} parent=1 // pred_check_branch
      %45 = sbr.rel (0) target = $region17
    $region16: #{tpu_custom_call.1} parent=1 // pred_region
      _
    $region17: #{tpu_custom_call.1} parent=1 // pred_fallthru
      _
    // Predicated region
    $region18: #{tpu_custom_call.1} parent=1 // pred_check
      _
    $region19: #{tpu_custom_call.1} parent=1 // pred_check_branch
      %47 = sbr.rel (0) target = $region21
    $region20: #{tpu_custom_call.1} parent=1 // pred_region
      _
    $region21: #{tpu_custom_call.1} parent=1 // pred_fallthru
      _
    // Predicated region
    $region22: #{tpu_custom_call.1} parent=1 // pred_check
      _
    $region23: #{tpu_custom_call.1} parent=1 // pred_check_branch
      %49 = sbr.rel (0) target = $region25
    $region24: #{tpu_custom_call.1} parent=1 // pred_region
      _
    $region25: #{tpu_custom_call.1} parent=1 // pred_fallthru
      _
    // Predicated region
    $region26: #{tpu_custom_call.1} parent=1 // pred_check
      _
    $region27: #{tpu_custom_call.1} parent=1 // pred_check_branch
      %51 = sbr.rel (0) target = $region29
    $region28: #{tpu_custom_call.1} parent=1 // pred_region
      _
    $region29: #{tpu_custom_call.1} parent=1 // pred_fallthru
      _
    // Predicated region
    $region30: #{tpu_custom_call.1} parent=1 // pred_check
      _
    $region31: #{tpu_custom_call.1} parent=1 // pred_check_branch
      %53 = sbr.rel (0) target = $region33
    $region32: #{tpu_custom_call.1} parent=1 // pred_region
      _
    $region33: #{tpu_custom_call.1} parent=1 // pred_fallthru
      _
    // Predicated region
    $region34: #{tpu_custom_call.1} parent=1 // pred_check
      _
    $region35: #{tpu_custom_call.1} parent=1 // pred_check_branch
      %55 = sbr.rel (0) target = $region37
    $region36: #{tpu_custom_call.1} parent=1 // pred_region
      _
    $region37: #{tpu_custom_call.1} parent=1 // pred_fallthru
      _
    // Predicated region
    $region38: #{tpu_custom_call.1} parent=1 // pred_check
      _
    $region39: #{tpu_custom_call.1} parent=1 // pred_check_branch
      %57 = sbr.rel (0) target = $region41
    $region40: #{tpu_custom_call.1} parent=1 // pred_region
      _
    $region41: #{tpu_custom_call.1} parent=1 // pred_fallthru
      _
    // Predicated region
    $region42: #{tpu_custom_call.1} parent=1 // pred_check
      _
    $region43: #{tpu_custom_call.1} parent=1 // pred_check_branch
      %59 = sbr.rel (0) target = $region45
    $region44: #{tpu_custom_call.1} parent=1 // pred_region
      %61 = dma.done [#allocation4], 1024
    $region45: #{tpu_custom_call.1} parent=1 // pred_fallthru
      _
    // Predicated region
    $region46: #{tpu_custom_call.1} parent=1 // pred_check
      _
    $region47: #{tpu_custom_call.1} parent=1 // pred_check_branch
      %63 = sbr.rel (0) target = $region49
    $region48: #{tpu_custom_call.1} parent=1 // pred_region
      %65 = dma.done [#allocation7], 4096
    $region49: #{tpu_custom_call.1} parent=1 // pred_fallthru
      _
    %66 = vst [vmem:[#allocation2 + $0x6c0] sm:$0xff] 0.0
    %67 = vst [vmem:[#allocation2 + $0x6c8] sm:$0xff] 0.0
    %68 = vst [vmem:[#allocation2 + $0x6d0] sm:$0xff] 0.0
    %69 = vst [vmem:[#allocation2 + $0x6d8] sm:$0xff] 0.0
    %70 = vst [vmem:[#allocation2 + $0x6e0] sm:$0xff] 0.0
    %71 = vst [vmem:[#allocation2 + $0x6e8] sm:$0xff] 0.0
    %72 = vst [vmem:[#allocation2 + $0x6f0] sm:$0xff] 0.0
    %73 = vst [vmem:[#allocation2 + $0x6f8] sm:$0xff] 0.0
    %74 = vst [vmem:[#allocation2 + $0x700] sm:$0xff] 0.0
    %75 = vst [vmem:[#allocation2 + $0x708] sm:$0xff] 0.0
    %76 = vst [vmem:[#allocation2 + $0x710] sm:$0xff] 0.0
    %77 = vst [vmem:[#allocation2 + $0x718] sm:$0xff] 0.0
    %78 = vst [vmem:[#allocation2 + $0x720] sm:$0xff] 0.0
    %79 = vst [vmem:[#allocation2 + $0x728] sm:$0xff] 0.0
    %80 = vst [vmem:[#allocation2 + $0x730] sm:$0xff] 0.0
    %81 = vst [vmem:[#allocation2 + $0x738] sm:$0xff] 0.0
    %82 = vst [vmem:[#allocation2 + $0x740] sm:$0xff] 0.0
    %83 = vst [vmem:[#allocation2 + $0x748] sm:$0xff] 0.0
    %84 = vst [vmem:[#allocation2 + $0x750] sm:$0xff] 0.0
    %85 = vst [vmem:[#allocation2 + $0x758] sm:$0xff] 0.0
    %86 = vst [vmem:[#allocation2 + $0x760] sm:$0xff] 0.0
    %87 = vst [vmem:[#allocation2 + $0x768] sm:$0xff] 0.0
    %88 = vst [vmem:[#allocation2 + $0x770] sm:$0xff] 0.0
    %89 = vst [vmem:[#allocation2 + $0x778] sm:$0xff] 0.0
    %90 = vst [vmem:[#allocation2 + $0x780] sm:$0xff] 0.0
    %91 = vst [vmem:[#allocation2 + $0x788] sm:$0xff] 0.0
    %92 = vst [vmem:[#allocation2 + $0x790] sm:$0xff] 0.0
    %93 = vst [vmem:[#allocation2 + $0x798] sm:$0xff] 0.0
    %94 = vst [vmem:[#allocation2 + $0x7a0] sm:$0xff] 0.0
    %95 = vst [vmem:[#allocation2 + $0x7a8] sm:$0xff] 0.0
    %96 = vst [vmem:[#allocation2 + $0x7b0] sm:$0xff] 0.0
    %97 = vst [vmem:[#allocation2 + $0x7b8] sm:$0xff] 0.0
    %98 = vst [vmem:[#allocation2 + $0x7c0] sm:$0xff] 0.0
    %99 = vst [vmem:[#allocation2 + $0x7c8] sm:$0xff] 0.0
    %100 = vst [vmem:[#allocation2 + $0x7d0] sm:$0xff] 0.0
    %101 = vst [vmem:[#allocation2 + $0x7d8] sm:$0xff] 0.0
    %102 = vst [vmem:[#allocation2 + $0x7e0] sm:$0xff] 0.0
    %103 = vst [vmem:[#allocation2 + $0x7e8] sm:$0xff] 0.0
    %104 = vst [vmem:[#allocation2 + $0x7f0] sm:$0xff] 0.0
    %105 = vst [vmem:[#allocation2 + $0x7f8] sm:$0xff] 0.0
    %v106 = vld [vmem:[#allocation3] sm:$0xff]
    %v107 = vld [vmem:[#allocation3 + $0x8] sm:$0xff]
    %v108 = vld [vmem:[#allocation3 + $0x10] sm:$0xff]
    %v109 = vld [vmem:[#allocation3 + $0x18] sm:$0xff]
    %v110 = vld [vmem:[#allocation3 + $0x20] sm:$0xff]
    %v111 = vld [vmem:[#allocation3 + $0x28] sm:$0xff]
    %v112 = vld [vmem:[#allocation3 + $0x30] sm:$0xff]
    %v113 = vld [vmem:[#allocation3 + $0x38] sm:$0xff]
    %v114 = vadd.f32 %v106, %v107
    %v115 = vadd.f32 %v114, %v108
    %v116 = vadd.f32 %v115, %v109
    %v117 = vadd.f32 %v116, %v110
    %v118 = vadd.f32 %v117, %v111
    %v119 = vadd.f32 %v118, %v112
    %v120 = vadd.f32 %v119, %v113
    %121 = vadd.xlane.f32.xlu0 %v120
    %v122 = vpop.xlane.xlu0 %121
    %v123 = vmul.f32 %v122, 0.0009765625
    %v124 = vsub.f32 %v106, %v123
    %v125 = vsub.f32 %v107, %v123
    %v126 = vsub.f32 %v108, %v123
    %v127 = vsub.f32 %v109, %v123
    %v128 = vsub.f32 %v110, %v123
    %v129 = vsub.f32 %v111, %v123
    %v130 = vsub.f32 %v112, %v123
    %v131 = vsub.f32 %v113, %v123
    %v132 = vmul.f32 %v124, %v124
    %v133 = vmul.f32 %v125, %v125
    %v134 = vmul.f32 %v126, %v126
    %v135 = vmul.f32 %v127, %v127
    %v136 = vmul.f32 %v128, %v128
    %v137 = vmul.f32 %v129, %v129
    %v138 = vmul.f32 %v130, %v130
    %v139 = vmul.f32 %v131, %v131
    %v140 = vadd.f32 %v132, %v133
    %v141 = vadd.f32 %v140, %v134
    %v142 = vadd.f32 %v141, %v135
    %v143 = vadd.f32 %v142, %v136
    %v144 = vadd.f32 %v143, %v137
    %v145 = vadd.f32 %v144, %v138
    %v146 = vadd.f32 %v145, %v139
    %147 = vadd.xlane.f32.xlu0 %v146
    %v148 = vpop.xlane.xlu0 %147
    %v149 = vmul.f32 %v148, 0.0009765625
    %v150 = vadd.f32 %v149, 1e-05
    %v151 = vrsqrt.pop %v150
    %v152 = vmul.f32 %v151, %v150
    %v153 = vmul.f32 %v152, %v151
    %v154 = vmul.f32 0.5, %v153
    %v155 = vsub.f32 1.5, %v154
    %v156 = vmul.f32 %v151, %v155
    %vm157 = vweird.f32 %v150
    %vm158 = vweird.f32 %v151
    %vm159 = vmor %vm157, %vm158
    %v160 = vsel %vm159, %v151, %v156
    %v161 = vld [vmem:[%s4] sm:$0xff]
    %v162 = vmul.f32 %v160, %v161
    %164 = vset.pattern.permute.xlu0 0
    %165 = vperm.xlu0 %164, %v162
    %v166 = vpop.permute.xlu0 %165
    %v168 = vmul.f32 %v124, %v166
    %v169 = vmul.f32 %v125, %v166
    %v170 = vmul.f32 %v126, %v166
    %v171 = vmul.f32 %v127, %v166
    %v172 = vmul.f32 %v128, %v166
    %v173 = vmul.f32 %v129, %v166
    %v174 = vmul.f32 %v130, %v166
    %v175 = vmul.f32 %v131, %v166
    %v176 = vld [vmem:[%s5] sm:$0xff]
    %178 = vset.pattern.permute.xlu0 0
    %179 = vperm.xlu0 %178, %v176
    %v180 = vpop.permute.xlu0 %179
    %v182 = vadd.f32 %v168, %v180
    %v183 = vadd.f32 %v169, %v180
    %v184 = vadd.f32 %v170, %v180
    %v185 = vadd.f32 %v171, %v180
    %v186 = vadd.f32 %v172, %v180
    %v187 = vadd.f32 %v173, %v180
    %v188 = vadd.f32 %v174, %v180
    %v189 = vadd.f32 %v175, %v180
    %v190 = vmax.f32 %v182, 0.0
    %v191 = vmax.f32 %v183, 0.0
    %v192 = vmax.f32 %v184, 0.0
    %v193 = vmax.f32 %v185, 0.0
    %v194 = vmax.f32 %v186, 0.0
    %v195 = vmax.f32 %v187, 0.0
    %v196 = vmax.f32 %v188, 0.0
    %v197 = vmax.f32 %v189, 0.0
    %198 = vrot.lane.b32.xlu0 %v190, 73
    %v199 = vpop.permute.xlu0 %198
    %200 = vrot.lane.b32.xlu0 %v191, 73
    %v201 = vpop.permute.xlu0 %200
    %202 = vrot.lane.b32.xlu0 %v192, 73
    %v203 = vpop.permute.xlu0 %202
    %204 = vrot.lane.b32.xlu0 %v193, 73
    %v205 = vpop.permute.xlu0 %204
    %206 = vrot.lane.b32.xlu0 %v194, 73
    %v207 = vpop.permute.xlu0 %206
    %208 = vrot.lane.b32.xlu0 %v195, 73
    %v209 = vpop.permute.xlu0 %208
    %210 = vrot.lane.b32.xlu0 %v196, 73
    %v211 = vpop.permute.xlu0 %210
    %212 = vrot.lane.b32.xlu0 %v197, 73
    %v213 = vpop.permute.xlu0 %212
    %v214 = vlaneseq
    %v215 = vand.u32 %v214, 127
    %vm216 = vcmp.lt.s32.totalorder %v215, 73
    %v217 = vsel %vm216, %v211, %v213
    %v218 = vsel %vm216, %v209, %v211
    %v219 = vsel %vm216, %v207, %v209
    %v220 = vsel %vm216, %v205, %v207
    %v221 = vsel %vm216, %v203, %v205
    %v222 = vsel %vm216, %v201, %v203
    %v223 = vsel %vm216, %v199, %v201
    %v224 = vsel %vm216, %v213, %v199
    %v225 = vld [vmem:[#allocation6] ss:$8 sm:$0xf]
    %v226 = vld [vmem:[#allocation6] ss:$8 sm:$0xf0]
    %v227 = vor.u32 %v225, %v226
    %v229 = vperm.slane %v227, 0
    %v230 = vperm.slane %v227, 1
    %v231 = vperm.slane %v227, 2
    %v232 = vperm.slane %v227, 3
    %v233 = vperm.slane %v227, 4
    %v234 = vperm.slane %v227, 5
    %v235 = vperm.slane %v227, 6
    %v236 = vperm.slane %v227, 7
    %v245 = vmul.f32 %v224, %v229
    %v246 = vmul.f32 %v223, %v230
    %v247 = vmul.f32 %v222, %v231
    %v248 = vmul.f32 %v221, %v232
    %v249 = vmul.f32 %v220, %v233
    %v250 = vmul.f32 %v219, %v234
    %v251 = vmul.f32 %v218, %v235
    %v252 = vmul.f32 %v217, %v236
    %253 = vst [vmem:[#allocation2] sm:$0xff] %v245
    %254 = vst [vmem:[#allocation2 + $0x8] sm:$0xff] %v246
    %255 = vst [vmem:[#allocation2 + $0x10] sm:$0xff] %v247
    %256 = vst [vmem:[#allocation2 + $0x18] sm:$0xff] %v248
    %257 = vst [vmem:[#allocation2 + $0x20] sm:$0xff] %v249
    %258 = vst [vmem:[#allocation2 + $0x28] sm:$0xff] %v250
    %259 = vst [vmem:[#allocation2 + $0x30] sm:$0xff] %v251
    %260 = vst [vmem:[#allocation2 + $0x38] sm:$0xff] %v252
    %261 = vrot.lane.b32.xlu0 %v190, 72
    %v262 = vpop.permute.xlu0 %261
    %263 = vrot.lane.b32.xlu0 %v191, 72
    %v264 = vpop.permute.xlu0 %263
    %265 = vrot.lane.b32.xlu0 %v192, 72
    %v266 = vpop.permute.xlu0 %265
    %267 = vrot.lane.b32.xlu0 %v193, 72
    %v268 = vpop.permute.xlu0 %267
    %269 = vrot.lane.b32.xlu0 %v194, 72
    %v270 = vpop.permute.xlu0 %269
    %271 = vrot.lane.b32.xlu0 %v195, 72
    %v272 = vpop.permute.xlu0 %271
    %273 = vrot.lane.b32.xlu0 %v196, 72
    %v274 = vpop.permute.xlu0 %273
    %275 = vrot.lane.b32.xlu0 %v197, 72
    %v276 = vpop.permute.xlu0 %275
    %vm277 = vcmp.lt.s32.totalorder %v215, 72
    %v278 = vsel %vm277, %v274, %v276
    %v279 = vsel %vm277, %v272, %v274
    %v280 = vsel %vm277, %v270, %v272
    %v281 = vsel %vm277, %v268, %v270
    %v282 = vsel %vm277, %v266, %v268
    %v283 = vsel %vm277, %v264, %v266
    %v284 = vsel %vm277, %v262, %v264
    %v285 = vsel %vm277, %v276, %v262
    %s286 = scalar_lea.vmem [#allocation6], 1
    %v287 = vld [vmem:[%s286] ss:$8 sm:$0xf]
    %v288 = vld [vmem:[%s286] ss:$8 sm:$0xf0]
    %v289 = vor.u32 %v287, %v288
    %v291 = vperm.slane %v289, 0
    %v292 = vperm.slane %v289, 1
    %v293 = vperm.slane %v289, 2
    %v294 = vperm.slane %v289, 3
    %v295 = vperm.slane %v289, 4
    %v296 = vperm.slane %v289, 5
    %v297 = vperm.slane %v289, 6
    %v298 = vperm.slane %v289, 7
    %v307 = vmul.f32 %v285, %v291
    %v308 = vmul.f32 %v284, %v292
    %v309 = vmul.f32 %v283, %v293
    %v310 = vmul.f32 %v282, %v294
    %v311 = vmul.f32 %v281, %v295
    %v312 = vmul.f32 %v280, %v296
    %v313 = vmul.f32 %v279, %v297
    %v314 = vmul.f32 %v278, %v298
    %315 = vst [vmem:[#allocation2 + $0x40] sm:$0xff] %v307
    %316 = vst [vmem:[#allocation2 + $0x48] sm:$0xff] %v308
    %317 = vst [vmem:[#allocation2 + $0x50] sm:$0xff] %v309
    %318 = vst [vmem:[#allocation2 + $0x58] sm:$0xff] %v310
    %319 = vst [vmem:[#allocation2 + $0x60] sm:$0xff] %v311
    %320 = vst [vmem:[#allocation2 + $0x68] sm:$0xff] %v312
    %321 = vst [vmem:[#allocation2 + $0x70] sm:$0xff] %v313
    %322 = vst [vmem:[#allocation2 + $0x78] sm:$0xff] %v314
    %323 = vrot.lane.b32.xlu0 %v190, 71
    %v324 = vpop.permute.xlu0 %323
    %325 = vrot.lane.b32.xlu0 %v191, 71
    %v326 = vpop.permute.xlu0 %325
    %327 = vrot.lane.b32.xlu0 %v192, 71
    %v328 = vpop.permute.xlu0 %327
    %329 = vrot.lane.b32.xlu0 %v193, 71
    %v330 = vpop.permute.xlu0 %329
    %331 = vrot.lane.b32.xlu0 %v194, 71
    %v332 = vpop.permute.xlu0 %331
    %333 = vrot.lane.b32.xlu0 %v195, 71
    %v334 = vpop.permute.xlu0 %333
    %335 = vrot.lane.b32.xlu0 %v196, 71
    %v336 = vpop.permute.xlu0 %335
    %337 = vrot.lane.b32.xlu0 %v197, 71
    %v338 = vpop.permute.xlu0 %337
    %vm339 = vcmp.lt.s32.totalorder %v215, 71
    %v340 = vsel %vm339, %v336, %v338
    %v341 = vsel %vm339, %v334, %v336
    %v342 = vsel %vm339, %v332, %v334
    %v343 = vsel %vm339, %v330, %v332
    %v344 = vsel %vm339, %v328, %v330
    %v345 = vsel %vm339, %v326, %v328
    %v346 = vsel %vm339, %v324, %v326
    %v347 = vsel %vm339, %v338, %v324
    %s348 = scalar_lea.vmem [#allocation6], 2
    %v349 = vld [vmem:[%s348] ss:$8 sm:$0xf]
    %v350 = vld [vmem:[%s348] ss:$8 sm:$0xf0]
    %v351 = vor.u32 %v349, %v350
    %v353 = vperm.slane %v351, 0
    %v354 = vperm.slane %v351, 1
    %v355 = vperm.slane %v351, 2
    %v356 = vperm.slane %v351, 3
    %v357 = vperm.slane %v351, 4
    %v358 = vperm.slane %v351, 5
    %v359 = vperm.slane %v351, 6
    %v360 = vperm.slane %v351, 7
    %v369 = vmul.f32 %v347, %v353
    %v370 = vmul.f32 %v346, %v354
    %v371 = vmul.f32 %v345, %v355
    %v372 = vmul.f32 %v344, %v356
    %v373 = vmul.f32 %v343, %v357
    %v374 = vmul.f32 %v342, %v358
    %v375 = vmul.f32 %v341, %v359
    %v376 = vmul.f32 %v340, %v360
    %377 = vst [vmem:[#allocation2 + $0x80] sm:$0xff] %v369
    %378 = vst [vmem:[#allocation2 + $0x88] sm:$0xff] %v370
    %379 = vst [vmem:[#allocation2 + $0x90] sm:$0xff] %v371
    %380 = vst [vmem:[#allocation2 + $0x98] sm:$0xff] %v372
    %381 = vst [vmem:[#allocation2 + $0xa0] sm:$0xff] %v373
    %382 = vst [vmem:[#allocation2 + $0xa8] sm:$0xff] %v374
    %383 = vst [vmem:[#allocation2 + $0xb0] sm:$0xff] %v375
    %384 = vst [vmem:[#allocation2 + $0xb8] sm:$0xff] %v376
    %385 = vrot.lane.b32.xlu0 %v190, 65
    %v386 = vpop.permute.xlu0 %385
    %387 = vrot.lane.b32.xlu0 %v191, 65
    %v388 = vpop.permute.xlu0 %387
    %389 = vrot.lane.b32.xlu0 %v192, 65
    %v390 = vpop.permute.xlu0 %389
    %391 = vrot.lane.b32.xlu0 %v193, 65
    %v392 = vpop.permute.xlu0 %391
    %393 = vrot.lane.b32.xlu0 %v194, 65
    %v394 = vpop.permute.xlu0 %393
    %395 = vrot.lane.b32.xlu0 %v195, 65
    %v396 = vpop.permute.xlu0 %395
    %397 = vrot.lane.b32.xlu0 %v196, 65
    %v398 = vpop.permute.xlu0 %397
    %399 = vrot.lane.b32.xlu0 %v197, 65
    %v400 = vpop.permute.xlu0 %399
    %vm401 = vcmp.lt.s32.totalorder %v215, 65
    %v402 = vsel %vm401, %v398, %v400
    %v403 = vsel %vm401, %v396, %v398
    %v404 = vsel %vm401, %v394, %v396
    %v405 = vsel %vm401, %v392, %v394
    %v406 = vsel %vm401, %v390, %v392
    %v407 = vsel %vm401, %v388, %v390
    %v408 = vsel %vm401, %v386, %v388
    %v409 = vsel %vm401, %v400, %v386
    %s410 = scalar_lea.vmem [#allocation6], 3
    %v411 = vld [vmem:[%s410] ss:$8 sm:$0xf]
    %v412 = vld [vmem:[%s410] ss:$8 sm:$0xf0]
    %v413 = vor.u32 %v411, %v412
    %v415 = vperm.slane %v413, 0
    %v416 = vperm.slane %v413, 1
    %v417 = vperm.slane %v413, 2
    %v418 = vperm.slane %v413, 3
    %v419 = vperm.slane %v413, 4
    %v420 = vperm.slane %v413, 5
    %v421 = vperm.slane %v413, 6
    %v422 = vperm.slane %v413, 7
    %v431 = vmul.f32 %v409, %v415
    %v432 = vmul.f32 %v408, %v416
    %v433 = vmul.f32 %v407, %v417
    %v434 = vmul.f32 %v406, %v418
    %v435 = vmul.f32 %v405, %v419
    %v436 = vmul.f32 %v404, %v420
    %v437 = vmul.f32 %v403, %v421
    %v438 = vmul.f32 %v402, %v422
    %439 = vst [vmem:[#allocation2 + $0xc0] sm:$0xff] %v431
    %440 = vst [vmem:[#allocation2 + $0xc8] sm:$0xff] %v432
    %441 = vst [vmem:[#allocation2 + $0xd0] sm:$0xff] %v433
    %442 = vst [vmem:[#allocation2 + $0xd8] sm:$0xff] %v434
    %443 = vst [vmem:[#allocation2 + $0xe0] sm:$0xff] %v435
    %444 = vst [vmem:[#allocation2 + $0xe8] sm:$0xff] %v436
    %445 = vst [vmem:[#allocation2 + $0xf0] sm:$0xff] %v437
    %446 = vst [vmem:[#allocation2 + $0xf8] sm:$0xff] %v438
    %447 = vrot.lane.b32.xlu0 %v190, 64
    %v448 = vpop.permute.xlu0 %447
    %449 = vrot.lane.b32.xlu0 %v191, 64
    %v450 = vpop.permute.xlu0 %449
    %451 = vrot.lane.b32.xlu0 %v192, 64
    %v452 = vpop.permute.xlu0 %451
    %453 = vrot.lane.b32.xlu0 %v193, 64
    %v454 = vpop.permute.xlu0 %453
    %455 = vrot.lane.b32.xlu0 %v194, 64
    %v456 = vpop.permute.xlu0 %455
    %457 = vrot.lane.b32.xlu0 %v195, 64
    %v458 = vpop.permute.xlu0 %457
    %459 = vrot.lane.b32.xlu0 %v196, 64
    %v460 = vpop.permute.xlu0 %459
    %461 = vrot.lane.b32.xlu0 %v197, 64
    %v462 = vpop.permute.xlu0 %461
    %vm463 = vcmp.lt.s32.totalorder %v215, 64
    %v464 = vsel %vm463, %v460, %v462
    %v465 = vsel %vm463, %v458, %v460
    %v466 = vsel %vm463, %v456, %v458
    %v467 = vsel %vm463, %v454, %v456
    %v468 = vsel %vm463, %v452, %v454
    %v469 = vsel %vm463, %v450, %v452
    %v470 = vsel %vm463, %v448, %v450
    %v471 = vsel %vm463, %v462, %v448
    %s472 = scalar_lea.vmem [#allocation6], 4
    %v473 = vld [vmem:[%s472] ss:$8 sm:$0xf]
    %v474 = vld [vmem:[%s472] ss:$8 sm:$0xf0]
    %v475 = vor.u32 %v473, %v474
    %v477 = vperm.slane %v475, 0
    %v478 = vperm.slane %v475, 1
    %v479 = vperm.slane %v475, 2
    %v480 = vperm.slane %v475, 3
    %v481 = vperm.slane %v475, 4
    %v482 = vperm.slane %v475, 5
    %v483 = vperm.slane %v475, 6
    %v484 = vperm.slane %v475, 7
    %v493 = vmul.f32 %v471, %v477
    %v494 = vmul.f32 %v470, %v478
    %v495 = vmul.f32 %v469, %v479
    %v496 = vmul.f32 %v468, %v480
    %v497 = vmul.f32 %v467, %v481
    %v498 = vmul.f32 %v466, %v482
    %v499 = vmul.f32 %v465, %v483
    %v500 = vmul.f32 %v464, %v484
    %501 = vst [vmem:[#allocation2 + $0x100] sm:$0xff] %v493
    %502 = vst [vmem:[#allocation2 + $0x108] sm:$0xff] %v494
    %503 = vst [vmem:[#allocation2 + $0x110] sm:$0xff] %v495
    %504 = vst [vmem:[#allocation2 + $0x118] sm:$0xff] %v496
    %505 = vst [vmem:[#allocation2 + $0x120] sm:$0xff] %v497
    %506 = vst [vmem:[#allocation2 + $0x128] sm:$0xff] %v498
    %507 = vst [vmem:[#allocation2 + $0x130] sm:$0xff] %v499
    %508 = vst [vmem:[#allocation2 + $0x138] sm:$0xff] %v500
    %509 = vrot.lane.b32.xlu0 %v190, 63
    %v510 = vpop.permute.xlu0 %509
    %511 = vrot.lane.b32.xlu0 %v191, 63
    %v512 = vpop.permute.xlu0 %511
    %513 = vrot.lane.b32.xlu0 %v192, 63
    %v514 = vpop.permute.xlu0 %513
    %515 = vrot.lane.b32.xlu0 %v193, 63
    %v516 = vpop.permute.xlu0 %515
    %517 = vrot.lane.b32.xlu0 %v194, 63
    %v518 = vpop.permute.xlu0 %517
    %519 = vrot.lane.b32.xlu0 %v195, 63
    %v520 = vpop.permute.xlu0 %519
    %521 = vrot.lane.b32.xlu0 %v196, 63
    %v522 = vpop.permute.xlu0 %521
    %523 = vrot.lane.b32.xlu0 %v197, 63
    %v524 = vpop.permute.xlu0 %523
    %vm525 = vcmp.lt.s32.totalorder %v215, 63
    %v526 = vsel %vm525, %v522, %v524
    %v527 = vsel %vm525, %v520, %v522
    %v528 = vsel %vm525, %v518, %v520
    %v529 = vsel %vm525, %v516, %v518
    %v530 = vsel %vm525, %v514, %v516
    %v531 = vsel %vm525, %v512, %v514
    %v532 = vsel %vm525, %v510, %v512
    %v533 = vsel %vm525, %v524, %v510
    %s534 = scalar_lea.vmem [#allocation6], 5
    %v535 = vld [vmem:[%s534] ss:$8 sm:$0xf]
    %v536 = vld [vmem:[%s534] ss:$8 sm:$0xf0]
    %v537 = vor.u32 %v535, %v536
    %v539 = vperm.slane %v537, 0
    %v540 = vperm.slane %v537, 1
    %v541 = vperm.slane %v537, 2
    %v542 = vperm.slane %v537, 3
    %v543 = vperm.slane %v537, 4
    %v544 = vperm.slane %v537, 5
    %v545 = vperm.slane %v537, 6
    %v546 = vperm.slane %v537, 7
    %v555 = vmul.f32 %v533, %v539
    %v556 = vmul.f32 %v532, %v540
    %v557 = vmul.f32 %v531, %v541
    %v558 = vmul.f32 %v530, %v542
    %v559 = vmul.f32 %v529, %v543
    %v560 = vmul.f32 %v528, %v544
    %v561 = vmul.f32 %v527, %v545
    %v562 = vmul.f32 %v526, %v546
    %563 = vst [vmem:[#allocation2 + $0x140] sm:$0xff] %v555
    %564 = vst [vmem:[#allocation2 + $0x148] sm:$0xff] %v556
    %565 = vst [vmem:[#allocation2 + $0x150] sm:$0xff] %v557
    %566 = vst [vmem:[#allocation2 + $0x158] sm:$0xff] %v558
    %567 = vst [vmem:[#allocation2 + $0x160] sm:$0xff] %v559
    %568 = vst [vmem:[#allocation2 + $0x168] sm:$0xff] %v560
    %569 = vst [vmem:[#allocation2 + $0x170] sm:$0xff] %v561
    %570 = vst [vmem:[#allocation2 + $0x178] sm:$0xff] %v562
    %571 = vrot.lane.b32.xlu0 %v190, 57
    %v572 = vpop.permute.xlu0 %571
    %573 = vrot.lane.b32.xlu0 %v191, 57
    %v574 = vpop.permute.xlu0 %573
    %575 = vrot.lane.b32.xlu0 %v192, 57
    %v576 = vpop.permute.xlu0 %575
    %577 = vrot.lane.b32.xlu0 %v193, 57
    %v578 = vpop.permute.xlu0 %577
    %579 = vrot.lane.b32.xlu0 %v194, 57
    %v580 = vpop.permute.xlu0 %579
    %581 = vrot.lane.b32.xlu0 %v195, 57
    %v582 = vpop.permute.xlu0 %581
    %583 = vrot.lane.b32.xlu0 %v196, 57
    %v584 = vpop.permute.xlu0 %583
    %585 = vrot.lane.b32.xlu0 %v197, 57
    %v586 = vpop.permute.xlu0 %585
    %vm587 = vcmp.lt.s32.totalorder %v215, 57
    %v588 = vsel %vm587, %v584, %v586
    %v589 = vsel %vm587, %v582, %v584
    %v590 = vsel %vm587, %v580, %v582
    %v591 = vsel %vm587, %v578, %v580
    %v592 = vsel %vm587, %v576, %v578
    %v593 = vsel %vm587, %v574, %v576
    %v594 = vsel %vm587, %v572, %v574
    %v595 = vsel %vm587, %v586, %v572
    %s596 = scalar_lea.vmem [#allocation6], 6
    %v597 = vld [vmem:[%s596] ss:$8 sm:$0xf]
    %v598 = vld [vmem:[%s596] ss:$8 sm:$0xf0]
    %v599 = vor.u32 %v597, %v598
    %v601 = vperm.slane %v599, 0
    %v602 = vperm.slane %v599, 1
    %v603 = vperm.slane %v599, 2
    %v604 = vperm.slane %v599, 3
    %v605 = vperm.slane %v599, 4
    %v606 = vperm.slane %v599, 5
    %v607 = vperm.slane %v599, 6
    %v608 = vperm.slane %v599, 7
    %v617 = vmul.f32 %v595, %v601
    %v618 = vmul.f32 %v594, %v602
    %v619 = vmul.f32 %v593, %v603
    %v620 = vmul.f32 %v592, %v604
    %v621 = vmul.f32 %v591, %v605
    %v622 = vmul.f32 %v590, %v606
    %v623 = vmul.f32 %v589, %v607
    %v624 = vmul.f32 %v588, %v608
    %625 = vst [vmem:[#allocation2 + $0x180] sm:$0xff] %v617
    %626 = vst [vmem:[#allocation2 + $0x188] sm:$0xff] %v618
    %627 = vst [vmem:[#allocation2 + $0x190] sm:$0xff] %v619
    %628 = vst [vmem:[#allocation2 + $0x198] sm:$0xff] %v620
    %629 = vst [vmem:[#allocation2 + $0x1a0] sm:$0xff] %v621
    %630 = vst [vmem:[#allocation2 + $0x1a8] sm:$0xff] %v622
    %631 = vst [vmem:[#allocation2 + $0x1b0] sm:$0xff] %v623
    %632 = vst [vmem:[#allocation2 + $0x1b8] sm:$0xff] %v624
    %633 = vrot.lane.b32.xlu0 %v190, 56
    %v634 = vpop.permute.xlu0 %633
    %635 = vrot.lane.b32.xlu0 %v191, 56
    %v636 = vpop.permute.xlu0 %635
    %637 = vrot.lane.b32.xlu0 %v192, 56
    %v638 = vpop.permute.xlu0 %637
    %639 = vrot.lane.b32.xlu0 %v193, 56
    %v640 = vpop.permute.xlu0 %639
    %641 = vrot.lane.b32.xlu0 %v194, 56
    %v642 = vpop.permute.xlu0 %641
    %643 = vrot.lane.b32.xlu0 %v195, 56
    %v644 = vpop.permute.xlu0 %643
    %645 = vrot.lane.b32.xlu0 %v196, 56
    %v646 = vpop.permute.xlu0 %645
    %647 = vrot.lane.b32.xlu0 %v197, 56
    %v648 = vpop.permute.xlu0 %647
    %vm649 = vcmp.lt.s32.totalorder %v215, 56
    %v650 = vsel %vm649, %v646, %v648
    %v651 = vsel %vm649, %v644, %v646
    %v652 = vsel %vm649, %v642, %v644
    %v653 = vsel %vm649, %v640, %v642
    %v654 = vsel %vm649, %v638, %v640
    %v655 = vsel %vm649, %v636, %v638
    %v656 = vsel %vm649, %v634, %v636
    %v657 = vsel %vm649, %v648, %v634
    %s658 = scalar_lea.vmem [#allocation6], 7
    %v659 = vld [vmem:[%s658] ss:$8 sm:$0xf]
    %v660 = vld [vmem:[%s658] ss:$8 sm:$0xf0]
    %v661 = vor.u32 %v659, %v660
    %v663 = vperm.slane %v661, 0
    %v664 = vperm.slane %v661, 1
    %v665 = vperm.slane %v661, 2
    %v666 = vperm.slane %v661, 3
    %v667 = vperm.slane %v661, 4
    %v668 = vperm.slane %v661, 5
    %v669 = vperm.slane %v661, 6
    %v670 = vperm.slane %v661, 7
    %v679 = vmul.f32 %v657, %v663
    %v680 = vmul.f32 %v656, %v664
    %v681 = vmul.f32 %v655, %v665
    %v682 = vmul.f32 %v654, %v666
    %v683 = vmul.f32 %v653, %v667
    %v684 = vmul.f32 %v652, %v668
    %v685 = vmul.f32 %v651, %v669
    %v686 = vmul.f32 %v650, %v670
    %687 = vst [vmem:[#allocation2 + $0x1c0] sm:$0xff] %v679
    %688 = vst [vmem:[#allocation2 + $0x1c8] sm:$0xff] %v680
    %689 = vst [vmem:[#allocation2 + $0x1d0] sm:$0xff] %v681
    %690 = vst [vmem:[#allocation2 + $0x1d8] sm:$0xff] %v682
    %691 = vst [vmem:[#allocation2 + $0x1e0] sm:$0xff] %v683
    %692 = vst [vmem:[#allocation2 + $0x1e8] sm:$0xff] %v684
    %693 = vst [vmem:[#allocation2 + $0x1f0] sm:$0xff] %v685
    %694 = vst [vmem:[#allocation2 + $0x1f8] sm:$0xff] %v686
    %695 = vrot.lane.b32.xlu0 %v190, 55
    %v696 = vpop.permute.xlu0 %695
    %697 = vrot.lane.b32.xlu0 %v191, 55
    %v698 = vpop.permute.xlu0 %697
    %699 = vrot.lane.b32.xlu0 %v192, 55
    %v700 = vpop.permute.xlu0 %699
    %701 = vrot.lane.b32.xlu0 %v193, 55
    %v702 = vpop.permute.xlu0 %701
    %703 = vrot.lane.b32.xlu0 %v194, 55
    %v704 = vpop.permute.xlu0 %703
    %705 = vrot.lane.b32.xlu0 %v195, 55
    %v706 = vpop.permute.xlu0 %705
    %707 = vrot.lane.b32.xlu0 %v196, 55
    %v708 = vpop.permute.xlu0 %707
    %709 = vrot.lane.b32.xlu0 %v197, 55
    %v710 = vpop.permute.xlu0 %709
    %vm711 = vcmp.lt.s32.totalorder %v215, 55
    %v712 = vsel %vm711, %v708, %v710
    %v713 = vsel %vm711, %v706, %v708
    %v714 = vsel %vm711, %v704, %v706
    %v715 = vsel %vm711, %v702, %v704
    %v716 = vsel %vm711, %v700, %v702
    %v717 = vsel %vm711, %v698, %v700
    %v718 = vsel %vm711, %v696, %v698
    %v719 = vsel %vm711, %v710, %v696
    %s720 = scalar_lea.vmem [#allocation6], 64
    %v721 = vld [vmem:[%s720] ss:$8 sm:$0xf]
    %v722 = vld [vmem:[%s720] ss:$8 sm:$0xf0]
    %v723 = vor.u32 %v721, %v722
    %v725 = vperm.slane %v723, 0
    %v726 = vperm.slane %v723, 1
    %v727 = vperm.slane %v723, 2
    %v728 = vperm.slane %v723, 3
    %v729 = vperm.slane %v723, 4
    %v730 = vperm.slane %v723, 5
    %v731 = vperm.slane %v723, 6
    %v732 = vperm.slane %v723, 7
    %v741 = vmul.f32 %v719, %v725
    %v742 = vmul.f32 %v718, %v726
    %v743 = vmul.f32 %v717, %v727
    %v744 = vmul.f32 %v716, %v728
    %v745 = vmul.f32 %v715, %v729
    %v746 = vmul.f32 %v714, %v730
    %v747 = vmul.f32 %v713, %v731
    %v748 = vmul.f32 %v712, %v732
    %749 = vst [vmem:[#allocation2 + $0x200] sm:$0xff] %v741
    %750 = vst [vmem:[#allocation2 + $0x208] sm:$0xff] %v742
    %751 = vst [vmem:[#allocation2 + $0x210] sm:$0xff] %v743
    %752 = vst [vmem:[#allocation2 + $0x218] sm:$0xff] %v744
    %753 = vst [vmem:[#allocation2 + $0x220] sm:$0xff] %v745
    %754 = vst [vmem:[#allocation2 + $0x228] sm:$0xff] %v746
    %755 = vst [vmem:[#allocation2 + $0x230] sm:$0xff] %v747
    %756 = vst [vmem:[#allocation2 + $0x238] sm:$0xff] %v748
    %757 = vrot.lane.b32.xlu0 %v190, 9
    %v758 = vpop.permute.xlu0 %757
    %759 = vrot.lane.b32.xlu0 %v191, 9
    %v760 = vpop.permute.xlu0 %759
    %761 = vrot.lane.b32.xlu0 %v192, 9
    %v762 = vpop.permute.xlu0 %761
    %763 = vrot.lane.b32.xlu0 %v193, 9
    %v764 = vpop.permute.xlu0 %763
    %765 = vrot.lane.b32.xlu0 %v194, 9
    %v766 = vpop.permute.xlu0 %765
    %767 = vrot.lane.b32.xlu0 %v195, 9
    %v768 = vpop.permute.xlu0 %767
    %769 = vrot.lane.b32.xlu0 %v196, 9
    %v770 = vpop.permute.xlu0 %769
    %771 = vrot.lane.b32.xlu0 %v197, 9
    %v772 = vpop.permute.xlu0 %771
    %vm773 = vcmp.lt.s32.totalorder %v215, 9
    %v774 = vsel %vm773, %v770, %v772
    %v775 = vsel %vm773, %v768, %v770
    %v776 = vsel %vm773, %v766, %v768
    %v777 = vsel %vm773, %v764, %v766
    %v778 = vsel %vm773, %v762, %v764
    %v779 = vsel %vm773, %v760, %v762
    %v780 = vsel %vm773, %v758, %v760
    %v781 = vsel %vm773, %v772, %v758
    %s782 = scalar_lea.vmem [#allocation6], 65
    %v783 = vld [vmem:[%s782] ss:$8 sm:$0xf]
    %v784 = vld [vmem:[%s782] ss:$8 sm:$0xf0]
    %v785 = vor.u32 %v783, %v784
    %v787 = vperm.slane %v785, 0
    %v788 = vperm.slane %v785, 1
    %v789 = vperm.slane %v785, 2
    %v790 = vperm.slane %v785, 3
    %v791 = vperm.slane %v785, 4
    %v792 = vperm.slane %v785, 5
    %v793 = vperm.slane %v785, 6
    %v794 = vperm.slane %v785, 7
    %v803 = vmul.f32 %v781, %v787
    %v804 = vmul.f32 %v780, %v788
    %v805 = vmul.f32 %v779, %v789
    %v806 = vmul.f32 %v778, %v790
    %v807 = vmul.f32 %v777, %v791
    %v808 = vmul.f32 %v776, %v792
    %v809 = vmul.f32 %v775, %v793
    %v810 = vmul.f32 %v774, %v794
    %811 = vst [vmem:[#allocation2 + $0x240] sm:$0xff] %v803
    %812 = vst [vmem:[#allocation2 + $0x248] sm:$0xff] %v804
    %813 = vst [vmem:[#allocation2 + $0x250] sm:$0xff] %v805
    %814 = vst [vmem:[#allocation2 + $0x258] sm:$0xff] %v806
    %815 = vst [vmem:[#allocation2 + $0x260] sm:$0xff] %v807
    %816 = vst [vmem:[#allocation2 + $0x268] sm:$0xff] %v808
    %817 = vst [vmem:[#allocation2 + $0x270] sm:$0xff] %v809
    %818 = vst [vmem:[#allocation2 + $0x278] sm:$0xff] %v810
    %819 = vrot.lane.b32.xlu0 %v190, 8
    %v820 = vpop.permute.xlu0 %819
    %821 = vrot.lane.b32.xlu0 %v191, 8
    %v822 = vpop.permute.xlu0 %821
    %823 = vrot.lane.b32.xlu0 %v192, 8
    %v824 = vpop.permute.xlu0 %823
    %825 = vrot.lane.b32.xlu0 %v193, 8
    %v826 = vpop.permute.xlu0 %825
    %827 = vrot.lane.b32.xlu0 %v194, 8
    %v828 = vpop.permute.xlu0 %827
    %829 = vrot.lane.b32.xlu0 %v195, 8
    %v830 = vpop.permute.xlu0 %829
    %831 = vrot.lane.b32.xlu0 %v196, 8
    %v832 = vpop.permute.xlu0 %831
    %833 = vrot.lane.b32.xlu0 %v197, 8
    %v834 = vpop.permute.xlu0 %833
    %vm835 = vcmp.lt.s32.totalorder %v215, 8
    %v836 = vsel %vm835, %v832, %v834
    %v837 = vsel %vm835, %v830, %v832
    %v838 = vsel %vm835, %v828, %v830
    %v839 = vsel %vm835, %v826, %v828
    %v840 = vsel %vm835, %v824, %v826
    %v841 = vsel %vm835, %v822, %v824
    %v842 = vsel %vm835, %v820, %v822
    %v843 = vsel %vm835, %v834, %v820
    %s844 = scalar_lea.vmem [#allocation6], 66
    %v845 = vld [vmem:[%s844] ss:$8 sm:$0xf]
    %v846 = vld [vmem:[%s844] ss:$8 sm:$0xf0]
    %v847 = vor.u32 %v845, %v846
    %v849 = vperm.slane %v847, 0
    %v850 = vperm.slane %v847, 1
    %v851 = vperm.slane %v847, 2
    %v852 = vperm.slane %v847, 3
    %v853 = vperm.slane %v847, 4
    %v854 = vperm.slane %v847, 5
    %v855 = vperm.slane %v847, 6
    %v856 = vperm.slane %v847, 7
    %v865 = vmul.f32 %v843, %v849
    %v866 = vmul.f32 %v842, %v850
    %v867 = vmul.f32 %v841, %v851
    %v868 = vmul.f32 %v840, %v852
    %v869 = vmul.f32 %v839, %v853
    %v870 = vmul.f32 %v838, %v854
    %v871 = vmul.f32 %v837, %v855
    %v872 = vmul.f32 %v836, %v856
    %873 = vst [vmem:[#allocation2 + $0x280] sm:$0xff] %v865
    %874 = vst [vmem:[#allocation2 + $0x288] sm:$0xff] %v866
    %875 = vst [vmem:[#allocation2 + $0x290] sm:$0xff] %v867
    %876 = vst [vmem:[#allocation2 + $0x298] sm:$0xff] %v868
    %877 = vst [vmem:[#allocation2 + $0x2a0] sm:$0xff] %v869
    %878 = vst [vmem:[#allocation2 + $0x2a8] sm:$0xff] %v870
    %879 = vst [vmem:[#allocation2 + $0x2b0] sm:$0xff] %v871
    %880 = vst [vmem:[#allocation2 + $0x2b8] sm:$0xff] %v872
    %881 = vrot.lane.b32.xlu0 %v190, 7
    %v882 = vpop.permute.xlu0 %881
    %883 = vrot.lane.b32.xlu0 %v191, 7
    %v884 = vpop.permute.xlu0 %883
    %885 = vrot.lane.b32.xlu0 %v192, 7
    %v886 = vpop.permute.xlu0 %885
    %887 = vrot.lane.b32.xlu0 %v193, 7
    %v888 = vpop.permute.xlu0 %887
    %889 = vrot.lane.b32.xlu0 %v194, 7
    %v890 = vpop.permute.xlu0 %889
    %891 = vrot.lane.b32.xlu0 %v195, 7
    %v892 = vpop.permute.xlu0 %891
    %893 = vrot.lane.b32.xlu0 %v196, 7
    %v894 = vpop.permute.xlu0 %893
    %895 = vrot.lane.b32.xlu0 %v197, 7
    %v896 = vpop.permute.xlu0 %895
    %vm897 = vcmp.lt.s32.totalorder %v215, 7
    %v898 = vsel %vm897, %v894, %v896
    %v899 = vsel %vm897, %v892, %v894
    %v900 = vsel %vm897, %v890, %v892
    %v901 = vsel %vm897, %v888, %v890
    %v902 = vsel %vm897, %v886, %v888
    %v903 = vsel %vm897, %v884, %v886
    %v904 = vsel %vm897, %v882, %v884
    %v905 = vsel %vm897, %v896, %v882
    %s906 = scalar_lea.vmem [#allocation6], 67
    %v907 = vld [vmem:[%s906] ss:$8 sm:$0xf]
    %v908 = vld [vmem:[%s906] ss:$8 sm:$0xf0]
    %v909 = vor.u32 %v907, %v908
    %v911 = vperm.slane %v909, 0
    %v912 = vperm.slane %v909, 1
    %v913 = vperm.slane %v909, 2
    %v914 = vperm.slane %v909, 3
    %v915 = vperm.slane %v909, 4
    %v916 = vperm.slane %v909, 5
    %v917 = vperm.slane %v909, 6
    %v918 = vperm.slane %v909, 7
    %v927 = vmul.f32 %v905, %v911
    %v928 = vmul.f32 %v904, %v912
    %v929 = vmul.f32 %v903, %v913
    %v930 = vmul.f32 %v902, %v914
    %v931 = vmul.f32 %v901, %v915
    %v932 = vmul.f32 %v900, %v916
    %v933 = vmul.f32 %v899, %v917
    %v934 = vmul.f32 %v898, %v918
    %935 = vst [vmem:[#allocation2 + $0x2c0] sm:$0xff] %v927
    %936 = vst [vmem:[#allocation2 + $0x2c8] sm:$0xff] %v928
    %937 = vst [vmem:[#allocation2 + $0x2d0] sm:$0xff] %v929
    %938 = vst [vmem:[#allocation2 + $0x2d8] sm:$0xff] %v930
    %939 = vst [vmem:[#allocation2 + $0x2e0] sm:$0xff] %v931
    %940 = vst [vmem:[#allocation2 + $0x2e8] sm:$0xff] %v932
    %941 = vst [vmem:[#allocation2 + $0x2f0] sm:$0xff] %v933
    %942 = vst [vmem:[#allocation2 + $0x2f8] sm:$0xff] %v934
    %943 = vrot.lane.b32.xlu0 %v190, 1
    %v944 = vpop.permute.xlu0 %943
    %945 = vrot.lane.b32.xlu0 %v191, 1
    %v946 = vpop.permute.xlu0 %945
    %947 = vrot.lane.b32.xlu0 %v192, 1
    %v948 = vpop.permute.xlu0 %947
    %949 = vrot.lane.b32.xlu0 %v193, 1
    %v950 = vpop.permute.xlu0 %949
    %951 = vrot.lane.b32.xlu0 %v194, 1
    %v952 = vpop.permute.xlu0 %951
    %953 = vrot.lane.b32.xlu0 %v195, 1
    %v954 = vpop.permute.xlu0 %953
    %955 = vrot.lane.b32.xlu0 %v196, 1
    %v956 = vpop.permute.xlu0 %955
    %957 = vrot.lane.b32.xlu0 %v197, 1
    %v958 = vpop.permute.xlu0 %957
    %vm959 = vcmp.lt.s32.totalorder %v215, 1
    %v960 = vsel %vm959, %v956, %v958
    %v961 = vsel %vm959, %v954, %v956
    %v962 = vsel %vm959, %v952, %v954
    %v963 = vsel %vm959, %v950, %v952
    %v964 = vsel %vm959, %v948, %v950
    %v965 = vsel %vm959, %v946, %v948
    %v966 = vsel %vm959, %v944, %v946
    %v967 = vsel %vm959, %v958, %v944
    %s968 = scalar_lea.vmem [#allocation6], 68
    %v969 = vld [vmem:[%s968] ss:$8 sm:$0xf]
    %v970 = vld [vmem:[%s968] ss:$8 sm:$0xf0]
    %v971 = vor.u32 %v969, %v970
    %v973 = vperm.slane %v971, 0
    %v974 = vperm.slane %v971, 1
    %v975 = vperm.slane %v971, 2
    %v976 = vperm.slane %v971, 3
    %v977 = vperm.slane %v971, 4
    %v978 = vperm.slane %v971, 5
    %v979 = vperm.slane %v971, 6
    %v980 = vperm.slane %v971, 7
    %v989 = vmul.f32 %v967, %v973
    %v990 = vmul.f32 %v966, %v974
    %v991 = vmul.f32 %v965, %v975
    %v992 = vmul.f32 %v964, %v976
    %v993 = vmul.f32 %v963, %v977
    %v994 = vmul.f32 %v962, %v978
    %v995 = vmul.f32 %v961, %v979
    %v996 = vmul.f32 %v960, %v980
    %997 = vst [vmem:[#allocation2 + $0x300] sm:$0xff] %v989
    %998 = vst [vmem:[#allocation2 + $0x308] sm:$0xff] %v990
    %999 = vst [vmem:[#allocation2 + $0x310] sm:$0xff] %v991
    %1000 = vst [vmem:[#allocation2 + $0x318] sm:$0xff] %v992
    %1001 = vst [vmem:[#allocation2 + $0x320] sm:$0xff] %v993
    %1002 = vst [vmem:[#allocation2 + $0x328] sm:$0xff] %v994
    %1003 = vst [vmem:[#allocation2 + $0x330] sm:$0xff] %v995
    %1004 = vst [vmem:[#allocation2 + $0x338] sm:$0xff] %v996
    %s1005 = scalar_lea.vmem [#allocation6], 69
    %v1006 = vld [vmem:[%s1005] ss:$8 sm:$0xf]
    %v1007 = vld [vmem:[%s1005] ss:$8 sm:$0xf0]
    %v1008 = vor.u32 %v1006, %v1007
    %v1010 = vperm.slane %v1008, 0
    %v1011 = vperm.slane %v1008, 1
    %v1012 = vperm.slane %v1008, 2
    %v1013 = vperm.slane %v1008, 3
    %v1014 = vperm.slane %v1008, 4
    %v1015 = vperm.slane %v1008, 5
    %v1016 = vperm.slane %v1008, 6
    %v1017 = vperm.slane %v1008, 7
    %v1026 = vmul.f32 %v190, %v1010
    %v1027 = vmul.f32 %v191, %v1011
    %v1028 = vmul.f32 %v192, %v1012
    %v1029 = vmul.f32 %v193, %v1013
    %v1030 = vmul.f32 %v194, %v1014
    %v1031 = vmul.f32 %v195, %v1015
    %v1032 = vmul.f32 %v196, %v1016
    %v1033 = vmul.f32 %v197, %v1017
    %1034 = vst [vmem:[#allocation2 + $0x340] sm:$0xff] %v1026
    %1035 = vst [vmem:[#allocation2 + $0x348] sm:$0xff] %v1027
    %1036 = vst [vmem:[#allocation2 + $0x350] sm:$0xff] %v1028
    %1037 = vst [vmem:[#allocation2 + $0x358] sm:$0xff] %v1029
    %1038 = vst [vmem:[#allocation2 + $0x360] sm:$0xff] %v1030
    %1039 = vst [vmem:[#allocation2 + $0x368] sm:$0xff] %v1031
    %1040 = vst [vmem:[#allocation2 + $0x370] sm:$0xff] %v1032
    %1041 = vst [vmem:[#allocation2 + $0x378] sm:$0xff] %v1033
    %1042 = vrot.lane.b32.xlu0 %v190, 127
    %v1043 = vpop.permute.xlu0 %1042
    %1044 = vrot.lane.b32.xlu0 %v191, 127
    %v1045 = vpop.permute.xlu0 %1044
    %1046 = vrot.lane.b32.xlu0 %v192, 127
    %v1047 = vpop.permute.xlu0 %1046
    %1048 = vrot.lane.b32.xlu0 %v193, 127
    %v1049 = vpop.permute.xlu0 %1048
    %1050 = vrot.lane.b32.xlu0 %v194, 127
    %v1051 = vpop.permute.xlu0 %1050
    %1052 = vrot.lane.b32.xlu0 %v195, 127
    %v1053 = vpop.permute.xlu0 %1052
    %1054 = vrot.lane.b32.xlu0 %v196, 127
    %v1055 = vpop.permute.xlu0 %1054
    %1056 = vrot.lane.b32.xlu0 %v197, 127
    %v1057 = vpop.permute.xlu0 %1056
    %vm1058 = vcmp.lt.s32.totalorder %v215, 127
    %v1059 = vsel %vm1058, %v1055, %v1057
    %v1060 = vsel %vm1058, %v1053, %v1055
    %v1061 = vsel %vm1058, %v1051, %v1053
    %v1062 = vsel %vm1058, %v1049, %v1051
    %v1063 = vsel %vm1058, %v1047, %v1049
    %v1064 = vsel %vm1058, %v1045, %v1047
    %v1065 = vsel %vm1058, %v1043, %v1045
    %v1066 = vsel %vm1058, %v1057, %v1043
    %s1067 = scalar_lea.vmem [#allocation6], 70
    %v1068 = vld [vmem:[%s1067] ss:$8 sm:$0xf]
    %v1069 = vld [vmem:[%s1067] ss:$8 sm:$0xf0]
    %v1070 = vor.u32 %v1068, %v1069
    %v1072 = vperm.slane %v1070, 0
    %v1073 = vperm.slane %v1070, 1
    %v1074 = vperm.slane %v1070, 2
    %v1075 = vperm.slane %v1070, 3
    %v1076 = vperm.slane %v1070, 4
    %v1077 = vperm.slane %v1070, 5
    %v1078 = vperm.slane %v1070, 6
    %v1079 = vperm.slane %v1070, 7
    %v1088 = vmul.f32 %v1065, %v1072
    %v1089 = vmul.f32 %v1064, %v1073
    %v1090 = vmul.f32 %v1063, %v1074
    %v1091 = vmul.f32 %v1062, %v1075
    %v1092 = vmul.f32 %v1061, %v1076
    %v1093 = vmul.f32 %v1060, %v1077
    %v1094 = vmul.f32 %v1059, %v1078
    %v1095 = vmul.f32 %v1066, %v1079
    %1096 = vst [vmem:[#allocation2 + $0x380] sm:$0xff] %v1088
    %1097 = vst [vmem:[#allocation2 + $0x388] sm:$0xff] %v1089
    %1098 = vst [vmem:[#allocation2 + $0x390] sm:$0xff] %v1090
    %1099 = vst [vmem:[#allocation2 + $0x398] sm:$0xff] %v1091
    %1100 = vst [vmem:[#allocation2 + $0x3a0] sm:$0xff] %v1092
    %1101 = vst [vmem:[#allocation2 + $0x3a8] sm:$0xff] %v1093
    %1102 = vst [vmem:[#allocation2 + $0x3b0] sm:$0xff] %v1094
    %1103 = vst [vmem:[#allocation2 + $0x3b8] sm:$0xff] %v1095
    %1104 = vrot.lane.b32.xlu0 %v190, 121
    %v1105 = vpop.permute.xlu0 %1104
    %1106 = vrot.lane.b32.xlu0 %v191, 121
    %v1107 = vpop.permute.xlu0 %1106
    %1108 = vrot.lane.b32.xlu0 %v192, 121
    %v1109 = vpop.permute.xlu0 %1108
    %1110 = vrot.lane.b32.xlu0 %v193, 121
    %v1111 = vpop.permute.xlu0 %1110
    %1112 = vrot.lane.b32.xlu0 %v194, 121
    %v1113 = vpop.permute.xlu0 %1112
    %1114 = vrot.lane.b32.xlu0 %v195, 121
    %v1115 = vpop.permute.xlu0 %1114
    %1116 = vrot.lane.b32.xlu0 %v196, 121
    %v1117 = vpop.permute.xlu0 %1116
    %1118 = vrot.lane.b32.xlu0 %v197, 121
    %v1119 = vpop.permute.xlu0 %1118
    %vm1120 = vcmp.lt.s32.totalorder %v215, 121
    %v1121 = vsel %vm1120, %v1117, %v1119
    %v1122 = vsel %vm1120, %v1115, %v1117
    %v1123 = vsel %vm1120, %v1113, %v1115
    %v1124 = vsel %vm1120, %v1111, %v1113
    %v1125 = vsel %vm1120, %v1109, %v1111
    %v1126 = vsel %vm1120, %v1107, %v1109
    %v1127 = vsel %vm1120, %v1105, %v1107
    %v1128 = vsel %vm1120, %v1119, %v1105
    %s1129 = scalar_lea.vmem [#allocation6], 71
    %v1130 = vld [vmem:[%s1129] ss:$8 sm:$0xf]
    %v1131 = vld [vmem:[%s1129] ss:$8 sm:$0xf0]
    %v1132 = vor.u32 %v1130, %v1131
    %v1134 = vperm.slane %v1132, 0
    %v1135 = vperm.slane %v1132, 1
    %v1136 = vperm.slane %v1132, 2
    %v1137 = vperm.slane %v1132, 3
    %v1138 = vperm.slane %v1132, 4
    %v1139 = vperm.slane %v1132, 5
    %v1140 = vperm.slane %v1132, 6
    %v1141 = vperm.slane %v1132, 7
    %v1150 = vmul.f32 %v1127, %v1134
    %v1151 = vmul.f32 %v1126, %v1135
    %v1152 = vmul.f32 %v1125, %v1136
    %v1153 = vmul.f32 %v1124, %v1137
    %v1154 = vmul.f32 %v1123, %v1138
    %v1155 = vmul.f32 %v1122, %v1139
    %v1156 = vmul.f32 %v1121, %v1140
    %v1157 = vmul.f32 %v1128, %v1141
    %1158 = vst [vmem:[#allocation2 + $0x3c0] sm:$0xff] %v1150
    %1159 = vst [vmem:[#allocation2 + $0x3c8] sm:$0xff] %v1151
    %1160 = vst [vmem:[#allocation2 + $0x3d0] sm:$0xff] %v1152
    %1161 = vst [vmem:[#allocation2 + $0x3d8] sm:$0xff] %v1153
    %1162 = vst [vmem:[#allocation2 + $0x3e0] sm:$0xff] %v1154
    %1163 = vst [vmem:[#allocation2 + $0x3e8] sm:$0xff] %v1155
    %1164 = vst [vmem:[#allocation2 + $0x3f0] sm:$0xff] %v1156
    %1165 = vst [vmem:[#allocation2 + $0x3f8] sm:$0xff] %v1157
    %v1166 = vld [vmem:[%s2] sm:$0xff]
    %v1167 = vld [vmem:[#allocation2] sm:$0xff]
    %v1168 = vld [vmem:[#allocation2 + $0x8] sm:$0xff]
    %v1169 = vld [vmem:[#allocation2 + $0x10] sm:$0xff]
    %v1170 = vld [vmem:[#allocation2 + $0x18] sm:$0xff]
    %v1171 = vld [vmem:[#allocation2 + $0x20] sm:$0xff]
    %v1172 = vld [vmem:[#allocation2 + $0x28] sm:$0xff]
    %v1173 = vld [vmem:[#allocation2 + $0x30] sm:$0xff]
    %v1174 = vld [vmem:[#allocation2 + $0x38] sm:$0xff]
    %v1175 = vld [vmem:[#allocation2 + $0x40] sm:$0xff]
    %v1176 = vld [vmem:[#allocation2 + $0x48] sm:$0xff]
    %v1177 = vld [vmem:[#allocation2 + $0x50] sm:$0xff]
    %v1178 = vld [vmem:[#allocation2 + $0x58] sm:$0xff]
    %v1179 = vld [vmem:[#allocation2 + $0x60] sm:$0xff]
    %v1180 = vld [vmem:[#allocation2 + $0x68] sm:$0xff]
    %v1181 = vld [vmem:[#allocation2 + $0x70] sm:$0xff]
    %v1182 = vld [vmem:[#allocation2 + $0x78] sm:$0xff]
    %v1183 = vld [vmem:[#allocation2 + $0x80] sm:$0xff]
    %v1184 = vld [vmem:[#allocation2 + $0x88] sm:$0xff]
    %v1185 = vld [vmem:[#allocation2 + $0x90] sm:$0xff]
    %v1186 = vld [vmem:[#allocation2 + $0x98] sm:$0xff]
    %v1187 = vld [vmem:[#allocation2 + $0xa0] sm:$0xff]
    %v1188 = vld [vmem:[#allocation2 + $0xa8] sm:$0xff]
    %v1189 = vld [vmem:[#allocation2 + $0xb0] sm:$0xff]
    %v1190 = vld [vmem:[#allocation2 + $0xb8] sm:$0xff]
    %v1191 = vld [vmem:[#allocation2 + $0xc0] sm:$0xff]
    %v1192 = vld [vmem:[#allocation2 + $0xc8] sm:$0xff]
    %v1193 = vld [vmem:[#allocation2 + $0xd0] sm:$0xff]
    %v1194 = vld [vmem:[#allocation2 + $0xd8] sm:$0xff]
    %v1195 = vld [vmem:[#allocation2 + $0xe0] sm:$0xff]
    %v1196 = vld [vmem:[#allocation2 + $0xe8] sm:$0xff]
    %v1197 = vld [vmem:[#allocation2 + $0xf0] sm:$0xff]
    %v1198 = vld [vmem:[#allocation2 + $0xf8] sm:$0xff]
    %v1199 = vld [vmem:[#allocation2 + $0x100] sm:$0xff]
    %v1200 = vld [vmem:[#allocation2 + $0x108] sm:$0xff]
    %v1201 = vld [vmem:[#allocation2 + $0x110] sm:$0xff]
    %v1202 = vld [vmem:[#allocation2 + $0x118] sm:$0xff]
    %v1203 = vld [vmem:[#allocation2 + $0x120] sm:$0xff]
    %v1204 = vld [vmem:[#allocation2 + $0x128] sm:$0xff]
    %v1205 = vld [vmem:[#allocation2 + $0x130] sm:$0xff]
    %v1206 = vld [vmem:[#allocation2 + $0x138] sm:$0xff]
    %v1207 = vld [vmem:[#allocation2 + $0x140] sm:$0xff]
    %v1208 = vld [vmem:[#allocation2 + $0x148] sm:$0xff]
    %v1209 = vld [vmem:[#allocation2 + $0x150] sm:$0xff]
    %v1210 = vld [vmem:[#allocation2 + $0x158] sm:$0xff]
    %v1211 = vld [vmem:[#allocation2 + $0x160] sm:$0xff]
    %v1212 = vld [vmem:[#allocation2 + $0x168] sm:$0xff]
    %v1213 = vld [vmem:[#allocation2 + $0x170] sm:$0xff]
    %v1214 = vld [vmem:[#allocation2 + $0x178] sm:$0xff]
    %v1215 = vld [vmem:[#allocation2 + $0x180] sm:$0xff]
    %v1216 = vld [vmem:[#allocation2 + $0x188] sm:$0xff]
    %v1217 = vld [vmem:[#allocation2 + $0x190] sm:$0xff]
    %v1218 = vld [vmem:[#allocation2 + $0x198] sm:$0xff]
    %v1219 = vld [vmem:[#allocation2 + $0x1a0] sm:$0xff]
    %v1220 = vld [vmem:[#allocation2 + $0x1a8] sm:$0xff]
    %v1221 = vld [vmem:[#allocation2 + $0x1b0] sm:$0xff]
    %v1222 = vld [vmem:[#allocation2 + $0x1b8] sm:$0xff]
    %v1223 = vld [vmem:[#allocation2 + $0x1c0] sm:$0xff]
    %v1224 = vld [vmem:[#allocation2 + $0x1c8] sm:$0xff]
    %v1225 = vld [vmem:[#allocation2 + $0x1d0] sm:$0xff]
    %v1226 = vld [vmem:[#allocation2 + $0x1d8] sm:$0xff]
    %v1227 = vld [vmem:[#allocation2 + $0x1e0] sm:$0xff]
    %v1228 = vld [vmem:[#allocation2 + $0x1e8] sm:$0xff]
    %v1229 = vld [vmem:[#allocation2 + $0x1f0] sm:$0xff]
    %v1230 = vld [vmem:[#allocation2 + $0x1f8] sm:$0xff]
    %v1231 = vld [vmem:[#allocation2 + $0x200] sm:$0xff]
    %v1232 = vld [vmem:[#allocation2 + $0x208] sm:$0xff]
    %v1233 = vld [vmem:[#allocation2 + $0x210] sm:$0xff]
    %v1234 = vld [vmem:[#allocation2 + $0x218] sm:$0xff]
    %v1235 = vld [vmem:[#allocation2 + $0x220] sm:$0xff]
    %v1236 = vld [vmem:[#allocation2 + $0x228] sm:$0xff]
    %v1237 = vld [vmem:[#allocation2 + $0x230] sm:$0xff]
    %v1238 = vld [vmem:[#allocation2 + $0x238] sm:$0xff]
    %v1239 = vld [vmem:[#allocation2 + $0x240] sm:$0xff]
    %v1240 = vld [vmem:[#allocation2 + $0x248] sm:$0xff]
    %v1241 = vld [vmem:[#allocation2 + $0x250] sm:$0xff]
    %v1242 = vld [vmem:[#allocation2 + $0x258] sm:$0xff]
    %v1243 = vld [vmem:[#allocation2 + $0x260] sm:$0xff]
    %v1244 = vld [vmem:[#allocation2 + $0x268] sm:$0xff]
    %v1245 = vld [vmem:[#allocation2 + $0x270] sm:$0xff]
    %v1246 = vld [vmem:[#allocation2 + $0x278] sm:$0xff]
    %v1247 = vld [vmem:[#allocation2 + $0x280] sm:$0xff]
    %v1248 = vld [vmem:[#allocation2 + $0x288] sm:$0xff]
    %v1249 = vld [vmem:[#allocation2 + $0x290] sm:$0xff]
    %v1250 = vld [vmem:[#allocation2 + $0x298] sm:$0xff]
    %v1251 = vld [vmem:[#allocation2 + $0x2a0] sm:$0xff]
    %v1252 = vld [vmem:[#allocation2 + $0x2a8] sm:$0xff]
    %v1253 = vld [vmem:[#allocation2 + $0x2b0] sm:$0xff]
    %v1254 = vld [vmem:[#allocation2 + $0x2b8] sm:$0xff]
    %v1255 = vld [vmem:[#allocation2 + $0x2c0] sm:$0xff]
    %v1256 = vld [vmem:[#allocation2 + $0x2c8] sm:$0xff]
    %v1257 = vld [vmem:[#allocation2 + $0x2d0] sm:$0xff]
    %v1258 = vld [vmem:[#allocation2 + $0x2d8] sm:$0xff]
    %v1259 = vld [vmem:[#allocation2 + $0x2e0] sm:$0xff]
    %v1260 = vld [vmem:[#allocation2 + $0x2e8] sm:$0xff]
    %v1261 = vld [vmem:[#allocation2 + $0x2f0] sm:$0xff]
    %v1262 = vld [vmem:[#allocation2 + $0x2f8] sm:$0xff]
    %v1263 = vld [vmem:[#allocation2 + $0x300] sm:$0xff]
    %v1264 = vld [vmem:[#allocation2 + $0x308] sm:$0xff]
    %v1265 = vld [vmem:[#allocation2 + $0x310] sm:$0xff]
    %v1266 = vld [vmem:[#allocation2 + $0x318] sm:$0xff]
    %v1267 = vld [vmem:[#allocation2 + $0x320] sm:$0xff]
    %v1268 = vld [vmem:[#allocation2 + $0x328] sm:$0xff]
    %v1269 = vld [vmem:[#allocation2 + $0x330] sm:$0xff]
    %v1270 = vld [vmem:[#allocation2 + $0x338] sm:$0xff]
    %v1271 = vld [vmem:[#allocation2 + $0x340] sm:$0xff]
    %v1272 = vld [vmem:[#allocation2 + $0x348] sm:$0xff]
    %v1273 = vld [vmem:[#allocation2 + $0x350] sm:$0xff]
    %v1274 = vld [vmem:[#allocation2 + $0x358] sm:$0xff]
    %v1275 = vld [vmem:[#allocation2 + $0x360] sm:$0xff]
    %v1276 = vld [vmem:[#allocation2 + $0x368] sm:$0xff]
    %v1277 = vld [vmem:[#allocation2 + $0x370] sm:$0xff]
    %v1278 = vld [vmem:[#allocation2 + $0x378] sm:$0xff]
    %v1279 = vld [vmem:[#allocation2 + $0x380] sm:$0xff]
    %v1280 = vld [vmem:[#allocation2 + $0x388] sm:$0xff]
    %v1281 = vld [vmem:[#allocation2 + $0x390] sm:$0xff]
    %v1282 = vld [vmem:[#allocation2 + $0x398] sm:$0xff]
    %v1283 = vld [vmem:[#allocation2 + $0x3a0] sm:$0xff]
    %v1284 = vld [vmem:[#allocation2 + $0x3a8] sm:$0xff]
    %v1285 = vld [vmem:[#allocation2 + $0x3b0] sm:$0xff]
    %v1286 = vld [vmem:[#allocation2 + $0x3b8] sm:$0xff]
    %v1287 = vld [vmem:[#allocation2 + $0x3c0] sm:$0xff]
    %v1288 = vld [vmem:[#allocation2 + $0x3c8] sm:$0xff]
    %v1289 = vld [vmem:[#allocation2 + $0x3d0] sm:$0xff]
    %v1290 = vld [vmem:[#allocation2 + $0x3d8] sm:$0xff]
    %v1291 = vld [vmem:[#allocation2 + $0x3e0] sm:$0xff]
    %v1292 = vld [vmem:[#allocation2 + $0x3e8] sm:$0xff]
    %v1293 = vld [vmem:[#allocation2 + $0x3f0] sm:$0xff]
    %v1294 = vld [vmem:[#allocation2 + $0x3f8] sm:$0xff]
    %1295 = vrot.lane.b32.xlu0 %v190, 120
    %v1296 = vpop.permute.xlu0 %1295
    %1297 = vrot.lane.b32.xlu0 %v191, 120
    %v1298 = vpop.permute.xlu0 %1297
    %1299 = vrot.lane.b32.xlu0 %v192, 120
    %v1300 = vpop.permute.xlu0 %1299
    %1301 = vrot.lane.b32.xlu0 %v193, 120
    %v1302 = vpop.permute.xlu0 %1301
    %1303 = vrot.lane.b32.xlu0 %v194, 120
    %v1304 = vpop.permute.xlu0 %1303
    %1305 = vrot.lane.b32.xlu0 %v195, 120
    %v1306 = vpop.permute.xlu0 %1305
    %1307 = vrot.lane.b32.xlu0 %v196, 120
    %v1308 = vpop.permute.xlu0 %1307
    %1309 = vrot.lane.b32.xlu0 %v197, 120
    %v1310 = vpop.permute.xlu0 %1309
    %vm1311 = vcmp.lt.s32.totalorder %v215, 120
    %v1312 = vsel %vm1311, %v1308, %v1310
    %v1313 = vsel %vm1311, %v1306, %v1308
    %v1314 = vsel %vm1311, %v1304, %v1306
    %v1315 = vsel %vm1311, %v1302, %v1304
    %v1316 = vsel %vm1311, %v1300, %v1302
    %v1317 = vsel %vm1311, %v1298, %v1300
    %v1318 = vsel %vm1311, %v1296, %v1298
    %v1319 = vsel %vm1311, %v1310, %v1296
    %s1320 = scalar_lea.vmem [#allocation6], 128
    %v1321 = vld [vmem:[%s1320] ss:$8 sm:$0xf]
    %v1322 = vld [vmem:[%s1320] ss:$8 sm:$0xf0]
    %v1323 = vor.u32 %v1321, %v1322
    %v1325 = vperm.slane %v1323, 0
    %v1326 = vperm.slane %v1323, 1
    %v1327 = vperm.slane %v1323, 2
    %v1328 = vperm.slane %v1323, 3
    %v1329 = vperm.slane %v1323, 4
    %v1330 = vperm.slane %v1323, 5
    %v1331 = vperm.slane %v1323, 6
    %v1332 = vperm.slane %v1323, 7
    %v1341 = vmul.f32 %v1318, %v1325
    %v1342 = vmul.f32 %v1317, %v1326
    %v1343 = vmul.f32 %v1316, %v1327
    %v1344 = vmul.f32 %v1315, %v1328
    %v1345 = vmul.f32 %v1314, %v1329
    %v1346 = vmul.f32 %v1313, %v1330
    %v1347 = vmul.f32 %v1312, %v1331
    %v1348 = vmul.f32 %v1319, %v1332
    %1349 = vst [vmem:[#allocation2 + $0x400] sm:$0xff] %v1341
    %1350 = vst [vmem:[#allocation2 + $0x408] sm:$0xff] %v1342
    %1351 = vst [vmem:[#allocation2 + $0x410] sm:$0xff] %v1343
    %1352 = vst [vmem:[#allocation2 + $0x418] sm:$0xff] %v1344
    %1353 = vst [vmem:[#allocation2 + $0x420] sm:$0xff] %v1345
    %1354 = vst [vmem:[#allocation2 + $0x428] sm:$0xff] %v1346
    %1355 = vst [vmem:[#allocation2 + $0x430] sm:$0xff] %v1347
    %1356 = vst [vmem:[#allocation2 + $0x438] sm:$0xff] %v1348
    %1357 = vrot.lane.b32.xlu0 %v190, 119
    %v1358 = vpop.permute.xlu0 %1357
    %1359 = vrot.lane.b32.xlu0 %v191, 119
    %v1360 = vpop.permute.xlu0 %1359
    %1361 = vrot.lane.b32.xlu0 %v192, 119
    %v1362 = vpop.permute.xlu0 %1361
    %1363 = vrot.lane.b32.xlu0 %v193, 119
    %v1364 = vpop.permute.xlu0 %1363
    %1365 = vrot.lane.b32.xlu0 %v194, 119
    %v1366 = vpop.permute.xlu0 %1365
    %1367 = vrot.lane.b32.xlu0 %v195, 119
    %v1368 = vpop.permute.xlu0 %1367
    %1369 = vrot.lane.b32.xlu0 %v196, 119
    %v1370 = vpop.permute.xlu0 %1369
    %1371 = vrot.lane.b32.xlu0 %v197, 119
    %v1372 = vpop.permute.xlu0 %1371
    %vm1373 = vcmp.lt.s32.totalorder %v215, 119
    %v1374 = vsel %vm1373, %v1370, %v1372
    %v1375 = vsel %vm1373, %v1368, %v1370
    %v1376 = vsel %vm1373, %v1366, %v1368
    %v1377 = vsel %vm1373, %v1364, %v1366
    %v1378 = vsel %vm1373, %v1362, %v1364
    %v1379 = vsel %vm1373, %v1360, %v1362
    %v1380 = vsel %vm1373, %v1358, %v1360
    %v1381 = vsel %vm1373, %v1372, %v1358
    %s1382 = scalar_lea.vmem [#allocation6], 129
    %v1383 = vld [vmem:[%s1382] ss:$8 sm:$0xf]
    %v1384 = vld [vmem:[%s1382] ss:$8 sm:$0xf0]
    %v1385 = vor.u32 %v1383, %v1384
    %v1387 = vperm.slane %v1385, 0
    %v1388 = vperm.slane %v1385, 1
    %v1389 = vperm.slane %v1385, 2
    %v1390 = vperm.slane %v1385, 3
    %v1391 = vperm.slane %v1385, 4
    %v1392 = vperm.slane %v1385, 5
    %v1393 = vperm.slane %v1385, 6
    %v1394 = vperm.slane %v1385, 7
    %v1403 = vmul.f32 %v1380, %v1387
    %v1404 = vmul.f32 %v1379, %v1388
    %v1405 = vmul.f32 %v1378, %v1389
    %v1406 = vmul.f32 %v1377, %v1390
    %v1407 = vmul.f32 %v1376, %v1391
    %v1408 = vmul.f32 %v1375, %v1392
    %v1409 = vmul.f32 %v1374, %v1393
    %v1410 = vmul.f32 %v1381, %v1394
    %1411 = vst [vmem:[#allocation2 + $0x440] sm:$0xff] %v1403
    %1412 = vst [vmem:[#allocation2 + $0x448] sm:$0xff] %v1404
    %1413 = vst [vmem:[#allocation2 + $0x450] sm:$0xff] %v1405
    %1414 = vst [vmem:[#allocation2 + $0x458] sm:$0xff] %v1406
    %1415 = vst [vmem:[#allocation2 + $0x460] sm:$0xff] %v1407
    %1416 = vst [vmem:[#allocation2 + $0x468] sm:$0xff] %v1408
    %1417 = vst [vmem:[#allocation2 + $0x470] sm:$0xff] %v1409
    %1418 = vst [vmem:[#allocation2 + $0x478] sm:$0xff] %v1410
    %s1419 = scalar_lea.vmem [#allocation6], 130
    %v1420 = vld [vmem:[%s1419] ss:$8 sm:$0xf]
    %v1421 = vld [vmem:[%s1419] ss:$8 sm:$0xf0]
    %v1422 = vor.u32 %v1420, %v1421
    %v1424 = vperm.slane %v1422, 0
    %v1425 = vperm.slane %v1422, 1
    %v1426 = vperm.slane %v1422, 2
    %v1427 = vperm.slane %v1422, 3
    %v1428 = vperm.slane %v1422, 4
    %v1429 = vperm.slane %v1422, 5
    %v1430 = vperm.slane %v1422, 6
    %v1431 = vperm.slane %v1422, 7
    %v1440 = vmul.f32 %v223, %v1424
    %v1441 = vmul.f32 %v222, %v1425
    %v1442 = vmul.f32 %v221, %v1426
    %v1443 = vmul.f32 %v220, %v1427
    %v1444 = vmul.f32 %v219, %v1428
    %v1445 = vmul.f32 %v218, %v1429
    %v1446 = vmul.f32 %v217, %v1430
    %v1447 = vmul.f32 %v224, %v1431
    %1448 = vst [vmem:[#allocation2 + $0x480] sm:$0xff] %v1440
    %1449 = vst [vmem:[#allocation2 + $0x488] sm:$0xff] %v1441
    %1450 = vst [vmem:[#allocation2 + $0x490] sm:$0xff] %v1442
    %1451 = vst [vmem:[#allocation2 + $0x498] sm:$0xff] %v1443
    %1452 = vst [vmem:[#allocation2 + $0x4a0] sm:$0xff] %v1444
    %1453 = vst [vmem:[#allocation2 + $0x4a8] sm:$0xff] %v1445
    %1454 = vst [vmem:[#allocation2 + $0x4b0] sm:$0xff] %v1446
    %1455 = vst [vmem:[#allocation2 + $0x4b8] sm:$0xff] %v1447
    %s1456 = scalar_lea.vmem [#allocation6], 131
    %v1457 = vld [vmem:[%s1456] ss:$8 sm:$0xf]
    %v1458 = vld [vmem:[%s1456] ss:$8 sm:$0xf0]
    %v1459 = vor.u32 %v1457, %v1458
    %v1461 = vperm.slane %v1459, 0
    %v1462 = vperm.slane %v1459, 1
    %v1463 = vperm.slane %v1459, 2
    %v1464 = vperm.slane %v1459, 3
    %v1465 = vperm.slane %v1459, 4
    %v1466 = vperm.slane %v1459, 5
    %v1467 = vperm.slane %v1459, 6
    %v1468 = vperm.slane %v1459, 7
    %v1477 = vmul.f32 %v284, %v1461
    %v1478 = vmul.f32 %v283, %v1462
    %v1479 = vmul.f32 %v282, %v1463
    %v1480 = vmul.f32 %v281, %v1464
    %v1481 = vmul.f32 %v280, %v1465
    %v1482 = vmul.f32 %v279, %v1466
    %v1483 = vmul.f32 %v278, %v1467
    %v1484 = vmul.f32 %v285, %v1468
    %1485 = vst [vmem:[#allocation2 + $0x4c0] sm:$0xff] %v1477
    %1486 = vst [vmem:[#allocation2 + $0x4c8] sm:$0xff] %v1478
    %1487 = vst [vmem:[#allocation2 + $0x4d0] sm:$0xff] %v1479
    %1488 = vst [vmem:[#allocation2 + $0x4d8] sm:$0xff] %v1480
    %1489 = vst [vmem:[#allocation2 + $0x4e0] sm:$0xff] %v1481
    %1490 = vst [vmem:[#allocation2 + $0x4e8] sm:$0xff] %v1482
    %1491 = vst [vmem:[#allocation2 + $0x4f0] sm:$0xff] %v1483
    %1492 = vst [vmem:[#allocation2 + $0x4f8] sm:$0xff] %v1484
    %s1493 = scalar_lea.vmem [#allocation6], 132
    %v1494 = vld [vmem:[%s1493] ss:$8 sm:$0xf]
    %v1495 = vld [vmem:[%s1493] ss:$8 sm:$0xf0]
    %v1496 = vor.u32 %v1494, %v1495
    %v1498 = vperm.slane %v1496, 0
    %v1499 = vperm.slane %v1496, 1
    %v1500 = vperm.slane %v1496, 2
    %v1501 = vperm.slane %v1496, 3
    %v1502 = vperm.slane %v1496, 4
    %v1503 = vperm.slane %v1496, 5
    %v1504 = vperm.slane %v1496, 6
    %v1505 = vperm.slane %v1496, 7
    %v1514 = vmul.f32 %v346, %v1498
    %v1515 = vmul.f32 %v345, %v1499
    %v1516 = vmul.f32 %v344, %v1500
    %v1517 = vmul.f32 %v343, %v1501
    %v1518 = vmul.f32 %v342, %v1502
    %v1519 = vmul.f32 %v341, %v1503
    %v1520 = vmul.f32 %v340, %v1504
    %v1521 = vmul.f32 %v347, %v1505
    %1522 = vst [vmem:[#allocation2 + $0x500] sm:$0xff] %v1514
    %1523 = vst [vmem:[#allocation2 + $0x508] sm:$0xff] %v1515
    %1524 = vst [vmem:[#allocation2 + $0x510] sm:$0xff] %v1516
    %1525 = vst [vmem:[#allocation2 + $0x518] sm:$0xff] %v1517
    %1526 = vst [vmem:[#allocation2 + $0x520] sm:$0xff] %v1518
    %1527 = vst [vmem:[#allocation2 + $0x528] sm:$0xff] %v1519
    %1528 = vst [vmem:[#allocation2 + $0x530] sm:$0xff] %v1520
    %1529 = vst [vmem:[#allocation2 + $0x538] sm:$0xff] %v1521
    %s1530 = scalar_lea.vmem [#allocation6], 133
    %v1531 = vld [vmem:[%s1530] ss:$8 sm:$0xf]
    %v1532 = vld [vmem:[%s1530] ss:$8 sm:$0xf0]
    %v1533 = vor.u32 %v1531, %v1532
    %v1535 = vperm.slane %v1533, 0
    %v1536 = vperm.slane %v1533, 1
    %v1537 = vperm.slane %v1533, 2
    %v1538 = vperm.slane %v1533, 3
    %v1539 = vperm.slane %v1533, 4
    %v1540 = vperm.slane %v1533, 5
    %v1541 = vperm.slane %v1533, 6
    %v1542 = vperm.slane %v1533, 7
    %v1551 = vmul.f32 %v408, %v1535
    %v1552 = vmul.f32 %v407, %v1536
    %v1553 = vmul.f32 %v406, %v1537
    %v1554 = vmul.f32 %v405, %v1538
    %v1555 = vmul.f32 %v404, %v1539
    %v1556 = vmul.f32 %v403, %v1540
    %v1557 = vmul.f32 %v402, %v1541
    %v1558 = vmul.f32 %v409, %v1542
    %1559 = vst [vmem:[#allocation2 + $0x540] sm:$0xff] %v1551
    %1560 = vst [vmem:[#allocation2 + $0x548] sm:$0xff] %v1552
    %1561 = vst [vmem:[#allocation2 + $0x550] sm:$0xff] %v1553
    %1562 = vst [vmem:[#allocation2 + $0x558] sm:$0xff] %v1554
    %1563 = vst [vmem:[#allocation2 + $0x560] sm:$0xff] %v1555
    %1564 = vst [vmem:[#allocation2 + $0x568] sm:$0xff] %v1556
    %1565 = vst [vmem:[#allocation2 + $0x570] sm:$0xff] %v1557
    %1566 = vst [vmem:[#allocation2 + $0x578] sm:$0xff] %v1558
    %s1567 = scalar_lea.vmem [#allocation6], 134
    %v1568 = vld [vmem:[%s1567] ss:$8 sm:$0xf]
    %v1569 = vld [vmem:[%s1567] ss:$8 sm:$0xf0]
    %v1570 = vor.u32 %v1568, %v1569
    %v1572 = vperm.slane %v1570, 0
    %v1573 = vperm.slane %v1570, 1
    %v1574 = vperm.slane %v1570, 2
    %v1575 = vperm.slane %v1570, 3
    %v1576 = vperm.slane %v1570, 4
    %v1577 = vperm.slane %v1570, 5
    %v1578 = vperm.slane %v1570, 6
    %v1579 = vperm.slane %v1570, 7
    %v1588 = vmul.f32 %v470, %v1572
    %v1589 = vmul.f32 %v469, %v1573
    %v1590 = vmul.f32 %v468, %v1574
    %v1591 = vmul.f32 %v467, %v1575
    %v1592 = vmul.f32 %v466, %v1576
    %v1593 = vmul.f32 %v465, %v1577
    %v1594 = vmul.f32 %v464, %v1578
    %v1595 = vmul.f32 %v471, %v1579
    %1596 = vst [vmem:[#allocation2 + $0x580] sm:$0xff] %v1588
    %1597 = vst [vmem:[#allocation2 + $0x588] sm:$0xff] %v1589
    %1598 = vst [vmem:[#allocation2 + $0x590] sm:$0xff] %v1590
    %1599 = vst [vmem:[#allocation2 + $0x598] sm:$0xff] %v1591
    %1600 = vst [vmem:[#allocation2 + $0x5a0] sm:$0xff] %v1592
    %1601 = vst [vmem:[#allocation2 + $0x5a8] sm:$0xff] %v1593
    %1602 = vst [vmem:[#allocation2 + $0x5b0] sm:$0xff] %v1594
    %1603 = vst [vmem:[#allocation2 + $0x5b8] sm:$0xff] %v1595
    %s1604 = scalar_lea.vmem [#allocation6], 135
    %v1605 = vld [vmem:[%s1604] ss:$8 sm:$0xf]
    %v1606 = vld [vmem:[%s1604] ss:$8 sm:$0xf0]
    %v1607 = vor.u32 %v1605, %v1606
    %v1609 = vperm.slane %v1607, 0
    %v1610 = vperm.slane %v1607, 1
    %v1611 = vperm.slane %v1607, 2
    %v1612 = vperm.slane %v1607, 3
    %v1613 = vperm.slane %v1607, 4
    %v1614 = vperm.slane %v1607, 5
    %v1615 = vperm.slane %v1607, 6
    %v1616 = vperm.slane %v1607, 7
    %v1625 = vmul.f32 %v532, %v1609
    %v1626 = vmul.f32 %v531, %v1610
    %v1627 = vmul.f32 %v530, %v1611
    %v1628 = vmul.f32 %v529, %v1612
    %v1629 = vmul.f32 %v528, %v1613
    %v1630 = vmul.f32 %v527, %v1614
    %v1631 = vmul.f32 %v526, %v1615
    %v1632 = vmul.f32 %v533, %v1616
    %1633 = vst [vmem:[#allocation2 + $0x5c0] sm:$0xff] %v1625
    %1634 = vst [vmem:[#allocation2 + $0x5c8] sm:$0xff] %v1626
    %1635 = vst [vmem:[#allocation2 + $0x5d0] sm:$0xff] %v1627
    %1636 = vst [vmem:[#allocation2 + $0x5d8] sm:$0xff] %v1628
    %1637 = vst [vmem:[#allocation2 + $0x5e0] sm:$0xff] %v1629
    %1638 = vst [vmem:[#allocation2 + $0x5e8] sm:$0xff] %v1630
    %1639 = vst [vmem:[#allocation2 + $0x5f0] sm:$0xff] %v1631
    %1640 = vst [vmem:[#allocation2 + $0x5f8] sm:$0xff] %v1632
    %s1641 = scalar_lea.vmem [#allocation6], 192
    %v1642 = vld [vmem:[%s1641] ss:$8 sm:$0xf]
    %v1643 = vld [vmem:[%s1641] ss:$8 sm:$0xf0]
    %v1644 = vor.u32 %v1642, %v1643
    %v1646 = vperm.slane %v1644, 0
    %v1647 = vperm.slane %v1644, 1
    %v1648 = vperm.slane %v1644, 2
    %v1649 = vperm.slane %v1644, 3
    %v1650 = vperm.slane %v1644, 4
    %v1651 = vperm.slane %v1644, 5
    %v1652 = vperm.slane %v1644, 6
    %v1653 = vperm.slane %v1644, 7
    %v1662 = vmul.f32 %v594, %v1646
    %v1663 = vmul.f32 %v593, %v1647
    %v1664 = vmul.f32 %v592, %v1648
    %v1665 = vmul.f32 %v591, %v1649
    %v1666 = vmul.f32 %v590, %v1650
    %v1667 = vmul.f32 %v589, %v1651
    %v1668 = vmul.f32 %v588, %v1652
    %v1669 = vmul.f32 %v595, %v1653
    %1670 = vst [vmem:[#allocation2 + $0x600] sm:$0xff] %v1662
    %1671 = vst [vmem:[#allocation2 + $0x608] sm:$0xff] %v1663
    %1672 = vst [vmem:[#allocation2 + $0x610] sm:$0xff] %v1664
    %1673 = vst [vmem:[#allocation2 + $0x618] sm:$0xff] %v1665
    %1674 = vst [vmem:[#allocation2 + $0x620] sm:$0xff] %v1666
    %1675 = vst [vmem:[#allocation2 + $0x628] sm:$0xff] %v1667
    %1676 = vst [vmem:[#allocation2 + $0x630] sm:$0xff] %v1668
    %1677 = vst [vmem:[#allocation2 + $0x638] sm:$0xff] %v1669
    %s1678 = scalar_lea.vmem [#allocation6], 193
    %v1679 = vld [vmem:[%s1678] ss:$8 sm:$0xf]
    %v1680 = vld [vmem:[%s1678] ss:$8 sm:$0xf0]
    %v1681 = vor.u32 %v1679, %v1680
    %v1683 = vperm.slane %v1681, 0
    %v1684 = vperm.slane %v1681, 1
    %v1685 = vperm.slane %v1681, 2
    %v1686 = vperm.slane %v1681, 3
    %v1687 = vperm.slane %v1681, 4
    %v1688 = vperm.slane %v1681, 5
    %v1689 = vperm.slane %v1681, 6
    %v1690 = vperm.slane %v1681, 7
    %v1699 = vmul.f32 %v656, %v1683
    %v1700 = vmul.f32 %v655, %v1684
    %v1701 = vmul.f32 %v654, %v1685
    %v1702 = vmul.f32 %v653, %v1686
    %v1703 = vmul.f32 %v652, %v1687
    %v1704 = vmul.f32 %v651, %v1688
    %v1705 = vmul.f32 %v650, %v1689
    %v1706 = vmul.f32 %v657, %v1690
    %1707 = vst [vmem:[#allocation2 + $0x640] sm:$0xff] %v1699
    %1708 = vst [vmem:[#allocation2 + $0x648] sm:$0xff] %v1700
    %1709 = vst [vmem:[#allocation2 + $0x650] sm:$0xff] %v1701
    %1710 = vst [vmem:[#allocation2 + $0x658] sm:$0xff] %v1702
    %1711 = vst [vmem:[#allocation2 + $0x660] sm:$0xff] %v1703
    %1712 = vst [vmem:[#allocation2 + $0x668] sm:$0xff] %v1704
    %1713 = vst [vmem:[#allocation2 + $0x670] sm:$0xff] %v1705
    %1714 = vst [vmem:[#allocation2 + $0x678] sm:$0xff] %v1706
    %s1715 = scalar_lea.vmem [#allocation6], 194
    %v1716 = vld [vmem:[%s1715] ss:$8 sm:$0xf]
    %v1717 = vld [vmem:[%s1715] ss:$8 sm:$0xf0]
    %v1718 = vor.u32 %v1716, %v1717
    %v1720 = vperm.slane %v1718, 0
    %v1721 = vperm.slane %v1718, 1
    %v1722 = vperm.slane %v1718, 2
    %v1723 = vperm.slane %v1718, 3
    %v1724 = vperm.slane %v1718, 4
    %v1725 = vperm.slane %v1718, 5
    %v1726 = vperm.slane %v1718, 6
    %v1727 = vperm.slane %v1718, 7
    %v1736 = vmul.f32 %v718, %v1720
    %v1737 = vmul.f32 %v717, %v1721
    %v1738 = vmul.f32 %v716, %v1722
    %v1739 = vmul.f32 %v715, %v1723
    %v1740 = vmul.f32 %v714, %v1724
    %v1741 = vmul.f32 %v713, %v1725
    %v1742 = vmul.f32 %v712, %v1726
    %v1743 = vmul.f32 %v719, %v1727
    %1744 = vst [vmem:[#allocation2 + $0x680] sm:$0xff] %v1736
    %1745 = vst [vmem:[#allocation2 + $0x688] sm:$0xff] %v1737
    %1746 = vst [vmem:[#allocation2 + $0x690] sm:$0xff] %v1738
    %1747 = vst [vmem:[#allocation2 + $0x698] sm:$0xff] %v1739
    %1748 = vst [vmem:[#allocation2 + $0x6a0] sm:$0xff] %v1740
    %1749 = vst [vmem:[#allocation2 + $0x6a8] sm:$0xff] %v1741
    %1750 = vst [vmem:[#allocation2 + $0x6b0] sm:$0xff] %v1742
    %1751 = vst [vmem:[#allocation2 + $0x6b8] sm:$0xff] %v1743
    %v1752 = vld [vmem:[%s2 + $0x8] sm:$0xff]
    %v1753 = vld [vmem:[#allocation2 + $0x400] sm:$0xff]
    %v1754 = vld [vmem:[#allocation2 + $0x408] sm:$0xff]
    %v1755 = vld [vmem:[#allocation2 + $0x410] sm:$0xff]
    %v1756 = vld [vmem:[#allocation2 + $0x418] sm:$0xff]
    %v1757 = vld [vmem:[#allocation2 + $0x420] sm:$0xff]
    %v1758 = vld [vmem:[#allocation2 + $0x428] sm:$0xff]
    %v1759 = vld [vmem:[#allocation2 + $0x430] sm:$0xff]
    %v1760 = vld [vmem:[#allocation2 + $0x438] sm:$0xff]
    %v1761 = vld [vmem:[#allocation2 + $0x440] sm:$0xff]
    %v1762 = vld [vmem:[#allocation2 + $0x448] sm:$0xff]
    %v1763 = vld [vmem:[#allocation2 + $0x450] sm:$0xff]
    %v1764 = vld [vmem:[#allocation2 + $0x458] sm:$0xff]
    %v1765 = vld [vmem:[#allocation2 + $0x460] sm:$0xff]
    %v1766 = vld [vmem:[#allocation2 + $0x468] sm:$0xff]
    %v1767 = vld [vmem:[#allocation2 + $0x470] sm:$0xff]
    %v1768 = vld [vmem:[#allocation2 + $0x478] sm:$0xff]
    %v1769 = vld [vmem:[#allocation2 + $0x480] sm:$0xff]
    %v1770 = vld [vmem:[#allocation2 + $0x488] sm:$0xff]
    %v1771 = vld [vmem:[#allocation2 + $0x490] sm:$0xff]
    %v1772 = vld [vmem:[#allocation2 + $0x498] sm:$0xff]
    %v1773 = vld [vmem:[#allocation2 + $0x4a0] sm:$0xff]
    %v1774 = vld [vmem:[#allocation2 + $0x4a8] sm:$0xff]
    %v1775 = vld [vmem:[#allocation2 + $0x4b0] sm:$0xff]
    %v1776 = vld [vmem:[#allocation2 + $0x4b8] sm:$0xff]
    %v1777 = vld [vmem:[#allocation2 + $0x4c0] sm:$0xff]
    %v1778 = vld [vmem:[#allocation2 + $0x4c8] sm:$0xff]
    %v1779 = vld [vmem:[#allocation2 + $0x4d0] sm:$0xff]
    %v1780 = vld [vmem:[#allocation2 + $0x4d8] sm:$0xff]
    %v1781 = vld [vmem:[#allocation2 + $0x4e0] sm:$0xff]
    %v1782 = vld [vmem:[#allocation2 + $0x4e8] sm:$0xff]
    %v1783 = vld [vmem:[#allocation2 + $0x4f0] sm:$0xff]
    %v1784 = vld [vmem:[#allocation2 + $0x4f8] sm:$0xff]
    %v1785 = vld [vmem:[#allocation2 + $0x500] sm:$0xff]
    %v1786 = vld [vmem:[#allocation2 + $0x508] sm:$0xff]
    %v1787 = vld [vmem:[#allocation2 + $0x510] sm:$0xff]
    %v1788 = vld [vmem:[#allocation2 + $0x518] sm:$0xff]
    %v1789 = vld [vmem:[#allocation2 + $0x520] sm:$0xff]
    %v1790 = vld [vmem:[#allocation2 + $0x528] sm:$0xff]
    %v1791 = vld [vmem:[#allocation2 + $0x530] sm:$0xff]
    %v1792 = vld [vmem:[#allocation2 + $0x538] sm:$0xff]
    %v1793 = vld [vmem:[#allocation2 + $0x540] sm:$0xff]
    %v1794 = vld [vmem:[#allocation2 + $0x548] sm:$0xff]
    %v1795 = vld [vmem:[#allocation2 + $0x550] sm:$0xff]
    %v1796 = vld [vmem:[#allocation2 + $0x558] sm:$0xff]
    %v1797 = vld [vmem:[#allocation2 + $0x560] sm:$0xff]
    %v1798 = vld [vmem:[#allocation2 + $0x568] sm:$0xff]
    %v1799 = vld [vmem:[#allocation2 + $0x570] sm:$0xff]
    %v1800 = vld [vmem:[#allocation2 + $0x578] sm:$0xff]
    %v1801 = vld [vmem:[#allocation2 + $0x580] sm:$0xff]
    %v1802 = vld [vmem:[#allocation2 + $0x588] sm:$0xff]
    %v1803 = vld [vmem:[#allocation2 + $0x590] sm:$0xff]
    %v1804 = vld [vmem:[#allocation2 + $0x598] sm:$0xff]
    %v1805 = vld [vmem:[#allocation2 + $0x5a0] sm:$0xff]
    %v1806 = vld [vmem:[#allocation2 + $0x5a8] sm:$0xff]
    %v1807 = vld [vmem:[#allocation2 + $0x5b0] sm:$0xff]
    %v1808 = vld [vmem:[#allocation2 + $0x5b8] sm:$0xff]
    %v1809 = vld [vmem:[#allocation2 + $0x5c0] sm:$0xff]
    %v1810 = vld [vmem:[#allocation2 + $0x5c8] sm:$0xff]
    %v1811 = vld [vmem:[#allocation2 + $0x5d0] sm:$0xff]
    %v1812 = vld [vmem:[#allocation2 + $0x5d8] sm:$0xff]
    %v1813 = vld [vmem:[#allocation2 + $0x5e0] sm:$0xff]
    %v1814 = vld [vmem:[#allocation2 + $0x5e8] sm:$0xff]
    %v1815 = vld [vmem:[#allocation2 + $0x5f0] sm:$0xff]
    %v1816 = vld [vmem:[#allocation2 + $0x5f8] sm:$0xff]
    %v1817 = vld [vmem:[#allocation2 + $0x600] sm:$0xff]
    %v1818 = vld [vmem:[#allocation2 + $0x608] sm:$0xff]
    %v1819 = vld [vmem:[#allocation2 + $0x610] sm:$0xff]
    %v1820 = vld [vmem:[#allocation2 + $0x618] sm:$0xff]
    %v1821 = vld [vmem:[#allocation2 + $0x620] sm:$0xff]
    %v1822 = vld [vmem:[#allocation2 + $0x628] sm:$0xff]
    %v1823 = vld [vmem:[#allocation2 + $0x630] sm:$0xff]
    %v1824 = vld [vmem:[#allocation2 + $0x638] sm:$0xff]
    %v1825 = vld [vmem:[#allocation2 + $0x640] sm:$0xff]
    %v1826 = vld [vmem:[#allocation2 + $0x648] sm:$0xff]
    %v1827 = vld [vmem:[#allocation2 + $0x650] sm:$0xff]
    %v1828 = vld [vmem:[#allocation2 + $0x658] sm:$0xff]
    %v1829 = vld [vmem:[#allocation2 + $0x660] sm:$0xff]
    %v1830 = vld [vmem:[#allocation2 + $0x668] sm:$0xff]
    %v1831 = vld [vmem:[#allocation2 + $0x670] sm:$0xff]
    %v1832 = vld [vmem:[#allocation2 + $0x678] sm:$0xff]
    %v1833 = vld [vmem:[#allocation2 + $0x680] sm:$0xff]
    %v1834 = vld [vmem:[#allocation2 + $0x688] sm:$0xff]
    %v1835 = vld [vmem:[#allocation2 + $0x690] sm:$0xff]
    %v1836 = vld [vmem:[#allocation2 + $0x698] sm:$0xff]
    %v1837 = vld [vmem:[#allocation2 + $0x6a0] sm:$0xff]
    %v1838 = vld [vmem:[#allocation2 + $0x6a8] sm:$0xff]
    %v1839 = vld [vmem:[#allocation2 + $0x6b0] sm:$0xff]
    %v1840 = vld [vmem:[#allocation2 + $0x6b8] sm:$0xff]
    %v1841 = vld [vmem:[#allocation2 + $0x6c0] sm:$0xff]
    %v1842 = vld [vmem:[#allocation2 + $0x6c8] sm:$0xff]
    %v1843 = vld [vmem:[#allocation2 + $0x6d0] sm:$0xff]
    %v1844 = vld [vmem:[#allocation2 + $0x6d8] sm:$0xff]
    %v1845 = vld [vmem:[#allocation2 + $0x6e0] sm:$0xff]
    %v1846 = vld [vmem:[#allocation2 + $0x6e8] sm:$0xff]
    %v1847 = vld [vmem:[#allocation2 + $0x6f0] sm:$0xff]
    %v1848 = vld [vmem:[#allocation2 + $0x6f8] sm:$0xff]
    %v1849 = vld [vmem:[#allocation2 + $0x700] sm:$0xff]
    %v1850 = vld [vmem:[#allocation2 + $0x708] sm:$0xff]
    %v1851 = vld [vmem:[#allocation2 + $0x710] sm:$0xff]
    %v1852 = vld [vmem:[#allocation2 + $0x718] sm:$0xff]
    %v1853 = vld [vmem:[#allocation2 + $0x720] sm:$0xff]
    %v1854 = vld [vmem:[#allocation2 + $0x728] sm:$0xff]
    %v1855 = vld [vmem:[#allocation2 + $0x730] sm:$0xff]
    %v1856 = vld [vmem:[#allocation2 + $0x738] sm:$0xff]
    %v1857 = vld [vmem:[#allocation2 + $0x740] sm:$0xff]
    %v1858 = vld [vmem:[#allocation2 + $0x748] sm:$0xff]
    %v1859 = vld [vmem:[#allocation2 + $0x750] sm:$0xff]
    %v1860 = vld [vmem:[#allocation2 + $0x758] sm:$0xff]
    %v1861 = vld [vmem:[#allocation2 + $0x760] sm:$0xff]
    %v1862 = vld [vmem:[#allocation2 + $0x768] sm:$0xff]
    %v1863 = vld [vmem:[#allocation2 + $0x770] sm:$0xff]
    %v1864 = vld [vmem:[#allocation2 + $0x778] sm:$0xff]
    %v1865 = vld [vmem:[#allocation2 + $0x780] sm:$0xff]
    %v1866 = vld [vmem:[#allocation2 + $0x788] sm:$0xff]
    %v1867 = vld [vmem:[#allocation2 + $0x790] sm:$0xff]
    %v1868 = vld [vmem:[#allocation2 + $0x798] sm:$0xff]
    %v1869 = vld [vmem:[#allocation2 + $0x7a0] sm:$0xff]
    %v1870 = vld [vmem:[#allocation2 + $0x7a8] sm:$0xff]
    %v1871 = vld [vmem:[#allocation2 + $0x7b0] sm:$0xff]
    %v1872 = vld [vmem:[#allocation2 + $0x7b8] sm:$0xff]
    %v1873 = vld [vmem:[#allocation2 + $0x7c0] sm:$0xff]
    %v1874 = vld [vmem:[#allocation2 + $0x7c8] sm:$0xff]
    %v1875 = vld [vmem:[#allocation2 + $0x7d0] sm:$0xff]
    %v1876 = vld [vmem:[#allocation2 + $0x7d8] sm:$0xff]
    %v1877 = vld [vmem:[#allocation2 + $0x7e0] sm:$0xff]
    %v1878 = vld [vmem:[#allocation2 + $0x7e8] sm:$0xff]
    %v1879 = vld [vmem:[#allocation2 + $0x7f0] sm:$0xff]
    %v1880 = vld [vmem:[#allocation2 + $0x7f8] sm:$0xff]
    %1881 = vmatpush.msra.mxu0 %v1873
    %1882 = vmatpush.msra.mxu0 %v1865
    %1883 = vmatpush.msra.mxu0 %v1857
    %1884 = vmatpush.msra.mxu0 %v1849
    %1885 = vmatpush.msra.mxu0 %v1841
    %1886 = vmatpush.msra.mxu0 %v1833
    %1887 = vmatpush.msra.mxu0 %v1825
    %1888 = vmatpush.msra.mxu0 %v1817
    %1889 = vmatpush.msra.mxu0 %v1809
    %1890 = vmatpush.msra.mxu0 %v1801
    %1891 = vmatpush.msra.mxu0 %v1793
    %1892 = vmatpush.msra.mxu0 %v1785
    %1893 = vmatpush.msra.mxu0 %v1777
    %1894 = vmatpush.msra.mxu0 %v1769
    %1895 = vmatpush.msra.mxu0 %v1761
    %1896 = vmatpush.msra.mxu0 %v1753
    %1897 = vmatmul.f32.gmra.mxu0 %v1752
    %v1898 = vpop.f32.mrf.mxu0
    %v1899 = vadd.f32 0.0, %v1898
    %1900 = vdwg.mxu0
    %1901 = vmatpush.msra.mxu0 %v1874
    %1902 = vmatpush.msra.mxu0 %v1866
    %1903 = vmatpush.msra.mxu0 %v1858
    %1904 = vmatpush.msra.mxu0 %v1850
    %1905 = vmatpush.msra.mxu0 %v1842
    %1906 = vmatpush.msra.mxu0 %v1834
    %1907 = vmatpush.msra.mxu0 %v1826
    %1908 = vmatpush.msra.mxu0 %v1818
    %1909 = vmatpush.msra.mxu0 %v1810
    %1910 = vmatpush.msra.mxu0 %v1802
    %1911 = vmatpush.msra.mxu0 %v1794
    %1912 = vmatpush.msra.mxu0 %v1786
    %1913 = vmatpush.msra.mxu0 %v1778
    %1914 = vmatpush.msra.mxu0 %v1770
    %1915 = vmatpush.msra.mxu0 %v1762
    %1916 = vmatpush.msra.mxu0 %v1754
    %1917 = vmatmul.f32.gmra.mxu0 %v1752
    %v1918 = vpop.f32.mrf.mxu0
    %v1919 = vadd.f32 0.0, %v1918
    %1920 = vdwg.mxu0
    %1921 = vmatpush.msra.mxu0 %v1875
    %1922 = vmatpush.msra.mxu0 %v1867
    %1923 = vmatpush.msra.mxu0 %v1859
    %1924 = vmatpush.msra.mxu0 %v1851
    %1925 = vmatpush.msra.mxu0 %v1843
    %1926 = vmatpush.msra.mxu0 %v1835
    %1927 = vmatpush.msra.mxu0 %v1827
    %1928 = vmatpush.msra.mxu0 %v1819
    %1929 = vmatpush.msra.mxu0 %v1811
    %1930 = vmatpush.msra.mxu0 %v1803
    %1931 = vmatpush.msra.mxu0 %v1795
    %1932 = vmatpush.msra.mxu0 %v1787
    %1933 = vmatpush.msra.mxu0 %v1779
    %1934 = vmatpush.msra.mxu0 %v1771
    %1935 = vmatpush.msra.mxu0 %v1763
    %1936 = vmatpush.msra.mxu0 %v1755
    %1937 = vmatmul.f32.gmra.mxu0 %v1752
    %v1938 = vpop.f32.mrf.mxu0
    %v1939 = vadd.f32 0.0, %v1938
    %1940 = vdwg.mxu0
    %1941 = vmatpush.msra.mxu0 %v1876
    %1942 = vmatpush.msra.mxu0 %v1868
    %1943 = vmatpush.msra.mxu0 %v1860
    %1944 = vmatpush.msra.mxu0 %v1852
    %1945 = vmatpush.msra.mxu0 %v1844
    %1946 = vmatpush.msra.mxu0 %v1836
    %1947 = vmatpush.msra.mxu0 %v1828
    %1948 = vmatpush.msra.mxu0 %v1820
    %1949 = vmatpush.msra.mxu0 %v1812
    %1950 = vmatpush.msra.mxu0 %v1804
    %1951 = vmatpush.msra.mxu0 %v1796
    %1952 = vmatpush.msra.mxu0 %v1788
    %1953 = vmatpush.msra.mxu0 %v1780
    %1954 = vmatpush.msra.mxu0 %v1772
    %1955 = vmatpush.msra.mxu0 %v1764
    %1956 = vmatpush.msra.mxu0 %v1756
    %1957 = vmatmul.f32.gmra.mxu0 %v1752
    %v1958 = vpop.f32.mrf.mxu0
    %v1959 = vadd.f32 0.0, %v1958
    %1960 = vdwg.mxu0
    %1961 = vmatpush.msra.mxu0 %v1877
    %1962 = vmatpush.msra.mxu0 %v1869
    %1963 = vmatpush.msra.mxu0 %v1861
    %1964 = vmatpush.msra.mxu0 %v1853
    %1965 = vmatpush.msra.mxu0 %v1845
    %1966 = vmatpush.msra.mxu0 %v1837
    %1967 = vmatpush.msra.mxu0 %v1829
    %1968 = vmatpush.msra.mxu0 %v1821
    %1969 = vmatpush.msra.mxu0 %v1813
    %1970 = vmatpush.msra.mxu0 %v1805
    %1971 = vmatpush.msra.mxu0 %v1797
    %1972 = vmatpush.msra.mxu0 %v1789
    %1973 = vmatpush.msra.mxu0 %v1781
    %1974 = vmatpush.msra.mxu0 %v1773
    %1975 = vmatpush.msra.mxu0 %v1765
    %1976 = vmatpush.msra.mxu0 %v1757
    %1977 = vmatmul.f32.gmra.mxu0 %v1752
    %v1978 = vpop.f32.mrf.mxu0
    %v1979 = vadd.f32 0.0, %v1978
    %1980 = vdwg.mxu0
    %1981 = vmatpush.msra.mxu0 %v1878
    %1982 = vmatpush.msra.mxu0 %v1870
    %1983 = vmatpush.msra.mxu0 %v1862
    %1984 = vmatpush.msra.mxu0 %v1854
    %1985 = vmatpush.msra.mxu0 %v1846
    %1986 = vmatpush.msra.mxu0 %v1838
    %1987 = vmatpush.msra.mxu0 %v1830
    %1988 = vmatpush.msra.mxu0 %v1822
    %1989 = vmatpush.msra.mxu0 %v1814
    %1990 = vmatpush.msra.mxu0 %v1806
    %1991 = vmatpush.msra.mxu0 %v1798
    %1992 = vmatpush.msra.mxu0 %v1790
    %1993 = vmatpush.msra.mxu0 %v1782
    %1994 = vmatpush.msra.mxu0 %v1774
    %1995 = vmatpush.msra.mxu0 %v1766
    %1996 = vmatpush.msra.mxu0 %v1758
    %1997 = vmatmul.f32.gmra.mxu0 %v1752
    %v1998 = vpop.f32.mrf.mxu0
    %v1999 = vadd.f32 0.0, %v1998
    %2000 = vdwg.mxu0
    %2001 = vmatpush.msra.mxu0 %v1879
    %2002 = vmatpush.msra.mxu0 %v1871
    %2003 = vmatpush.msra.mxu0 %v1863
    %2004 = vmatpush.msra.mxu0 %v1855
    %2005 = vmatpush.msra.mxu0 %v1847
    %2006 = vmatpush.msra.mxu0 %v1839
    %2007 = vmatpush.msra.mxu0 %v1831
    %2008 = vmatpush.msra.mxu0 %v1823
    %2009 = vmatpush.msra.mxu0 %v1815
    %2010 = vmatpush.msra.mxu0 %v1807
    %2011 = vmatpush.msra.mxu0 %v1799
    %2012 = vmatpush.msra.mxu0 %v1791
    %2013 = vmatpush.msra.mxu0 %v1783
    %2014 = vmatpush.msra.mxu0 %v1775
    %2015 = vmatpush.msra.mxu0 %v1767
    %2016 = vmatpush.msra.mxu0 %v1759
    %2017 = vmatmul.f32.gmra.mxu0 %v1752
    %v2018 = vpop.f32.mrf.mxu0
    %v2019 = vadd.f32 0.0, %v2018
    %2020 = vdwg.mxu0
    %2021 = vmatpush.msra.mxu0 %v1880
    %2022 = vmatpush.msra.mxu0 %v1872
    %2023 = vmatpush.msra.mxu0 %v1864
    %2024 = vmatpush.msra.mxu0 %v1856
    %2025 = vmatpush.msra.mxu0 %v1848
    %2026 = vmatpush.msra.mxu0 %v1840
    %2027 = vmatpush.msra.mxu0 %v1832
    %2028 = vmatpush.msra.mxu0 %v1824
    %2029 = vmatpush.msra.mxu0 %v1816
    %2030 = vmatpush.msra.mxu0 %v1808
    %2031 = vmatpush.msra.mxu0 %v1800
    %2032 = vmatpush.msra.mxu0 %v1792
    %2033 = vmatpush.msra.mxu0 %v1784
    %2034 = vmatpush.msra.mxu0 %v1776
    %2035 = vmatpush.msra.mxu0 %v1768
    %2036 = vmatpush.msra.mxu0 %v1760
    %2037 = vmatmul.f32.gmra.mxu0 %v1752
    %v2038 = vpop.f32.mrf.mxu0
    %v2039 = vadd.f32 0.0, %v2038
    %2040 = vdwg.mxu0
    %2041 = vmatpush.msra.mxu0 %v1287
    %2042 = vmatpush.msra.mxu0 %v1279
    %2043 = vmatpush.msra.mxu0 %v1271
    %2044 = vmatpush.msra.mxu0 %v1263
    %2045 = vmatpush.msra.mxu0 %v1255
    %2046 = vmatpush.msra.mxu0 %v1247
    %2047 = vmatpush.msra.mxu0 %v1239
    %2048 = vmatpush.msra.mxu0 %v1231
    %2049 = vmatpush.msra.mxu0 %v1223
    %2050 = vmatpush.msra.mxu0 %v1215
    %2051 = vmatpush.msra.mxu0 %v1207
    %2052 = vmatpush.msra.mxu0 %v1199
    %2053 = vmatpush.msra.mxu0 %v1191
    %2054 = vmatpush.msra.mxu0 %v1183
    %2055 = vmatpush.msra.mxu0 %v1175
    %2056 = vmatpush.msra.mxu0 %v1167
    %2057 = vmatmul.f32.gmra.mxu0 %v1166
    %v2058 = vpop.f32.mrf.mxu0
    %v2059 = vadd.f32 %v1899, %v2058
    %2060 = vdwg.mxu0
    %2061 = vmatpush.msra.mxu0 %v1288
    %2062 = vmatpush.msra.mxu0 %v1280
    %2063 = vmatpush.msra.mxu0 %v1272
    %2064 = vmatpush.msra.mxu0 %v1264
    %2065 = vmatpush.msra.mxu0 %v1256
    %2066 = vmatpush.msra.mxu0 %v1248
    %2067 = vmatpush.msra.mxu0 %v1240
    %2068 = vmatpush.msra.mxu0 %v1232
    %2069 = vmatpush.msra.mxu0 %v1224
    %2070 = vmatpush.msra.mxu0 %v1216
    %2071 = vmatpush.msra.mxu0 %v1208
    %2072 = vmatpush.msra.mxu0 %v1200
    %2073 = vmatpush.msra.mxu0 %v1192
    %2074 = vmatpush.msra.mxu0 %v1184
    %2075 = vmatpush.msra.mxu0 %v1176
    %2076 = vmatpush.msra.mxu0 %v1168
    %2077 = vmatmul.f32.gmra.mxu0 %v1166
    %v2078 = vpop.f32.mrf.mxu0
    %v2079 = vadd.f32 %v1919, %v2078
    %2080 = vdwg.mxu0
    %2081 = vmatpush.msra.mxu0 %v1289
    %2082 = vmatpush.msra.mxu0 %v1281
    %2083 = vmatpush.msra.mxu0 %v1273
    %2084 = vmatpush.msra.mxu0 %v1265
    %2085 = vmatpush.msra.mxu0 %v1257
    %2086 = vmatpush.msra.mxu0 %v1249
    %2087 = vmatpush.msra.mxu0 %v1241
    %2088 = vmatpush.msra.mxu0 %v1233
    %2089 = vmatpush.msra.mxu0 %v1225
    %2090 = vmatpush.msra.mxu0 %v1217
    %2091 = vmatpush.msra.mxu0 %v1209
    %2092 = vmatpush.msra.mxu0 %v1201
    %2093 = vmatpush.msra.mxu0 %v1193
    %2094 = vmatpush.msra.mxu0 %v1185
    %2095 = vmatpush.msra.mxu0 %v1177
    %2096 = vmatpush.msra.mxu0 %v1169
    %2097 = vmatmul.f32.gmra.mxu0 %v1166
    %v2098 = vpop.f32.mrf.mxu0
    %v2099 = vadd.f32 %v1939, %v2098
    %2100 = vdwg.mxu0
    %2101 = vmatpush.msra.mxu0 %v1290
    %2102 = vmatpush.msra.mxu0 %v1282
    %2103 = vmatpush.msra.mxu0 %v1274
    %2104 = vmatpush.msra.mxu0 %v1266
    %2105 = vmatpush.msra.mxu0 %v1258
    %2106 = vmatpush.msra.mxu0 %v1250
    %2107 = vmatpush.msra.mxu0 %v1242
    %2108 = vmatpush.msra.mxu0 %v1234
    %2109 = vmatpush.msra.mxu0 %v1226
    %2110 = vmatpush.msra.mxu0 %v1218
    %2111 = vmatpush.msra.mxu0 %v1210
    %2112 = vmatpush.msra.mxu0 %v1202
    %2113 = vmatpush.msra.mxu0 %v1194
    %2114 = vmatpush.msra.mxu0 %v1186
    %2115 = vmatpush.msra.mxu0 %v1178
    %2116 = vmatpush.msra.mxu0 %v1170
    %2117 = vmatmul.f32.gmra.mxu0 %v1166
    %v2118 = vpop.f32.mrf.mxu0
    %v2119 = vadd.f32 %v1959, %v2118
    %2120 = vdwg.mxu0
    %2121 = vmatpush.msra.mxu0 %v1291
    %2122 = vmatpush.msra.mxu0 %v1283
    %2123 = vmatpush.msra.mxu0 %v1275
    %2124 = vmatpush.msra.mxu0 %v1267
    %2125 = vmatpush.msra.mxu0 %v1259
    %2126 = vmatpush.msra.mxu0 %v1251
    %2127 = vmatpush.msra.mxu0 %v1243
    %2128 = vmatpush.msra.mxu0 %v1235
    %2129 = vmatpush.msra.mxu0 %v1227
    %2130 = vmatpush.msra.mxu0 %v1219
    %2131 = vmatpush.msra.mxu0 %v1211
    %2132 = vmatpush.msra.mxu0 %v1203
    %2133 = vmatpush.msra.mxu0 %v1195
    %2134 = vmatpush.msra.mxu0 %v1187
    %2135 = vmatpush.msra.mxu0 %v1179
    %2136 = vmatpush.msra.mxu0 %v1171
    %2137 = vmatmul.f32.gmra.mxu0 %v1166
    %v2138 = vpop.f32.mrf.mxu0
    %v2139 = vadd.f32 %v1979, %v2138
    %2140 = vdwg.mxu0
    %2141 = vmatpush.msra.mxu0 %v1292
    %2142 = vmatpush.msra.mxu0 %v1284
    %2143 = vmatpush.msra.mxu0 %v1276
    %2144 = vmatpush.msra.mxu0 %v1268
    %2145 = vmatpush.msra.mxu0 %v1260
    %2146 = vmatpush.msra.mxu0 %v1252
    %2147 = vmatpush.msra.mxu0 %v1244
    %2148 = vmatpush.msra.mxu0 %v1236
    %2149 = vmatpush.msra.mxu0 %v1228
    %2150 = vmatpush.msra.mxu0 %v1220
    %2151 = vmatpush.msra.mxu0 %v1212
    %2152 = vmatpush.msra.mxu0 %v1204
    %2153 = vmatpush.msra.mxu0 %v1196
    %2154 = vmatpush.msra.mxu0 %v1188
    %2155 = vmatpush.msra.mxu0 %v1180
    %2156 = vmatpush.msra.mxu0 %v1172
    %2157 = vmatmul.f32.gmra.mxu0 %v1166
    %v2158 = vpop.f32.mrf.mxu0
    %v2159 = vadd.f32 %v1999, %v2158
    %2160 = vdwg.mxu0
    %2161 = vmatpush.msra.mxu0 %v1293
    %2162 = vmatpush.msra.mxu0 %v1285
    %2163 = vmatpush.msra.mxu0 %v1277
    %2164 = vmatpush.msra.mxu0 %v1269
    %2165 = vmatpush.msra.mxu0 %v1261
    %2166 = vmatpush.msra.mxu0 %v1253
    %2167 = vmatpush.msra.mxu0 %v1245
    %2168 = vmatpush.msra.mxu0 %v1237
    %2169 = vmatpush.msra.mxu0 %v1229
    %2170 = vmatpush.msra.mxu0 %v1221
    %2171 = vmatpush.msra.mxu0 %v1213
    %2172 = vmatpush.msra.mxu0 %v1205
    %2173 = vmatpush.msra.mxu0 %v1197
    %2174 = vmatpush.msra.mxu0 %v1189
    %2175 = vmatpush.msra.mxu0 %v1181
    %2176 = vmatpush.msra.mxu0 %v1173
    %2177 = vmatmul.f32.gmra.mxu0 %v1166
    %v2178 = vpop.f32.mrf.mxu0
    %v2179 = vadd.f32 %v2019, %v2178
    %2180 = vdwg.mxu0
    %2181 = vmatpush.msra.mxu0 %v1294
    %2182 = vmatpush.msra.mxu0 %v1286
    %2183 = vmatpush.msra.mxu0 %v1278
    %2184 = vmatpush.msra.mxu0 %v1270
    %2185 = vmatpush.msra.mxu0 %v1262
    %2186 = vmatpush.msra.mxu0 %v1254
    %2187 = vmatpush.msra.mxu0 %v1246
    %2188 = vmatpush.msra.mxu0 %v1238
    %2189 = vmatpush.msra.mxu0 %v1230
    %2190 = vmatpush.msra.mxu0 %v1222
    %2191 = vmatpush.msra.mxu0 %v1214
    %2192 = vmatpush.msra.mxu0 %v1206
    %2193 = vmatpush.msra.mxu0 %v1198
    %2194 = vmatpush.msra.mxu0 %v1190
    %2195 = vmatpush.msra.mxu0 %v1182
    %2196 = vmatpush.msra.mxu0 %v1174
    %2197 = vmatmul.f32.gmra.mxu0 %v1166
    %v2198 = vpop.f32.mrf.mxu0
    %v2199 = vadd.f32 %v2039, %v2198
    %2200 = vdwg.mxu0
    %v2201 = vld [vmem:[%s3] sm:$0xff]
    %2203 = vset.pattern.permute.xlu0 0
    %2204 = vperm.xlu0 %2203, %v2201
    %v2205 = vpop.permute.xlu0 %2204
    %v2207 = vadd.f32 %v2059, %v2205
    %v2208 = vadd.f32 %v2079, %v2205
    %v2209 = vadd.f32 %v2099, %v2205
    %v2210 = vadd.f32 %v2119, %v2205
    %v2211 = vadd.f32 %v2139, %v2205
    %v2212 = vadd.f32 %v2159, %v2205
    %v2213 = vadd.f32 %v2179, %v2205
    %v2214 = vadd.f32 %v2199, %v2205
    %v2215 = vadd.f32 %v2207, %v2208
    %v2216 = vadd.f32 %v2215, %v2209
    %v2217 = vadd.f32 %v2216, %v2210
    %v2218 = vadd.f32 %v2217, %v2211
    %v2219 = vadd.f32 %v2218, %v2212
    %v2220 = vadd.f32 %v2219, %v2213
    %v2221 = vadd.f32 %v2220, %v2214
    %2222 = vadd.xlane.f32.xlu0 %v2221
    %v2223 = vpop.xlane.xlu0 %2222
    %v2224 = vmul.f32 %v2223, 0.0009765625
    %v2225 = vsub.f32 %v2207, %v2224
    %v2226 = vsub.f32 %v2208, %v2224
    %v2227 = vsub.f32 %v2209, %v2224
    %v2228 = vsub.f32 %v2210, %v2224
    %v2229 = vsub.f32 %v2211, %v2224
    %v2230 = vsub.f32 %v2212, %v2224
    %v2231 = vsub.f32 %v2213, %v2224
    %v2232 = vsub.f32 %v2214, %v2224
    %v2233 = vmul.f32 %v2225, %v2225
    %v2234 = vmul.f32 %v2226, %v2226
    %v2235 = vmul.f32 %v2227, %v2227
    %v2236 = vmul.f32 %v2228, %v2228
    %v2237 = vmul.f32 %v2229, %v2229
    %v2238 = vmul.f32 %v2230, %v2230
    %v2239 = vmul.f32 %v2231, %v2231
    %v2240 = vmul.f32 %v2232, %v2232
    %v2241 = vadd.f32 %v2233, %v2234
    %v2242 = vadd.f32 %v2241, %v2235
    %v2243 = vadd.f32 %v2242, %v2236
    %v2244 = vadd.f32 %v2243, %v2237
    %v2245 = vadd.f32 %v2244, %v2238
    %v2246 = vadd.f32 %v2245, %v2239
    %v2247 = vadd.f32 %v2246, %v2240
    %2248 = vadd.xlane.f32.xlu0 %v2247
    %v2249 = vpop.xlane.xlu0 %2248
    %v2250 = vmul.f32 %v2249, 0.0009765625
    %v2251 = vadd.f32 %v2250, 1e-05
    %v2252 = vrsqrt.pop %v2251
    %v2253 = vmul.f32 %v2252, %v2251
    %v2254 = vmul.f32 %v2253, %v2252
    %v2255 = vmul.f32 0.5, %v2254
    %v2256 = vsub.f32 1.5, %v2255
    %v2257 = vmul.f32 %v2252, %v2256
    %vm2258 = vweird.f32 %v2251
    %vm2259 = vweird.f32 %v2252
    %vm2260 = vmor %vm2258, %vm2259
    %v2261 = vsel %vm2260, %v2252, %v2257
    %v2262 = vld [vmem:[%s8] sm:$0xff]
    %v2263 = vmul.f32 %v2261, %v2262
    %2265 = vset.pattern.permute.xlu0 0
    %2266 = vperm.xlu0 %2265, %v2263
    %v2267 = vpop.permute.xlu0 %2266
    %v2269 = vmul.f32 %v2225, %v2267
    %v2270 = vmul.f32 %v2226, %v2267
    %v2271 = vmul.f32 %v2227, %v2267
    %v2272 = vmul.f32 %v2228, %v2267
    %v2273 = vmul.f32 %v2229, %v2267
    %v2274 = vmul.f32 %v2230, %v2267
    %v2275 = vmul.f32 %v2231, %v2267
    %v2276 = vmul.f32 %v2232, %v2267
    %v2277 = vld [vmem:[%s9] sm:$0xff]
    %2279 = vset.pattern.permute.xlu0 0
    %2280 = vperm.xlu0 %2279, %v2277
    %v2281 = vpop.permute.xlu0 %2280
    %v2283 = vadd.f32 %v2269, %v2281
    %v2284 = vadd.f32 %v2270, %v2281
    %v2285 = vadd.f32 %v2271, %v2281
    %v2286 = vadd.f32 %v2272, %v2281
    %v2287 = vadd.f32 %v2273, %v2281
    %v2288 = vadd.f32 %v2274, %v2281
    %v2289 = vadd.f32 %v2275, %v2281
    %v2290 = vadd.f32 %v2276, %v2281
    %v2291 = vmax.f32 %v2283, 0.0
    %v2292 = vmax.f32 %v2284, 0.0
    %v2293 = vmax.f32 %v2285, 0.0
    %v2294 = vmax.f32 %v2286, 0.0
    %v2295 = vmax.f32 %v2287, 0.0
    %v2296 = vmax.f32 %v2288, 0.0
    %v2297 = vmax.f32 %v2289, 0.0
    %v2298 = vmax.f32 %v2290, 0.0
    %2299 = vrot.lane.b32.xlu0 %v2291, 73
    %v2300 = vpop.permute.xlu0 %2299
    %2301 = vrot.lane.b32.xlu0 %v2292, 73
    %v2302 = vpop.permute.xlu0 %2301
    %2303 = vrot.lane.b32.xlu0 %v2293, 73
    %v2304 = vpop.permute.xlu0 %2303
    %2305 = vrot.lane.b32.xlu0 %v2294, 73
    %v2306 = vpop.permute.xlu0 %2305
    %2307 = vrot.lane.b32.xlu0 %v2295, 73
    %v2308 = vpop.permute.xlu0 %2307
    %2309 = vrot.lane.b32.xlu0 %v2296, 73
    %v2310 = vpop.permute.xlu0 %2309
    %2311 = vrot.lane.b32.xlu0 %v2297, 73
    %v2312 = vpop.permute.xlu0 %2311
    %2313 = vrot.lane.b32.xlu0 %v2298, 73
    %v2314 = vpop.permute.xlu0 %2313
    %v2315 = vsel %vm216, %v2312, %v2314
    %v2316 = vsel %vm216, %v2310, %v2312
    %v2317 = vsel %vm216, %v2308, %v2310
    %v2318 = vsel %vm216, %v2306, %v2308
    %v2319 = vsel %vm216, %v2304, %v2306
    %v2320 = vsel %vm216, %v2302, %v2304
    %v2321 = vsel %vm216, %v2300, %v2302
    %v2322 = vsel %vm216, %v2314, %v2300
    %v2323 = vld [vmem:[#allocation6] ss:$8 sm:$0xf]
    %v2324 = vld [vmem:[#allocation6] ss:$8 sm:$0xf0]
    %v2325 = vor.u32 %v2323, %v2324
    %v2327 = vperm.slane %v2325, 0
    %v2328 = vperm.slane %v2325, 1
    %v2329 = vperm.slane %v2325, 2
    %v2330 = vperm.slane %v2325, 3
    %v2331 = vperm.slane %v2325, 4
    %v2332 = vperm.slane %v2325, 5
    %v2333 = vperm.slane %v2325, 6
    %v2334 = vperm.slane %v2325, 7
    %v2343 = vmul.f32 %v2322, %v2327
    %v2344 = vmul.f32 %v2321, %v2328
    %v2345 = vmul.f32 %v2320, %v2329
    %v2346 = vmul.f32 %v2319, %v2330
    %v2347 = vmul.f32 %v2318, %v2331
    %v2348 = vmul.f32 %v2317, %v2332
    %v2349 = vmul.f32 %v2316, %v2333
    %v2350 = vmul.f32 %v2315, %v2334
    %2351 = vst [vmem:[#allocation2] sm:$0xff] %v2343
    %2352 = vst [vmem:[#allocation2 + $0x8] sm:$0xff] %v2344
    %2353 = vst [vmem:[#allocation2 + $0x10] sm:$0xff] %v2345
    %2354 = vst [vmem:[#allocation2 + $0x18] sm:$0xff] %v2346
    %2355 = vst [vmem:[#allocation2 + $0x20] sm:$0xff] %v2347
    %2356 = vst [vmem:[#allocation2 + $0x28] sm:$0xff] %v2348
    %2357 = vst [vmem:[#allocation2 + $0x30] sm:$0xff] %v2349
    %2358 = vst [vmem:[#allocation2 + $0x38] sm:$0xff] %v2350
    %2359 = vrot.lane.b32.xlu0 %v2291, 72
    %v2360 = vpop.permute.xlu0 %2359
    %2361 = vrot.lane.b32.xlu0 %v2292, 72
    %v2362 = vpop.permute.xlu0 %2361
    %2363 = vrot.lane.b32.xlu0 %v2293, 72
    %v2364 = vpop.permute.xlu0 %2363
    %2365 = vrot.lane.b32.xlu0 %v2294, 72
    %v2366 = vpop.permute.xlu0 %2365
    %2367 = vrot.lane.b32.xlu0 %v2295, 72
    %v2368 = vpop.permute.xlu0 %2367
    %2369 = vrot.lane.b32.xlu0 %v2296, 72
    %v2370 = vpop.permute.xlu0 %2369
    %2371 = vrot.lane.b32.xlu0 %v2297, 72
    %v2372 = vpop.permute.xlu0 %2371
    %2373 = vrot.lane.b32.xlu0 %v2298, 72
    %v2374 = vpop.permute.xlu0 %2373
    %v2375 = vsel %vm277, %v2372, %v2374
    %v2376 = vsel %vm277, %v2370, %v2372
    %v2377 = vsel %vm277, %v2368, %v2370
    %v2378 = vsel %vm277, %v2366, %v2368
    %v2379 = vsel %vm277, %v2364, %v2366
    %v2380 = vsel %vm277, %v2362, %v2364
    %v2381 = vsel %vm277, %v2360, %v2362
    %v2382 = vsel %vm277, %v2374, %v2360
    %v2383 = vld [vmem:[%s286] ss:$8 sm:$0xf]
    %v2384 = vld [vmem:[%s286] ss:$8 sm:$0xf0]
    %v2385 = vor.u32 %v2383, %v2384
    %v2387 = vperm.slane %v2385, 0
    %v2388 = vperm.slane %v2385, 1
    %v2389 = vperm.slane %v2385, 2
    %v2390 = vperm.slane %v2385, 3
    %v2391 = vperm.slane %v2385, 4
    %v2392 = vperm.slane %v2385, 5
    %v2393 = vperm.slane %v2385, 6
    %v2394 = vperm.slane %v2385, 7
    %v2403 = vmul.f32 %v2382, %v2387
    %v2404 = vmul.f32 %v2381, %v2388
    %v2405 = vmul.f32 %v2380, %v2389
    %v2406 = vmul.f32 %v2379, %v2390
    %v2407 = vmul.f32 %v2378, %v2391
    %v2408 = vmul.f32 %v2377, %v2392
    %v2409 = vmul.f32 %v2376, %v2393
    %v2410 = vmul.f32 %v2375, %v2394
    %2411 = vst [vmem:[#allocation2 + $0x40] sm:$0xff] %v2403
    %2412 = vst [vmem:[#allocation2 + $0x48] sm:$0xff] %v2404
    %2413 = vst [vmem:[#allocation2 + $0x50] sm:$0xff] %v2405
    %2414 = vst [vmem:[#allocation2 + $0x58] sm:$0xff] %v2406
    %2415 = vst [vmem:[#allocation2 + $0x60] sm:$0xff] %v2407
    %2416 = vst [vmem:[#allocation2 + $0x68] sm:$0xff] %v2408
    %2417 = vst [vmem:[#allocation2 + $0x70] sm:$0xff] %v2409
    %2418 = vst [vmem:[#allocation2 + $0x78] sm:$0xff] %v2410
    %2419 = vrot.lane.b32.xlu0 %v2291, 71
    %v2420 = vpop.permute.xlu0 %2419
    %2421 = vrot.lane.b32.xlu0 %v2292, 71
    %v2422 = vpop.permute.xlu0 %2421
    %2423 = vrot.lane.b32.xlu0 %v2293, 71
    %v2424 = vpop.permute.xlu0 %2423
    %2425 = vrot.lane.b32.xlu0 %v2294, 71
    %v2426 = vpop.permute.xlu0 %2425
    %2427 = vrot.lane.b32.xlu0 %v2295, 71
    %v2428 = vpop.permute.xlu0 %2427
    %2429 = vrot.lane.b32.xlu0 %v2296, 71
    %v2430 = vpop.permute.xlu0 %2429
    %2431 = vrot.lane.b32.xlu0 %v2297, 71
    %v2432 = vpop.permute.xlu0 %2431
    %2433 = vrot.lane.b32.xlu0 %v2298, 71
    %v2434 = vpop.permute.xlu0 %2433
    %v2435 = vsel %vm339, %v2432, %v2434
    %v2436 = vsel %vm339, %v2430, %v2432
    %v2437 = vsel %vm339, %v2428, %v2430
    %v2438 = vsel %vm339, %v2426, %v2428
    %v2439 = vsel %vm339, %v2424, %v2426
    %v2440 = vsel %vm339, %v2422, %v2424
    %v2441 = vsel %vm339, %v2420, %v2422
    %v2442 = vsel %vm339, %v2434, %v2420
    %v2443 = vld [vmem:[%s348] ss:$8 sm:$0xf]
    %v2444 = vld [vmem:[%s348] ss:$8 sm:$0xf0]
    %v2445 = vor.u32 %v2443, %v2444
    %v2447 = vperm.slane %v2445, 0
    %v2448 = vperm.slane %v2445, 1
    %v2449 = vperm.slane %v2445, 2
    %v2450 = vperm.slane %v2445, 3
    %v2451 = vperm.slane %v2445, 4
    %v2452 = vperm.slane %v2445, 5
    %v2453 = vperm.slane %v2445, 6
    %v2454 = vperm.slane %v2445, 7
    %v2463 = vmul.f32 %v2442, %v2447
    %v2464 = vmul.f32 %v2441, %v2448
    %v2465 = vmul.f32 %v2440, %v2449
    %v2466 = vmul.f32 %v2439, %v2450
    %v2467 = vmul.f32 %v2438, %v2451
    %v2468 = vmul.f32 %v2437, %v2452
    %v2469 = vmul.f32 %v2436, %v2453
    %v2470 = vmul.f32 %v2435, %v2454
    %2471 = vst [vmem:[#allocation2 + $0x80] sm:$0xff] %v2463
    %2472 = vst [vmem:[#allocation2 + $0x88] sm:$0xff] %v2464
    %2473 = vst [vmem:[#allocation2 + $0x90] sm:$0xff] %v2465
    %2474 = vst [vmem:[#allocation2 + $0x98] sm:$0xff] %v2466
    %2475 = vst [vmem:[#allocation2 + $0xa0] sm:$0xff] %v2467
    %2476 = vst [vmem:[#allocation2 + $0xa8] sm:$0xff] %v2468
    %2477 = vst [vmem:[#allocation2 + $0xb0] sm:$0xff] %v2469
    %2478 = vst [vmem:[#allocation2 + $0xb8] sm:$0xff] %v2470
    %2479 = vrot.lane.b32.xlu0 %v2291, 65
    %v2480 = vpop.permute.xlu0 %2479
    %2481 = vrot.lane.b32.xlu0 %v2292, 65
    %v2482 = vpop.permute.xlu0 %2481
    %2483 = vrot.lane.b32.xlu0 %v2293, 65
    %v2484 = vpop.permute.xlu0 %2483
    %2485 = vrot.lane.b32.xlu0 %v2294, 65
    %v2486 = vpop.permute.xlu0 %2485
    %2487 = vrot.lane.b32.xlu0 %v2295, 65
    %v2488 = vpop.permute.xlu0 %2487
    %2489 = vrot.lane.b32.xlu0 %v2296, 65
    %v2490 = vpop.permute.xlu0 %2489
    %2491 = vrot.lane.b32.xlu0 %v2297, 65
    %v2492 = vpop.permute.xlu0 %2491
    %2493 = vrot.lane.b32.xlu0 %v2298, 65
    %v2494 = vpop.permute.xlu0 %2493
    %v2495 = vsel %vm401, %v2492, %v2494
    %v2496 = vsel %vm401, %v2490, %v2492
    %v2497 = vsel %vm401, %v2488, %v2490
    %v2498 = vsel %vm401, %v2486, %v2488
    %v2499 = vsel %vm401, %v2484, %v2486
    %v2500 = vsel %vm401, %v2482, %v2484
    %v2501 = vsel %vm401, %v2480, %v2482
    %v2502 = vsel %vm401, %v2494, %v2480
    %v2503 = vld [vmem:[%s410] ss:$8 sm:$0xf]
    %v2504 = vld [vmem:[%s410] ss:$8 sm:$0xf0]
    %v2505 = vor.u32 %v2503, %v2504
    %v2507 = vperm.slane %v2505, 0
    %v2508 = vperm.slane %v2505, 1
    %v2509 = vperm.slane %v2505, 2
    %v2510 = vperm.slane %v2505, 3
    %v2511 = vperm.slane %v2505, 4
    %v2512 = vperm.slane %v2505, 5
    %v2513 = vperm.slane %v2505, 6
    %v2514 = vperm.slane %v2505, 7
    %v2523 = vmul.f32 %v2502, %v2507
    %v2524 = vmul.f32 %v2501, %v2508
    %v2525 = vmul.f32 %v2500, %v2509
    %v2526 = vmul.f32 %v2499, %v2510
    %v2527 = vmul.f32 %v2498, %v2511
    %v2528 = vmul.f32 %v2497, %v2512
    %v2529 = vmul.f32 %v2496, %v2513
    %v2530 = vmul.f32 %v2495, %v2514
    %2531 = vst [vmem:[#allocation2 + $0xc0] sm:$0xff] %v2523
    %2532 = vst [vmem:[#allocation2 + $0xc8] sm:$0xff] %v2524
    %2533 = vst [vmem:[#allocation2 + $0xd0] sm:$0xff] %v2525
    %2534 = vst [vmem:[#allocation2 + $0xd8] sm:$0xff] %v2526
    %2535 = vst [vmem:[#allocation2 + $0xe0] sm:$0xff] %v2527
    %2536 = vst [vmem:[#allocation2 + $0xe8] sm:$0xff] %v2528
    %2537 = vst [vmem:[#allocation2 + $0xf0] sm:$0xff] %v2529
    %2538 = vst [vmem:[#allocation2 + $0xf8] sm:$0xff] %v2530
    %2539 = vrot.lane.b32.xlu0 %v2291, 64
    %v2540 = vpop.permute.xlu0 %2539
    %2541 = vrot.lane.b32.xlu0 %v2292, 64
    %v2542 = vpop.permute.xlu0 %2541
    %2543 = vrot.lane.b32.xlu0 %v2293, 64
    %v2544 = vpop.permute.xlu0 %2543
    %2545 = vrot.lane.b32.xlu0 %v2294, 64
    %v2546 = vpop.permute.xlu0 %2545
    %2547 = vrot.lane.b32.xlu0 %v2295, 64
    %v2548 = vpop.permute.xlu0 %2547
    %2549 = vrot.lane.b32.xlu0 %v2296, 64
    %v2550 = vpop.permute.xlu0 %2549
    %2551 = vrot.lane.b32.xlu0 %v2297, 64
    %v2552 = vpop.permute.xlu0 %2551
    %2553 = vrot.lane.b32.xlu0 %v2298, 64
    %v2554 = vpop.permute.xlu0 %2553
    %v2555 = vsel %vm463, %v2552, %v2554
    %v2556 = vsel %vm463, %v2550, %v2552
    %v2557 = vsel %vm463, %v2548, %v2550
    %v2558 = vsel %vm463, %v2546, %v2548
    %v2559 = vsel %vm463, %v2544, %v2546
    %v2560 = vsel %vm463, %v2542, %v2544
    %v2561 = vsel %vm463, %v2540, %v2542
    %v2562 = vsel %vm463, %v2554, %v2540
    %v2563 = vld [vmem:[%s472] ss:$8 sm:$0xf]
    %v2564 = vld [vmem:[%s472] ss:$8 sm:$0xf0]
    %v2565 = vor.u32 %v2563, %v2564
    %v2567 = vperm.slane %v2565, 0
    %v2568 = vperm.slane %v2565, 1
    %v2569 = vperm.slane %v2565, 2
    %v2570 = vperm.slane %v2565, 3
    %v2571 = vperm.slane %v2565, 4
    %v2572 = vperm.slane %v2565, 5
    %v2573 = vperm.slane %v2565, 6
    %v2574 = vperm.slane %v2565, 7
    %v2583 = vmul.f32 %v2562, %v2567
    %v2584 = vmul.f32 %v2561, %v2568
    %v2585 = vmul.f32 %v2560, %v2569
    %v2586 = vmul.f32 %v2559, %v2570
    %v2587 = vmul.f32 %v2558, %v2571
    %v2588 = vmul.f32 %v2557, %v2572
    %v2589 = vmul.f32 %v2556, %v2573
    %v2590 = vmul.f32 %v2555, %v2574
    %2591 = vst [vmem:[#allocation2 + $0x100] sm:$0xff] %v2583
    %2592 = vst [vmem:[#allocation2 + $0x108] sm:$0xff] %v2584
    %2593 = vst [vmem:[#allocation2 + $0x110] sm:$0xff] %v2585
    %2594 = vst [vmem:[#allocation2 + $0x118] sm:$0xff] %v2586
    %2595 = vst [vmem:[#allocation2 + $0x120] sm:$0xff] %v2587
    %2596 = vst [vmem:[#allocation2 + $0x128] sm:$0xff] %v2588
    %2597 = vst [vmem:[#allocation2 + $0x130] sm:$0xff] %v2589
    %2598 = vst [vmem:[#allocation2 + $0x138] sm:$0xff] %v2590
    %2599 = vrot.lane.b32.xlu0 %v2291, 63
    %v2600 = vpop.permute.xlu0 %2599
    %2601 = vrot.lane.b32.xlu0 %v2292, 63
    %v2602 = vpop.permute.xlu0 %2601
    %2603 = vrot.lane.b32.xlu0 %v2293, 63
    %v2604 = vpop.permute.xlu0 %2603
    %2605 = vrot.lane.b32.xlu0 %v2294, 63
    %v2606 = vpop.permute.xlu0 %2605
    %2607 = vrot.lane.b32.xlu0 %v2295, 63
    %v2608 = vpop.permute.xlu0 %2607
    %2609 = vrot.lane.b32.xlu0 %v2296, 63
    %v2610 = vpop.permute.xlu0 %2609
    %2611 = vrot.lane.b32.xlu0 %v2297, 63
    %v2612 = vpop.permute.xlu0 %2611
    %2613 = vrot.lane.b32.xlu0 %v2298, 63
    %v2614 = vpop.permute.xlu0 %2613
    %v2615 = vsel %vm525, %v2612, %v2614
    %v2616 = vsel %vm525, %v2610, %v2612
    %v2617 = vsel %vm525, %v2608, %v2610
    %v2618 = vsel %vm525, %v2606, %v2608
    %v2619 = vsel %vm525, %v2604, %v2606
    %v2620 = vsel %vm525, %v2602, %v2604
    %v2621 = vsel %vm525, %v2600, %v2602
    %v2622 = vsel %vm525, %v2614, %v2600
    %v2623 = vld [vmem:[%s534] ss:$8 sm:$0xf]
    %v2624 = vld [vmem:[%s534] ss:$8 sm:$0xf0]
    %v2625 = vor.u32 %v2623, %v2624
    %v2627 = vperm.slane %v2625, 0
    %v2628 = vperm.slane %v2625, 1
    %v2629 = vperm.slane %v2625, 2
    %v2630 = vperm.slane %v2625, 3
    %v2631 = vperm.slane %v2625, 4
    %v2632 = vperm.slane %v2625, 5
    %v2633 = vperm.slane %v2625, 6
    %v2634 = vperm.slane %v2625, 7
    %v2643 = vmul.f32 %v2622, %v2627
    %v2644 = vmul.f32 %v2621, %v2628
    %v2645 = vmul.f32 %v2620, %v2629
    %v2646 = vmul.f32 %v2619, %v2630
    %v2647 = vmul.f32 %v2618, %v2631
    %v2648 = vmul.f32 %v2617, %v2632
    %v2649 = vmul.f32 %v2616, %v2633
    %v2650 = vmul.f32 %v2615, %v2634
    %2651 = vst [vmem:[#allocation2 + $0x140] sm:$0xff] %v2643
    %2652 = vst [vmem:[#allocation2 + $0x148] sm:$0xff] %v2644
    %2653 = vst [vmem:[#allocation2 + $0x150] sm:$0xff] %v2645
    %2654 = vst [vmem:[#allocation2 + $0x158] sm:$0xff] %v2646
    %2655 = vst [vmem:[#allocation2 + $0x160] sm:$0xff] %v2647
    %2656 = vst [vmem:[#allocation2 + $0x168] sm:$0xff] %v2648
    %2657 = vst [vmem:[#allocation2 + $0x170] sm:$0xff] %v2649
    %2658 = vst [vmem:[#allocation2 + $0x178] sm:$0xff] %v2650
    %2659 = vrot.lane.b32.xlu0 %v2291, 57
    %v2660 = vpop.permute.xlu0 %2659
    %2661 = vrot.lane.b32.xlu0 %v2292, 57
    %v2662 = vpop.permute.xlu0 %2661
    %2663 = vrot.lane.b32.xlu0 %v2293, 57
    %v2664 = vpop.permute.xlu0 %2663
    %2665 = vrot.lane.b32.xlu0 %v2294, 57
    %v2666 = vpop.permute.xlu0 %2665
    %2667 = vrot.lane.b32.xlu0 %v2295, 57
    %v2668 = vpop.permute.xlu0 %2667
    %2669 = vrot.lane.b32.xlu0 %v2296, 57
    %v2670 = vpop.permute.xlu0 %2669
    %2671 = vrot.lane.b32.xlu0 %v2297, 57
    %v2672 = vpop.permute.xlu0 %2671
    %2673 = vrot.lane.b32.xlu0 %v2298, 57
    %v2674 = vpop.permute.xlu0 %2673
    %v2675 = vsel %vm587, %v2672, %v2674
    %v2676 = vsel %vm587, %v2670, %v2672
    %v2677 = vsel %vm587, %v2668, %v2670
    %v2678 = vsel %vm587, %v2666, %v2668
    %v2679 = vsel %vm587, %v2664, %v2666
    %v2680 = vsel %vm587, %v2662, %v2664
    %v2681 = vsel %vm587, %v2660, %v2662
    %v2682 = vsel %vm587, %v2674, %v2660
    %v2683 = vld [vmem:[%s596] ss:$8 sm:$0xf]
    %v2684 = vld [vmem:[%s596] ss:$8 sm:$0xf0]
    %v2685 = vor.u32 %v2683, %v2684
    %v2687 = vperm.slane %v2685, 0
    %v2688 = vperm.slane %v2685, 1
    %v2689 = vperm.slane %v2685, 2
    %v2690 = vperm.slane %v2685, 3
    %v2691 = vperm.slane %v2685, 4
    %v2692 = vperm.slane %v2685, 5
    %v2693 = vperm.slane %v2685, 6
    %v2694 = vperm.slane %v2685, 7
    %v2703 = vmul.f32 %v2682, %v2687
    %v2704 = vmul.f32 %v2681, %v2688
    %v2705 = vmul.f32 %v2680, %v2689
    %v2706 = vmul.f32 %v2679, %v2690
    %v2707 = vmul.f32 %v2678, %v2691
    %v2708 = vmul.f32 %v2677, %v2692
    %v2709 = vmul.f32 %v2676, %v2693
    %v2710 = vmul.f32 %v2675, %v2694
    %2711 = vst [vmem:[#allocation2 + $0x180] sm:$0xff] %v2703
    %2712 = vst [vmem:[#allocation2 + $0x188] sm:$0xff] %v2704
    %2713 = vst [vmem:[#allocation2 + $0x190] sm:$0xff] %v2705
    %2714 = vst [vmem:[#allocation2 + $0x198] sm:$0xff] %v2706
    %2715 = vst [vmem:[#allocation2 + $0x1a0] sm:$0xff] %v2707
    %2716 = vst [vmem:[#allocation2 + $0x1a8] sm:$0xff] %v2708
    %2717 = vst [vmem:[#allocation2 + $0x1b0] sm:$0xff] %v2709
    %2718 = vst [vmem:[#allocation2 + $0x1b8] sm:$0xff] %v2710
    %2719 = vrot.lane.b32.xlu0 %v2291, 56
    %v2720 = vpop.permute.xlu0 %2719
    %2721 = vrot.lane.b32.xlu0 %v2292, 56
    %v2722 = vpop.permute.xlu0 %2721
    %2723 = vrot.lane.b32.xlu0 %v2293, 56
    %v2724 = vpop.permute.xlu0 %2723
    %2725 = vrot.lane.b32.xlu0 %v2294, 56
    %v2726 = vpop.permute.xlu0 %2725
    %2727 = vrot.lane.b32.xlu0 %v2295, 56
    %v2728 = vpop.permute.xlu0 %2727
    %2729 = vrot.lane.b32.xlu0 %v2296, 56
    %v2730 = vpop.permute.xlu0 %2729
    %2731 = vrot.lane.b32.xlu0 %v2297, 56
    %v2732 = vpop.permute.xlu0 %2731
    %2733 = vrot.lane.b32.xlu0 %v2298, 56
    %v2734 = vpop.permute.xlu0 %2733
    %v2735 = vsel %vm649, %v2732, %v2734
    %v2736 = vsel %vm649, %v2730, %v2732
    %v2737 = vsel %vm649, %v2728, %v2730
    %v2738 = vsel %vm649, %v2726, %v2728
    %v2739 = vsel %vm649, %v2724, %v2726
    %v2740 = vsel %vm649, %v2722, %v2724
    %v2741 = vsel %vm649, %v2720, %v2722
    %v2742 = vsel %vm649, %v2734, %v2720
    %v2743 = vld [vmem:[%s658] ss:$8 sm:$0xf]
    %v2744 = vld [vmem:[%s658] ss:$8 sm:$0xf0]
    %v2745 = vor.u32 %v2743, %v2744
    %v2747 = vperm.slane %v2745, 0
    %v2748 = vperm.slane %v2745, 1
    %v2749 = vperm.slane %v2745, 2
    %v2750 = vperm.slane %v2745, 3
    %v2751 = vperm.slane %v2745, 4
    %v2752 = vperm.slane %v2745, 5
    %v2753 = vperm.slane %v2745, 6
    %v2754 = vperm.slane %v2745, 7
    %v2763 = vmul.f32 %v2742, %v2747
    %v2764 = vmul.f32 %v2741, %v2748
    %v2765 = vmul.f32 %v2740, %v2749
    %v2766 = vmul.f32 %v2739, %v2750
    %v2767 = vmul.f32 %v2738, %v2751
    %v2768 = vmul.f32 %v2737, %v2752
    %v2769 = vmul.f32 %v2736, %v2753
    %v2770 = vmul.f32 %v2735, %v2754
    %2771 = vst [vmem:[#allocation2 + $0x1c0] sm:$0xff] %v2763
    %2772 = vst [vmem:[#allocation2 + $0x1c8] sm:$0xff] %v2764
    %2773 = vst [vmem:[#allocation2 + $0x1d0] sm:$0xff] %v2765
    %2774 = vst [vmem:[#allocation2 + $0x1d8] sm:$0xff] %v2766
    %2775 = vst [vmem:[#allocation2 + $0x1e0] sm:$0xff] %v2767
    %2776 = vst [vmem:[#allocation2 + $0x1e8] sm:$0xff] %v2768
    %2777 = vst [vmem:[#allocation2 + $0x1f0] sm:$0xff] %v2769
    %2778 = vst [vmem:[#allocation2 + $0x1f8] sm:$0xff] %v2770
    %2779 = vrot.lane.b32.xlu0 %v2291, 55
    %v2780 = vpop.permute.xlu0 %2779
    %2781 = vrot.lane.b32.xlu0 %v2292, 55
    %v2782 = vpop.permute.xlu0 %2781
    %2783 = vrot.lane.b32.xlu0 %v2293, 55
    %v2784 = vpop.permute.xlu0 %2783
    %2785 = vrot.lane.b32.xlu0 %v2294, 55
    %v2786 = vpop.permute.xlu0 %2785
    %2787 = vrot.lane.b32.xlu0 %v2295, 55
    %v2788 = vpop.permute.xlu0 %2787
    %2789 = vrot.lane.b32.xlu0 %v2296, 55
    %v2790 = vpop.permute.xlu0 %2789
    %2791 = vrot.lane.b32.xlu0 %v2297, 55
    %v2792 = vpop.permute.xlu0 %2791
    %2793 = vrot.lane.b32.xlu0 %v2298, 55
    %v2794 = vpop.permute.xlu0 %2793
    %v2795 = vsel %vm711, %v2792, %v2794
    %v2796 = vsel %vm711, %v2790, %v2792
    %v2797 = vsel %vm711, %v2788, %v2790
    %v2798 = vsel %vm711, %v2786, %v2788
    %v2799 = vsel %vm711, %v2784, %v2786
    %v2800 = vsel %vm711, %v2782, %v2784
    %v2801 = vsel %vm711, %v2780, %v2782
    %v2802 = vsel %vm711, %v2794, %v2780
    %v2803 = vld [vmem:[%s720] ss:$8 sm:$0xf]
    %v2804 = vld [vmem:[%s720] ss:$8 sm:$0xf0]
    %v2805 = vor.u32 %v2803, %v2804
    %v2807 = vperm.slane %v2805, 0
    %v2808 = vperm.slane %v2805, 1
    %v2809 = vperm.slane %v2805, 2
    %v2810 = vperm.slane %v2805, 3
    %v2811 = vperm.slane %v2805, 4
    %v2812 = vperm.slane %v2805, 5
    %v2813 = vperm.slane %v2805, 6
    %v2814 = vperm.slane %v2805, 7
    %v2823 = vmul.f32 %v2802, %v2807
    %v2824 = vmul.f32 %v2801, %v2808
    %v2825 = vmul.f32 %v2800, %v2809
    %v2826 = vmul.f32 %v2799, %v2810
    %v2827 = vmul.f32 %v2798, %v2811
    %v2828 = vmul.f32 %v2797, %v2812
    %v2829 = vmul.f32 %v2796, %v2813
    %v2830 = vmul.f32 %v2795, %v2814
    %2831 = vst [vmem:[#allocation2 + $0x200] sm:$0xff] %v2823
    %2832 = vst [vmem:[#allocation2 + $0x208] sm:$0xff] %v2824
    %2833 = vst [vmem:[#allocation2 + $0x210] sm:$0xff] %v2825
    %2834 = vst [vmem:[#allocation2 + $0x218] sm:$0xff] %v2826
    %2835 = vst [vmem:[#allocation2 + $0x220] sm:$0xff] %v2827
    %2836 = vst [vmem:[#allocation2 + $0x228] sm:$0xff] %v2828
    %2837 = vst [vmem:[#allocation2 + $0x230] sm:$0xff] %v2829
    %2838 = vst [vmem:[#allocation2 + $0x238] sm:$0xff] %v2830
    %2839 = vrot.lane.b32.xlu0 %v2291, 9
    %v2840 = vpop.permute.xlu0 %2839
    %2841 = vrot.lane.b32.xlu0 %v2292, 9
    %v2842 = vpop.permute.xlu0 %2841
    %2843 = vrot.lane.b32.xlu0 %v2293, 9
    %v2844 = vpop.permute.xlu0 %2843
    %2845 = vrot.lane.b32.xlu0 %v2294, 9
    %v2846 = vpop.permute.xlu0 %2845
    %2847 = vrot.lane.b32.xlu0 %v2295, 9
    %v2848 = vpop.permute.xlu0 %2847
    %2849 = vrot.lane.b32.xlu0 %v2296, 9
    %v2850 = vpop.permute.xlu0 %2849
    %2851 = vrot.lane.b32.xlu0 %v2297, 9
    %v2852 = vpop.permute.xlu0 %2851
    %2853 = vrot.lane.b32.xlu0 %v2298, 9
    %v2854 = vpop.permute.xlu0 %2853
    %v2855 = vsel %vm773, %v2852, %v2854
    %v2856 = vsel %vm773, %v2850, %v2852
    %v2857 = vsel %vm773, %v2848, %v2850
    %v2858 = vsel %vm773, %v2846, %v2848
    %v2859 = vsel %vm773, %v2844, %v2846
    %v2860 = vsel %vm773, %v2842, %v2844
    %v2861 = vsel %vm773, %v2840, %v2842
    %v2862 = vsel %vm773, %v2854, %v2840
    %v2863 = vld [vmem:[%s782] ss:$8 sm:$0xf]
    %v2864 = vld [vmem:[%s782] ss:$8 sm:$0xf0]
    %v2865 = vor.u32 %v2863, %v2864
    %v2867 = vperm.slane %v2865, 0
    %v2868 = vperm.slane %v2865, 1
    %v2869 = vperm.slane %v2865, 2
    %v2870 = vperm.slane %v2865, 3
    %v2871 = vperm.slane %v2865, 4
    %v2872 = vperm.slane %v2865, 5
    %v2873 = vperm.slane %v2865, 6
    %v2874 = vperm.slane %v2865, 7
    %v2883 = vmul.f32 %v2862, %v2867
    %v2884 = vmul.f32 %v2861, %v2868
    %v2885 = vmul.f32 %v2860, %v2869
    %v2886 = vmul.f32 %v2859, %v2870
    %v2887 = vmul.f32 %v2858, %v2871
    %v2888 = vmul.f32 %v2857, %v2872
    %v2889 = vmul.f32 %v2856, %v2873
    %v2890 = vmul.f32 %v2855, %v2874
    %2891 = vst [vmem:[#allocation2 + $0x240] sm:$0xff] %v2883
    %2892 = vst [vmem:[#allocation2 + $0x248] sm:$0xff] %v2884
    %2893 = vst [vmem:[#allocation2 + $0x250] sm:$0xff] %v2885
    %2894 = vst [vmem:[#allocation2 + $0x258] sm:$0xff] %v2886
    %2895 = vst [vmem:[#allocation2 + $0x260] sm:$0xff] %v2887
    %2896 = vst [vmem:[#allocation2 + $0x268] sm:$0xff] %v2888
    %2897 = vst [vmem:[#allocation2 + $0x270] sm:$0xff] %v2889
    %2898 = vst [vmem:[#allocation2 + $0x278] sm:$0xff] %v2890
    %2899 = vrot.lane.b32.xlu0 %v2291, 8
    %v2900 = vpop.permute.xlu0 %2899
    %2901 = vrot.lane.b32.xlu0 %v2292, 8
    %v2902 = vpop.permute.xlu0 %2901
    %2903 = vrot.lane.b32.xlu0 %v2293, 8
    %v2904 = vpop.permute.xlu0 %2903
    %2905 = vrot.lane.b32.xlu0 %v2294, 8
    %v2906 = vpop.permute.xlu0 %2905
    %2907 = vrot.lane.b32.xlu0 %v2295, 8
    %v2908 = vpop.permute.xlu0 %2907
    %2909 = vrot.lane.b32.xlu0 %v2296, 8
    %v2910 = vpop.permute.xlu0 %2909
    %2911 = vrot.lane.b32.xlu0 %v2297, 8
    %v2912 = vpop.permute.xlu0 %2911
    %2913 = vrot.lane.b32.xlu0 %v2298, 8
    %v2914 = vpop.permute.xlu0 %2913
    %v2915 = vsel %vm835, %v2912, %v2914
    %v2916 = vsel %vm835, %v2910, %v2912
    %v2917 = vsel %vm835, %v2908, %v2910
    %v2918 = vsel %vm835, %v2906, %v2908
    %v2919 = vsel %vm835, %v2904, %v2906
    %v2920 = vsel %vm835, %v2902, %v2904
    %v2921 = vsel %vm835, %v2900, %v2902
    %v2922 = vsel %vm835, %v2914, %v2900
    %v2923 = vld [vmem:[%s844] ss:$8 sm:$0xf]
    %v2924 = vld [vmem:[%s844] ss:$8 sm:$0xf0]
    %v2925 = vor.u32 %v2923, %v2924
    %v2927 = vperm.slane %v2925, 0
    %v2928 = vperm.slane %v2925, 1
    %v2929 = vperm.slane %v2925, 2
    %v2930 = vperm.slane %v2925, 3
    %v2931 = vperm.slane %v2925, 4
    %v2932 = vperm.slane %v2925, 5
    %v2933 = vperm.slane %v2925, 6
    %v2934 = vperm.slane %v2925, 7
    %v2943 = vmul.f32 %v2922, %v2927
    %v2944 = vmul.f32 %v2921, %v2928
    %v2945 = vmul.f32 %v2920, %v2929
    %v2946 = vmul.f32 %v2919, %v2930
    %v2947 = vmul.f32 %v2918, %v2931
    %v2948 = vmul.f32 %v2917, %v2932
    %v2949 = vmul.f32 %v2916, %v2933
    %v2950 = vmul.f32 %v2915, %v2934
    %2951 = vst [vmem:[#allocation2 + $0x280] sm:$0xff] %v2943
    %2952 = vst [vmem:[#allocation2 + $0x288] sm:$0xff] %v2944
    %2953 = vst [vmem:[#allocation2 + $0x290] sm:$0xff] %v2945
    %2954 = vst [vmem:[#allocation2 + $0x298] sm:$0xff] %v2946
    %2955 = vst [vmem:[#allocation2 + $0x2a0] sm:$0xff] %v2947
    %2956 = vst [vmem:[#allocation2 + $0x2a8] sm:$0xff] %v2948
    %2957 = vst [vmem:[#allocation2 + $0x2b0] sm:$0xff] %v2949
    %2958 = vst [vmem:[#allocation2 + $0x2b8] sm:$0xff] %v2950
    %2959 = vrot.lane.b32.xlu0 %v2291, 7
    %v2960 = vpop.permute.xlu0 %2959
    %2961 = vrot.lane.b32.xlu0 %v2292, 7
    %v2962 = vpop.permute.xlu0 %2961
    %2963 = vrot.lane.b32.xlu0 %v2293, 7
    %v2964 = vpop.permute.xlu0 %2963
    %2965 = vrot.lane.b32.xlu0 %v2294, 7
    %v2966 = vpop.permute.xlu0 %2965
    %2967 = vrot.lane.b32.xlu0 %v2295, 7
    %v2968 = vpop.permute.xlu0 %2967
    %2969 = vrot.lane.b32.xlu0 %v2296, 7
    %v2970 = vpop.permute.xlu0 %2969
    %2971 = vrot.lane.b32.xlu0 %v2297, 7
    %v2972 = vpop.permute.xlu0 %2971
    %2973 = vrot.lane.b32.xlu0 %v2298, 7
    %v2974 = vpop.permute.xlu0 %2973
    %v2975 = vsel %vm897, %v2972, %v2974
    %v2976 = vsel %vm897, %v2970, %v2972
    %v2977 = vsel %vm897, %v2968, %v2970
    %v2978 = vsel %vm897, %v2966, %v2968
    %v2979 = vsel %vm897, %v2964, %v2966
    %v2980 = vsel %vm897, %v2962, %v2964
    %v2981 = vsel %vm897, %v2960, %v2962
    %v2982 = vsel %vm897, %v2974, %v2960
    %v2983 = vld [vmem:[%s906] ss:$8 sm:$0xf]
    %v2984 = vld [vmem:[%s906] ss:$8 sm:$0xf0]
    %v2985 = vor.u32 %v2983, %v2984
    %v2987 = vperm.slane %v2985, 0
    %v2988 = vperm.slane %v2985, 1
    %v2989 = vperm.slane %v2985, 2
    %v2990 = vperm.slane %v2985, 3
    %v2991 = vperm.slane %v2985, 4
    %v2992 = vperm.slane %v2985, 5
    %v2993 = vperm.slane %v2985, 6
    %v2994 = vperm.slane %v2985, 7
    %v3003 = vmul.f32 %v2982, %v2987
    %v3004 = vmul.f32 %v2981, %v2988
    %v3005 = vmul.f32 %v2980, %v2989
    %v3006 = vmul.f32 %v2979, %v2990
    %v3007 = vmul.f32 %v2978, %v2991
    %v3008 = vmul.f32 %v2977, %v2992
    %v3009 = vmul.f32 %v2976, %v2993
    %v3010 = vmul.f32 %v2975, %v2994
    %3011 = vst [vmem:[#allocation2 + $0x2c0] sm:$0xff] %v3003
    %3012 = vst [vmem:[#allocation2 + $0x2c8] sm:$0xff] %v3004
    %3013 = vst [vmem:[#allocation2 + $0x2d0] sm:$0xff] %v3005
    %3014 = vst [vmem:[#allocation2 + $0x2d8] sm:$0xff] %v3006
    %3015 = vst [vmem:[#allocation2 + $0x2e0] sm:$0xff] %v3007
    %3016 = vst [vmem:[#allocation2 + $0x2e8] sm:$0xff] %v3008
    %3017 = vst [vmem:[#allocation2 + $0x2f0] sm:$0xff] %v3009
    %3018 = vst [vmem:[#allocation2 + $0x2f8] sm:$0xff] %v3010
    %3019 = vrot.lane.b32.xlu0 %v2291, 1
    %v3020 = vpop.permute.xlu0 %3019
    %3021 = vrot.lane.b32.xlu0 %v2292, 1
    %v3022 = vpop.permute.xlu0 %3021
    %3023 = vrot.lane.b32.xlu0 %v2293, 1
    %v3024 = vpop.permute.xlu0 %3023
    %3025 = vrot.lane.b32.xlu0 %v2294, 1
    %v3026 = vpop.permute.xlu0 %3025
    %3027 = vrot.lane.b32.xlu0 %v2295, 1
    %v3028 = vpop.permute.xlu0 %3027
    %3029 = vrot.lane.b32.xlu0 %v2296, 1
    %v3030 = vpop.permute.xlu0 %3029
    %3031 = vrot.lane.b32.xlu0 %v2297, 1
    %v3032 = vpop.permute.xlu0 %3031
    %3033 = vrot.lane.b32.xlu0 %v2298, 1
    %v3034 = vpop.permute.xlu0 %3033
    %v3035 = vsel %vm959, %v3032, %v3034
    %v3036 = vsel %vm959, %v3030, %v3032
    %v3037 = vsel %vm959, %v3028, %v3030
    %v3038 = vsel %vm959, %v3026, %v3028
    %v3039 = vsel %vm959, %v3024, %v3026
    %v3040 = vsel %vm959, %v3022, %v3024
    %v3041 = vsel %vm959, %v3020, %v3022
    %v3042 = vsel %vm959, %v3034, %v3020
    %v3043 = vld [vmem:[%s968] ss:$8 sm:$0xf]
    %v3044 = vld [vmem:[%s968] ss:$8 sm:$0xf0]
    %v3045 = vor.u32 %v3043, %v3044
    %v3047 = vperm.slane %v3045, 0
    %v3048 = vperm.slane %v3045, 1
    %v3049 = vperm.slane %v3045, 2
    %v3050 = vperm.slane %v3045, 3
    %v3051 = vperm.slane %v3045, 4
    %v3052 = vperm.slane %v3045, 5
    %v3053 = vperm.slane %v3045, 6
    %v3054 = vperm.slane %v3045, 7
    %v3063 = vmul.f32 %v3042, %v3047
    %v3064 = vmul.f32 %v3041, %v3048
    %v3065 = vmul.f32 %v3040, %v3049
    %v3066 = vmul.f32 %v3039, %v3050
    %v3067 = vmul.f32 %v3038, %v3051
    %v3068 = vmul.f32 %v3037, %v3052
    %v3069 = vmul.f32 %v3036, %v3053
    %v3070 = vmul.f32 %v3035, %v3054
    %3071 = vst [vmem:[#allocation2 + $0x300] sm:$0xff] %v3063
    %3072 = vst [vmem:[#allocation2 + $0x308] sm:$0xff] %v3064
    %3073 = vst [vmem:[#allocation2 + $0x310] sm:$0xff] %v3065
    %3074 = vst [vmem:[#allocation2 + $0x318] sm:$0xff] %v3066
    %3075 = vst [vmem:[#allocation2 + $0x320] sm:$0xff] %v3067
    %3076 = vst [vmem:[#allocation2 + $0x328] sm:$0xff] %v3068
    %3077 = vst [vmem:[#allocation2 + $0x330] sm:$0xff] %v3069
    %3078 = vst [vmem:[#allocation2 + $0x338] sm:$0xff] %v3070
    %v3079 = vld [vmem:[%s1005] ss:$8 sm:$0xf]
    %v3080 = vld [vmem:[%s1005] ss:$8 sm:$0xf0]
    %v3081 = vor.u32 %v3079, %v3080
    %v3083 = vperm.slane %v3081, 0
    %v3084 = vperm.slane %v3081, 1
    %v3085 = vperm.slane %v3081, 2
    %v3086 = vperm.slane %v3081, 3
    %v3087 = vperm.slane %v3081, 4
    %v3088 = vperm.slane %v3081, 5
    %v3089 = vperm.slane %v3081, 6
    %v3090 = vperm.slane %v3081, 7
    %v3099 = vmul.f32 %v2291, %v3083
    %v3100 = vmul.f32 %v2292, %v3084
    %v3101 = vmul.f32 %v2293, %v3085
    %v3102 = vmul.f32 %v2294, %v3086
    %v3103 = vmul.f32 %v2295, %v3087
    %v3104 = vmul.f32 %v2296, %v3088
    %v3105 = vmul.f32 %v2297, %v3089
    %v3106 = vmul.f32 %v2298, %v3090
    %3107 = vst [vmem:[#allocation2 + $0x340] sm:$0xff] %v3099
    %3108 = vst [vmem:[#allocation2 + $0x348] sm:$0xff] %v3100
    %3109 = vst [vmem:[#allocation2 + $0x350] sm:$0xff] %v3101
    %3110 = vst [vmem:[#allocation2 + $0x358] sm:$0xff] %v3102
    %3111 = vst [vmem:[#allocation2 + $0x360] sm:$0xff] %v3103
    %3112 = vst [vmem:[#allocation2 + $0x368] sm:$0xff] %v3104
    %3113 = vst [vmem:[#allocation2 + $0x370] sm:$0xff] %v3105
    %3114 = vst [vmem:[#allocation2 + $0x378] sm:$0xff] %v3106
    %3115 = vrot.lane.b32.xlu0 %v2291, 127
    %v3116 = vpop.permute.xlu0 %3115
    %3117 = vrot.lane.b32.xlu0 %v2292, 127
    %v3118 = vpop.permute.xlu0 %3117
    %3119 = vrot.lane.b32.xlu0 %v2293, 127
    %v3120 = vpop.permute.xlu0 %3119
    %3121 = vrot.lane.b32.xlu0 %v2294, 127
    %v3122 = vpop.permute.xlu0 %3121
    %3123 = vrot.lane.b32.xlu0 %v2295, 127
    %v3124 = vpop.permute.xlu0 %3123
    %3125 = vrot.lane.b32.xlu0 %v2296, 127
    %v3126 = vpop.permute.xlu0 %3125
    %3127 = vrot.lane.b32.xlu0 %v2297, 127
    %v3128 = vpop.permute.xlu0 %3127
    %3129 = vrot.lane.b32.xlu0 %v2298, 127
    %v3130 = vpop.permute.xlu0 %3129
    %v3131 = vsel %vm1058, %v3128, %v3130
    %v3132 = vsel %vm1058, %v3126, %v3128
    %v3133 = vsel %vm1058, %v3124, %v3126
    %v3134 = vsel %vm1058, %v3122, %v3124
    %v3135 = vsel %vm1058, %v3120, %v3122
    %v3136 = vsel %vm1058, %v3118, %v3120
    %v3137 = vsel %vm1058, %v3116, %v3118
    %v3138 = vsel %vm1058, %v3130, %v3116
    %v3139 = vld [vmem:[%s1067] ss:$8 sm:$0xf]
    %v3140 = vld [vmem:[%s1067] ss:$8 sm:$0xf0]
    %v3141 = vor.u32 %v3139, %v3140
    %v3143 = vperm.slane %v3141, 0
    %v3144 = vperm.slane %v3141, 1
    %v3145 = vperm.slane %v3141, 2
    %v3146 = vperm.slane %v3141, 3
    %v3147 = vperm.slane %v3141, 4
    %v3148 = vperm.slane %v3141, 5
    %v3149 = vperm.slane %v3141, 6
    %v3150 = vperm.slane %v3141, 7
    %v3159 = vmul.f32 %v3137, %v3143
    %v3160 = vmul.f32 %v3136, %v3144
    %v3161 = vmul.f32 %v3135, %v3145
    %v3162 = vmul.f32 %v3134, %v3146
    %v3163 = vmul.f32 %v3133, %v3147
    %v3164 = vmul.f32 %v3132, %v3148
    %v3165 = vmul.f32 %v3131, %v3149
    %v3166 = vmul.f32 %v3138, %v3150
    %3167 = vst [vmem:[#allocation2 + $0x380] sm:$0xff] %v3159
    %3168 = vst [vmem:[#allocation2 + $0x388] sm:$0xff] %v3160
    %3169 = vst [vmem:[#allocation2 + $0x390] sm:$0xff] %v3161
    %3170 = vst [vmem:[#allocation2 + $0x398] sm:$0xff] %v3162
    %3171 = vst [vmem:[#allocation2 + $0x3a0] sm:$0xff] %v3163
    %3172 = vst [vmem:[#allocation2 + $0x3a8] sm:$0xff] %v3164
    %3173 = vst [vmem:[#allocation2 + $0x3b0] sm:$0xff] %v3165
    %3174 = vst [vmem:[#allocation2 + $0x3b8] sm:$0xff] %v3166
    %3175 = vrot.lane.b32.xlu0 %v2291, 121
    %v3176 = vpop.permute.xlu0 %3175
    %3177 = vrot.lane.b32.xlu0 %v2292, 121
    %v3178 = vpop.permute.xlu0 %3177
    %3179 = vrot.lane.b32.xlu0 %v2293, 121
    %v3180 = vpop.permute.xlu0 %3179
    %3181 = vrot.lane.b32.xlu0 %v2294, 121
    %v3182 = vpop.permute.xlu0 %3181
    %3183 = vrot.lane.b32.xlu0 %v2295, 121
    %v3184 = vpop.permute.xlu0 %3183
    %3185 = vrot.lane.b32.xlu0 %v2296, 121
    %v3186 = vpop.permute.xlu0 %3185
    %3187 = vrot.lane.b32.xlu0 %v2297, 121
    %v3188 = vpop.permute.xlu0 %3187
    %3189 = vrot.lane.b32.xlu0 %v2298, 121
    %v3190 = vpop.permute.xlu0 %3189
    %v3191 = vsel %vm1120, %v3188, %v3190
    %v3192 = vsel %vm1120, %v3186, %v3188
    %v3193 = vsel %vm1120, %v3184, %v3186
    %v3194 = vsel %vm1120, %v3182, %v3184
    %v3195 = vsel %vm1120, %v3180, %v3182
    %v3196 = vsel %vm1120, %v3178, %v3180
    %v3197 = vsel %vm1120, %v3176, %v3178
    %v3198 = vsel %vm1120, %v3190, %v3176
    %v3199 = vld [vmem:[%s1129] ss:$8 sm:$0xf]
    %v3200 = vld [vmem:[%s1129] ss:$8 sm:$0xf0]
    %v3201 = vor.u32 %v3199, %v3200
    %v3203 = vperm.slane %v3201, 0
    %v3204 = vperm.slane %v3201, 1
    %v3205 = vperm.slane %v3201, 2
    %v3206 = vperm.slane %v3201, 3
    %v3207 = vperm.slane %v3201, 4
    %v3208 = vperm.slane %v3201, 5
    %v3209 = vperm.slane %v3201, 6
    %v3210 = vperm.slane %v3201, 7
    %v3219 = vmul.f32 %v3197, %v3203
    %v3220 = vmul.f32 %v3196, %v3204
    %v3221 = vmul.f32 %v3195, %v3205
    %v3222 = vmul.f32 %v3194, %v3206
    %v3223 = vmul.f32 %v3193, %v3207
    %v3224 = vmul.f32 %v3192, %v3208
    %v3225 = vmul.f32 %v3191, %v3209
    %v3226 = vmul.f32 %v3198, %v3210
    %3227 = vst [vmem:[#allocation2 + $0x3c0] sm:$0xff] %v3219
    %3228 = vst [vmem:[#allocation2 + $0x3c8] sm:$0xff] %v3220
    %3229 = vst [vmem:[#allocation2 + $0x3d0] sm:$0xff] %v3221
    %3230 = vst [vmem:[#allocation2 + $0x3d8] sm:$0xff] %v3222
    %3231 = vst [vmem:[#allocation2 + $0x3e0] sm:$0xff] %v3223
    %3232 = vst [vmem:[#allocation2 + $0x3e8] sm:$0xff] %v3224
    %3233 = vst [vmem:[#allocation2 + $0x3f0] sm:$0xff] %v3225
    %3234 = vst [vmem:[#allocation2 + $0x3f8] sm:$0xff] %v3226
    %v3235 = vld [vmem:[%s6] sm:$0xff]
    %v3236 = vld [vmem:[#allocation2] sm:$0xff]
    %v3237 = vld [vmem:[#allocation2 + $0x8] sm:$0xff]
    %v3238 = vld [vmem:[#allocation2 + $0x10] sm:$0xff]
    %v3239 = vld [vmem:[#allocation2 + $0x18] sm:$0xff]
    %v3240 = vld [vmem:[#allocation2 + $0x20] sm:$0xff]
    %v3241 = vld [vmem:[#allocation2 + $0x28] sm:$0xff]
    %v3242 = vld [vmem:[#allocation2 + $0x30] sm:$0xff]
    %v3243 = vld [vmem:[#allocation2 + $0x38] sm:$0xff]
    %v3244 = vld [vmem:[#allocation2 + $0x40] sm:$0xff]
    %v3245 = vld [vmem:[#allocation2 + $0x48] sm:$0xff]
    %v3246 = vld [vmem:[#allocation2 + $0x50] sm:$0xff]
    %v3247 = vld [vmem:[#allocation2 + $0x58] sm:$0xff]
    %v3248 = vld [vmem:[#allocation2 + $0x60] sm:$0xff]
    %v3249 = vld [vmem:[#allocation2 + $0x68] sm:$0xff]
    %v3250 = vld [vmem:[#allocation2 + $0x70] sm:$0xff]
    %v3251 = vld [vmem:[#allocation2 + $0x78] sm:$0xff]
    %v3252 = vld [vmem:[#allocation2 + $0x80] sm:$0xff]
    %v3253 = vld [vmem:[#allocation2 + $0x88] sm:$0xff]
    %v3254 = vld [vmem:[#allocation2 + $0x90] sm:$0xff]
    %v3255 = vld [vmem:[#allocation2 + $0x98] sm:$0xff]
    %v3256 = vld [vmem:[#allocation2 + $0xa0] sm:$0xff]
    %v3257 = vld [vmem:[#allocation2 + $0xa8] sm:$0xff]
    %v3258 = vld [vmem:[#allocation2 + $0xb0] sm:$0xff]
    %v3259 = vld [vmem:[#allocation2 + $0xb8] sm:$0xff]
    %v3260 = vld [vmem:[#allocation2 + $0xc0] sm:$0xff]
    %v3261 = vld [vmem:[#allocation2 + $0xc8] sm:$0xff]
    %v3262 = vld [vmem:[#allocation2 + $0xd0] sm:$0xff]
    %v3263 = vld [vmem:[#allocation2 + $0xd8] sm:$0xff]
    %v3264 = vld [vmem:[#allocation2 + $0xe0] sm:$0xff]
    %v3265 = vld [vmem:[#allocation2 + $0xe8] sm:$0xff]
    %v3266 = vld [vmem:[#allocation2 + $0xf0] sm:$0xff]
    %v3267 = vld [vmem:[#allocation2 + $0xf8] sm:$0xff]
    %v3268 = vld [vmem:[#allocation2 + $0x100] sm:$0xff]
    %v3269 = vld [vmem:[#allocation2 + $0x108] sm:$0xff]
    %v3270 = vld [vmem:[#allocation2 + $0x110] sm:$0xff]
    %v3271 = vld [vmem:[#allocation2 + $0x118] sm:$0xff]
    %v3272 = vld [vmem:[#allocation2 + $0x120] sm:$0xff]
    %v3273 = vld [vmem:[#allocation2 + $0x128] sm:$0xff]
    %v3274 = vld [vmem:[#allocation2 + $0x130] sm:$0xff]
    %v3275 = vld [vmem:[#allocation2 + $0x138] sm:$0xff]
    %v3276 = vld [vmem:[#allocation2 + $0x140] sm:$0xff]
    %v3277 = vld [vmem:[#allocation2 + $0x148] sm:$0xff]
    %v3278 = vld [vmem:[#allocation2 + $0x150] sm:$0xff]
    %v3279 = vld [vmem:[#allocation2 + $0x158] sm:$0xff]
    %v3280 = vld [vmem:[#allocation2 + $0x160] sm:$0xff]
    %v3281 = vld [vmem:[#allocation2 + $0x168] sm:$0xff]
    %v3282 = vld [vmem:[#allocation2 + $0x170] sm:$0xff]
    %v3283 = vld [vmem:[#allocation2 + $0x178] sm:$0xff]
    %v3284 = vld [vmem:[#allocation2 + $0x180] sm:$0xff]
    %v3285 = vld [vmem:[#allocation2 + $0x188] sm:$0xff]
    %v3286 = vld [vmem:[#allocation2 + $0x190] sm:$0xff]
    %v3287 = vld [vmem:[#allocation2 + $0x198] sm:$0xff]
    %v3288 = vld [vmem:[#allocation2 + $0x1a0] sm:$0xff]
    %v3289 = vld [vmem:[#allocation2 + $0x1a8] sm:$0xff]
    %v3290 = vld [vmem:[#allocation2 + $0x1b0] sm:$0xff]
    %v3291 = vld [vmem:[#allocation2 + $0x1b8] sm:$0xff]
    %v3292 = vld [vmem:[#allocation2 + $0x1c0] sm:$0xff]
    %v3293 = vld [vmem:[#allocation2 + $0x1c8] sm:$0xff]
    %v3294 = vld [vmem:[#allocation2 + $0x1d0] sm:$0xff]
    %v3295 = vld [vmem:[#allocation2 + $0x1d8] sm:$0xff]
    %v3296 = vld [vmem:[#allocation2 + $0x1e0] sm:$0xff]
    %v3297 = vld [vmem:[#allocation2 + $0x1e8] sm:$0xff]
    %v3298 = vld [vmem:[#allocation2 + $0x1f0] sm:$0xff]
    %v3299 = vld [vmem:[#allocation2 + $0x1f8] sm:$0xff]
    %v3300 = vld [vmem:[#allocation2 + $0x200] sm:$0xff]
    %v3301 = vld [vmem:[#allocation2 + $0x208] sm:$0xff]
    %v3302 = vld [vmem:[#allocation2 + $0x210] sm:$0xff]
    %v3303 = vld [vmem:[#allocation2 + $0x218] sm:$0xff]
    %v3304 = vld [vmem:[#allocation2 + $0x220] sm:$0xff]
    %v3305 = vld [vmem:[#allocation2 + $0x228] sm:$0xff]
    %v3306 = vld [vmem:[#allocation2 + $0x230] sm:$0xff]
    %v3307 = vld [vmem:[#allocation2 + $0x238] sm:$0xff]
    %v3308 = vld [vmem:[#allocation2 + $0x240] sm:$0xff]
    %v3309 = vld [vmem:[#allocation2 + $0x248] sm:$0xff]
    %v3310 = vld [vmem:[#allocation2 + $0x250] sm:$0xff]
    %v3311 = vld [vmem:[#allocation2 + $0x258] sm:$0xff]
    %v3312 = vld [vmem:[#allocation2 + $0x260] sm:$0xff]
    %v3313 = vld [vmem:[#allocation2 + $0x268] sm:$0xff]
    %v3314 = vld [vmem:[#allocation2 + $0x270] sm:$0xff]
    %v3315 = vld [vmem:[#allocation2 + $0x278] sm:$0xff]
    %v3316 = vld [vmem:[#allocation2 + $0x280] sm:$0xff]
    %v3317 = vld [vmem:[#allocation2 + $0x288] sm:$0xff]
    %v3318 = vld [vmem:[#allocation2 + $0x290] sm:$0xff]
    %v3319 = vld [vmem:[#allocation2 + $0x298] sm:$0xff]
    %v3320 = vld [vmem:[#allocation2 + $0x2a0] sm:$0xff]
    %v3321 = vld [vmem:[#allocation2 + $0x2a8] sm:$0xff]
    %v3322 = vld [vmem:[#allocation2 + $0x2b0] sm:$0xff]
    %v3323 = vld [vmem:[#allocation2 + $0x2b8] sm:$0xff]
    %v3324 = vld [vmem:[#allocation2 + $0x2c0] sm:$0xff]
    %v3325 = vld [vmem:[#allocation2 + $0x2c8] sm:$0xff]
    %v3326 = vld [vmem:[#allocation2 + $0x2d0] sm:$0xff]
    %v3327 = vld [vmem:[#allocation2 + $0x2d8] sm:$0xff]
    %v3328 = vld [vmem:[#allocation2 + $0x2e0] sm:$0xff]
    %v3329 = vld [vmem:[#allocation2 + $0x2e8] sm:$0xff]
    %v3330 = vld [vmem:[#allocation2 + $0x2f0] sm:$0xff]
    %v3331 = vld [vmem:[#allocation2 + $0x2f8] sm:$0xff]
    %v3332 = vld [vmem:[#allocation2 + $0x300] sm:$0xff]
    %v3333 = vld [vmem:[#allocation2 + $0x308] sm:$0xff]
    %v3334 = vld [vmem:[#allocation2 + $0x310] sm:$0xff]
    %v3335 = vld [vmem:[#allocation2 + $0x318] sm:$0xff]
    %v3336 = vld [vmem:[#allocation2 + $0x320] sm:$0xff]
    %v3337 = vld [vmem:[#allocation2 + $0x328] sm:$0xff]
    %v3338 = vld [vmem:[#allocation2 + $0x330] sm:$0xff]
    %v3339 = vld [vmem:[#allocation2 + $0x338] sm:$0xff]
    %v3340 = vld [vmem:[#allocation2 + $0x340] sm:$0xff]
    %v3341 = vld [vmem:[#allocation2 + $0x348] sm:$0xff]
    %v3342 = vld [vmem:[#allocation2 + $0x350] sm:$0xff]
    %v3343 = vld [vmem:[#allocation2 + $0x358] sm:$0xff]
    %v3344 = vld [vmem:[#allocation2 + $0x360] sm:$0xff]
    %v3345 = vld [vmem:[#allocation2 + $0x368] sm:$0xff]
    %v3346 = vld [vmem:[#allocation2 + $0x370] sm:$0xff]
    %v3347 = vld [vmem:[#allocation2 + $0x378] sm:$0xff]
    %v3348 = vld [vmem:[#allocation2 + $0x380] sm:$0xff]
    %v3349 = vld [vmem:[#allocation2 + $0x388] sm:$0xff]
    %v3350 = vld [vmem:[#allocation2 + $0x390] sm:$0xff]
    %v3351 = vld [vmem:[#allocation2 + $0x398] sm:$0xff]
    %v3352 = vld [vmem:[#allocation2 + $0x3a0] sm:$0xff]
    %v3353 = vld [vmem:[#allocation2 + $0x3a8] sm:$0xff]
    %v3354 = vld [vmem:[#allocation2 + $0x3b0] sm:$0xff]
    %v3355 = vld [vmem:[#allocation2 + $0x3b8] sm:$0xff]
    %v3356 = vld [vmem:[#allocation2 + $0x3c0] sm:$0xff]
    %v3357 = vld [vmem:[#allocation2 + $0x3c8] sm:$0xff]
    %v3358 = vld [vmem:[#allocation2 + $0x3d0] sm:$0xff]
    %v3359 = vld [vmem:[#allocation2 + $0x3d8] sm:$0xff]
    %v3360 = vld [vmem:[#allocation2 + $0x3e0] sm:$0xff]
    %v3361 = vld [vmem:[#allocation2 + $0x3e8] sm:$0xff]
    %v3362 = vld [vmem:[#allocation2 + $0x3f0] sm:$0xff]
    %v3363 = vld [vmem:[#allocation2 + $0x3f8] sm:$0xff]
    %3364 = vrot.lane.b32.xlu0 %v2291, 120
    %v3365 = vpop.permute.xlu0 %3364
    %3366 = vrot.lane.b32.xlu0 %v2292, 120
    %v3367 = vpop.permute.xlu0 %3366
    %3368 = vrot.lane.b32.xlu0 %v2293, 120
    %v3369 = vpop.permute.xlu0 %3368
    %3370 = vrot.lane.b32.xlu0 %v2294, 120
    %v3371 = vpop.permute.xlu0 %3370
    %3372 = vrot.lane.b32.xlu0 %v2295, 120
    %v3373 = vpop.permute.xlu0 %3372
    %3374 = vrot.lane.b32.xlu0 %v2296, 120
    %v3375 = vpop.permute.xlu0 %3374
    %3376 = vrot.lane.b32.xlu0 %v2297, 120
    %v3377 = vpop.permute.xlu0 %3376
    %3378 = vrot.lane.b32.xlu0 %v2298, 120
    %v3379 = vpop.permute.xlu0 %3378
    %v3380 = vsel %vm1311, %v3377, %v3379
    %v3381 = vsel %vm1311, %v3375, %v3377
    %v3382 = vsel %vm1311, %v3373, %v3375
    %v3383 = vsel %vm1311, %v3371, %v3373
    %v3384 = vsel %vm1311, %v3369, %v3371
    %v3385 = vsel %vm1311, %v3367, %v3369
    %v3386 = vsel %vm1311, %v3365, %v3367
    %v3387 = vsel %vm1311, %v3379, %v3365
    %v3388 = vld [vmem:[%s1320] ss:$8 sm:$0xf]
    %v3389 = vld [vmem:[%s1320] ss:$8 sm:$0xf0]
    %v3390 = vor.u32 %v3388, %v3389
    %v3392 = vperm.slane %v3390, 0
    %v3393 = vperm.slane %v3390, 1
    %v3394 = vperm.slane %v3390, 2
    %v3395 = vperm.slane %v3390, 3
    %v3396 = vperm.slane %v3390, 4
    %v3397 = vperm.slane %v3390, 5
    %v3398 = vperm.slane %v3390, 6
    %v3399 = vperm.slane %v3390, 7
    %v3408 = vmul.f32 %v3386, %v3392
    %v3409 = vmul.f32 %v3385, %v3393
    %v3410 = vmul.f32 %v3384, %v3394
    %v3411 = vmul.f32 %v3383, %v3395
    %v3412 = vmul.f32 %v3382, %v3396
    %v3413 = vmul.f32 %v3381, %v3397
    %v3414 = vmul.f32 %v3380, %v3398
    %v3415 = vmul.f32 %v3387, %v3399
    %3416 = vst [vmem:[#allocation2 + $0x400] sm:$0xff] %v3408
    %3417 = vst [vmem:[#allocation2 + $0x408] sm:$0xff] %v3409
    %3418 = vst [vmem:[#allocation2 + $0x410] sm:$0xff] %v3410
    %3419 = vst [vmem:[#allocation2 + $0x418] sm:$0xff] %v3411
    %3420 = vst [vmem:[#allocation2 + $0x420] sm:$0xff] %v3412
    %3421 = vst [vmem:[#allocation2 + $0x428] sm:$0xff] %v3413
    %3422 = vst [vmem:[#allocation2 + $0x430] sm:$0xff] %v3414
    %3423 = vst [vmem:[#allocation2 + $0x438] sm:$0xff] %v3415
    %3424 = vrot.lane.b32.xlu0 %v2291, 119
    %v3425 = vpop.permute.xlu0 %3424
    %3426 = vrot.lane.b32.xlu0 %v2292, 119
    %v3427 = vpop.permute.xlu0 %3426
    %3428 = vrot.lane.b32.xlu0 %v2293, 119
    %v3429 = vpop.permute.xlu0 %3428
    %3430 = vrot.lane.b32.xlu0 %v2294, 119
    %v3431 = vpop.permute.xlu0 %3430
    %3432 = vrot.lane.b32.xlu0 %v2295, 119
    %v3433 = vpop.permute.xlu0 %3432
    %3434 = vrot.lane.b32.xlu0 %v2296, 119
    %v3435 = vpop.permute.xlu0 %3434
    %3436 = vrot.lane.b32.xlu0 %v2297, 119
    %v3437 = vpop.permute.xlu0 %3436
    %3438 = vrot.lane.b32.xlu0 %v2298, 119
    %v3439 = vpop.permute.xlu0 %3438
    %v3440 = vsel %vm1373, %v3437, %v3439
    %v3441 = vsel %vm1373, %v3435, %v3437
    %v3442 = vsel %vm1373, %v3433, %v3435
    %v3443 = vsel %vm1373, %v3431, %v3433
    %v3444 = vsel %vm1373, %v3429, %v3431
    %v3445 = vsel %vm1373, %v3427, %v3429
    %v3446 = vsel %vm1373, %v3425, %v3427
    %v3447 = vsel %vm1373, %v3439, %v3425
    %v3448 = vld [vmem:[%s1382] ss:$8 sm:$0xf]
    %v3449 = vld [vmem:[%s1382] ss:$8 sm:$0xf0]
    %v3450 = vor.u32 %v3448, %v3449
    %v3452 = vperm.slane %v3450, 0
    %v3453 = vperm.slane %v3450, 1
    %v3454 = vperm.slane %v3450, 2
    %v3455 = vperm.slane %v3450, 3
    %v3456 = vperm.slane %v3450, 4
    %v3457 = vperm.slane %v3450, 5
    %v3458 = vperm.slane %v3450, 6
    %v3459 = vperm.slane %v3450, 7
    %v3468 = vmul.f32 %v3446, %v3452
    %v3469 = vmul.f32 %v3445, %v3453
    %v3470 = vmul.f32 %v3444, %v3454
    %v3471 = vmul.f32 %v3443, %v3455
    %v3472 = vmul.f32 %v3442, %v3456
    %v3473 = vmul.f32 %v3441, %v3457
    %v3474 = vmul.f32 %v3440, %v3458
    %v3475 = vmul.f32 %v3447, %v3459
    %3476 = vst [vmem:[#allocation2 + $0x440] sm:$0xff] %v3468
    %3477 = vst [vmem:[#allocation2 + $0x448] sm:$0xff] %v3469
    %3478 = vst [vmem:[#allocation2 + $0x450] sm:$0xff] %v3470
    %3479 = vst [vmem:[#allocation2 + $0x458] sm:$0xff] %v3471
    %3480 = vst [vmem:[#allocation2 + $0x460] sm:$0xff] %v3472
    %3481 = vst [vmem:[#allocation2 + $0x468] sm:$0xff] %v3473
    %3482 = vst [vmem:[#allocation2 + $0x470] sm:$0xff] %v3474
    %3483 = vst [vmem:[#allocation2 + $0x478] sm:$0xff] %v3475
    %v3484 = vld [vmem:[%s1419] ss:$8 sm:$0xf]
    %v3485 = vld [vmem:[%s1419] ss:$8 sm:$0xf0]
    %v3486 = vor.u32 %v3484, %v3485
    %v3488 = vperm.slane %v3486, 0
    %v3489 = vperm.slane %v3486, 1
    %v3490 = vperm.slane %v3486, 2
    %v3491 = vperm.slane %v3486, 3
    %v3492 = vperm.slane %v3486, 4
    %v3493 = vperm.slane %v3486, 5
    %v3494 = vperm.slane %v3486, 6
    %v3495 = vperm.slane %v3486, 7
    %v3504 = vmul.f32 %v2321, %v3488
    %v3505 = vmul.f32 %v2320, %v3489
    %v3506 = vmul.f32 %v2319, %v3490
    %v3507 = vmul.f32 %v2318, %v3491
    %v3508 = vmul.f32 %v2317, %v3492
    %v3509 = vmul.f32 %v2316, %v3493
    %v3510 = vmul.f32 %v2315, %v3494
    %v3511 = vmul.f32 %v2322, %v3495
    %3512 = vst [vmem:[#allocation2 + $0x480] sm:$0xff] %v3504
    %3513 = vst [vmem:[#allocation2 + $0x488] sm:$0xff] %v3505
    %3514 = vst [vmem:[#allocation2 + $0x490] sm:$0xff] %v3506
    %3515 = vst [vmem:[#allocation2 + $0x498] sm:$0xff] %v3507
    %3516 = vst [vmem:[#allocation2 + $0x4a0] sm:$0xff] %v3508
    %3517 = vst [vmem:[#allocation2 + $0x4a8] sm:$0xff] %v3509
    %3518 = vst [vmem:[#allocation2 + $0x4b0] sm:$0xff] %v3510
    %3519 = vst [vmem:[#allocation2 + $0x4b8] sm:$0xff] %v3511
    %v3520 = vld [vmem:[%s1456] ss:$8 sm:$0xf]
    %v3521 = vld [vmem:[%s1456] ss:$8 sm:$0xf0]
    %v3522 = vor.u32 %v3520, %v3521
    %v3524 = vperm.slane %v3522, 0
    %v3525 = vperm.slane %v3522, 1
    %v3526 = vperm.slane %v3522, 2
    %v3527 = vperm.slane %v3522, 3
    %v3528 = vperm.slane %v3522, 4
    %v3529 = vperm.slane %v3522, 5
    %v3530 = vperm.slane %v3522, 6
    %v3531 = vperm.slane %v3522, 7
    %v3540 = vmul.f32 %v2381, %v3524
    %v3541 = vmul.f32 %v2380, %v3525
    %v3542 = vmul.f32 %v2379, %v3526
    %v3543 = vmul.f32 %v2378, %v3527
    %v3544 = vmul.f32 %v2377, %v3528
    %v3545 = vmul.f32 %v2376, %v3529
    %v3546 = vmul.f32 %v2375, %v3530
    %v3547 = vmul.f32 %v2382, %v3531
    %3548 = vst [vmem:[#allocation2 + $0x4c0] sm:$0xff] %v3540
    %3549 = vst [vmem:[#allocation2 + $0x4c8] sm:$0xff] %v3541
    %3550 = vst [vmem:[#allocation2 + $0x4d0] sm:$0xff] %v3542
    %3551 = vst [vmem:[#allocation2 + $0x4d8] sm:$0xff] %v3543
    %3552 = vst [vmem:[#allocation2 + $0x4e0] sm:$0xff] %v3544
    %3553 = vst [vmem:[#allocation2 + $0x4e8] sm:$0xff] %v3545
    %3554 = vst [vmem:[#allocation2 + $0x4f0] sm:$0xff] %v3546
    %3555 = vst [vmem:[#allocation2 + $0x4f8] sm:$0xff] %v3547
    %v3556 = vld [vmem:[%s1493] ss:$8 sm:$0xf]
    %v3557 = vld [vmem:[%s1493] ss:$8 sm:$0xf0]
    %v3558 = vor.u32 %v3556, %v3557
    %v3560 = vperm.slane %v3558, 0
    %v3561 = vperm.slane %v3558, 1
    %v3562 = vperm.slane %v3558, 2
    %v3563 = vperm.slane %v3558, 3
    %v3564 = vperm.slane %v3558, 4
    %v3565 = vperm.slane %v3558, 5
    %v3566 = vperm.slane %v3558, 6
    %v3567 = vperm.slane %v3558, 7
    %v3576 = vmul.f32 %v2441, %v3560
    %v3577 = vmul.f32 %v2440, %v3561
    %v3578 = vmul.f32 %v2439, %v3562
    %v3579 = vmul.f32 %v2438, %v3563
    %v3580 = vmul.f32 %v2437, %v3564
    %v3581 = vmul.f32 %v2436, %v3565
    %v3582 = vmul.f32 %v2435, %v3566
    %v3583 = vmul.f32 %v2442, %v3567
    %3584 = vst [vmem:[#allocation2 + $0x500] sm:$0xff] %v3576
    %3585 = vst [vmem:[#allocation2 + $0x508] sm:$0xff] %v3577
    %3586 = vst [vmem:[#allocation2 + $0x510] sm:$0xff] %v3578
    %3587 = vst [vmem:[#allocation2 + $0x518] sm:$0xff] %v3579
    %3588 = vst [vmem:[#allocation2 + $0x520] sm:$0xff] %v3580
    %3589 = vst [vmem:[#allocation2 + $0x528] sm:$0xff] %v3581
    %3590 = vst [vmem:[#allocation2 + $0x530] sm:$0xff] %v3582
    %3591 = vst [vmem:[#allocation2 + $0x538] sm:$0xff] %v3583
    %v3592 = vld [vmem:[%s1530] ss:$8 sm:$0xf]
    %v3593 = vld [vmem:[%s1530] ss:$8 sm:$0xf0]
    %v3594 = vor.u32 %v3592, %v3593
    %v3596 = vperm.slane %v3594, 0
    %v3597 = vperm.slane %v3594, 1
    %v3598 = vperm.slane %v3594, 2
    %v3599 = vperm.slane %v3594, 3
    %v3600 = vperm.slane %v3594, 4
    %v3601 = vperm.slane %v3594, 5
    %v3602 = vperm.slane %v3594, 6
    %v3603 = vperm.slane %v3594, 7
    %v3612 = vmul.f32 %v2501, %v3596
    %v3613 = vmul.f32 %v2500, %v3597
    %v3614 = vmul.f32 %v2499, %v3598
    %v3615 = vmul.f32 %v2498, %v3599
    %v3616 = vmul.f32 %v2497, %v3600
    %v3617 = vmul.f32 %v2496, %v3601
    %v3618 = vmul.f32 %v2495, %v3602
    %v3619 = vmul.f32 %v2502, %v3603
    %3620 = vst [vmem:[#allocation2 + $0x540] sm:$0xff] %v3612
    %3621 = vst [vmem:[#allocation2 + $0x548] sm:$0xff] %v3613
    %3622 = vst [vmem:[#allocation2 + $0x550] sm:$0xff] %v3614
    %3623 = vst [vmem:[#allocation2 + $0x558] sm:$0xff] %v3615
    %3624 = vst [vmem:[#allocation2 + $0x560] sm:$0xff] %v3616
    %3625 = vst [vmem:[#allocation2 + $0x568] sm:$0xff] %v3617
    %3626 = vst [vmem:[#allocation2 + $0x570] sm:$0xff] %v3618
    %3627 = vst [vmem:[#allocation2 + $0x578] sm:$0xff] %v3619
    %v3628 = vld [vmem:[%s1567] ss:$8 sm:$0xf]
    %v3629 = vld [vmem:[%s1567] ss:$8 sm:$0xf0]
    %v3630 = vor.u32 %v3628, %v3629
    %v3632 = vperm.slane %v3630, 0
    %v3633 = vperm.slane %v3630, 1
    %v3634 = vperm.slane %v3630, 2
    %v3635 = vperm.slane %v3630, 3
    %v3636 = vperm.slane %v3630, 4
    %v3637 = vperm.slane %v3630, 5
    %v3638 = vperm.slane %v3630, 6
    %v3639 = vperm.slane %v3630, 7
    %v3648 = vmul.f32 %v2561, %v3632
    %v3649 = vmul.f32 %v2560, %v3633
    %v3650 = vmul.f32 %v2559, %v3634
    %v3651 = vmul.f32 %v2558, %v3635
    %v3652 = vmul.f32 %v2557, %v3636
    %v3653 = vmul.f32 %v2556, %v3637
    %v3654 = vmul.f32 %v2555, %v3638
    %v3655 = vmul.f32 %v2562, %v3639
    %3656 = vst [vmem:[#allocation2 + $0x580] sm:$0xff] %v3648
    %3657 = vst [vmem:[#allocation2 + $0x588] sm:$0xff] %v3649
    %3658 = vst [vmem:[#allocation2 + $0x590] sm:$0xff] %v3650
    %3659 = vst [vmem:[#allocation2 + $0x598] sm:$0xff] %v3651
    %3660 = vst [vmem:[#allocation2 + $0x5a0] sm:$0xff] %v3652
    %3661 = vst [vmem:[#allocation2 + $0x5a8] sm:$0xff] %v3653
    %3662 = vst [vmem:[#allocation2 + $0x5b0] sm:$0xff] %v3654
    %3663 = vst [vmem:[#allocation2 + $0x5b8] sm:$0xff] %v3655
    %v3664 = vld [vmem:[%s1604] ss:$8 sm:$0xf]
    %v3665 = vld [vmem:[%s1604] ss:$8 sm:$0xf0]
    %v3666 = vor.u32 %v3664, %v3665
    %v3668 = vperm.slane %v3666, 0
    %v3669 = vperm.slane %v3666, 1
    %v3670 = vperm.slane %v3666, 2
    %v3671 = vperm.slane %v3666, 3
    %v3672 = vperm.slane %v3666, 4
    %v3673 = vperm.slane %v3666, 5
    %v3674 = vperm.slane %v3666, 6
    %v3675 = vperm.slane %v3666, 7
    %v3684 = vmul.f32 %v2621, %v3668
    %v3685 = vmul.f32 %v2620, %v3669
    %v3686 = vmul.f32 %v2619, %v3670
    %v3687 = vmul.f32 %v2618, %v3671
    %v3688 = vmul.f32 %v2617, %v3672
    %v3689 = vmul.f32 %v2616, %v3673
    %v3690 = vmul.f32 %v2615, %v3674
    %v3691 = vmul.f32 %v2622, %v3675
    %3692 = vst [vmem:[#allocation2 + $0x5c0] sm:$0xff] %v3684
    %3693 = vst [vmem:[#allocation2 + $0x5c8] sm:$0xff] %v3685
    %3694 = vst [vmem:[#allocation2 + $0x5d0] sm:$0xff] %v3686
    %3695 = vst [vmem:[#allocation2 + $0x5d8] sm:$0xff] %v3687
    %3696 = vst [vmem:[#allocation2 + $0x5e0] sm:$0xff] %v3688
    %3697 = vst [vmem:[#allocation2 + $0x5e8] sm:$0xff] %v3689
    %3698 = vst [vmem:[#allocation2 + $0x5f0] sm:$0xff] %v3690
    %3699 = vst [vmem:[#allocation2 + $0x5f8] sm:$0xff] %v3691
    %v3700 = vld [vmem:[%s1641] ss:$8 sm:$0xf]
    %v3701 = vld [vmem:[%s1641] ss:$8 sm:$0xf0]
    %v3702 = vor.u32 %v3700, %v3701
    %v3704 = vperm.slane %v3702, 0
    %v3705 = vperm.slane %v3702, 1
    %v3706 = vperm.slane %v3702, 2
    %v3707 = vperm.slane %v3702, 3
    %v3708 = vperm.slane %v3702, 4
    %v3709 = vperm.slane %v3702, 5
    %v3710 = vperm.slane %v3702, 6
    %v3711 = vperm.slane %v3702, 7
    %v3720 = vmul.f32 %v2681, %v3704
    %v3721 = vmul.f32 %v2680, %v3705
    %v3722 = vmul.f32 %v2679, %v3706
    %v3723 = vmul.f32 %v2678, %v3707
    %v3724 = vmul.f32 %v2677, %v3708
    %v3725 = vmul.f32 %v2676, %v3709
    %v3726 = vmul.f32 %v2675, %v3710
    %v3727 = vmul.f32 %v2682, %v3711
    %3728 = vst [vmem:[#allocation2 + $0x600] sm:$0xff] %v3720
    %3729 = vst [vmem:[#allocation2 + $0x608] sm:$0xff] %v3721
    %3730 = vst [vmem:[#allocation2 + $0x610] sm:$0xff] %v3722
    %3731 = vst [vmem:[#allocation2 + $0x618] sm:$0xff] %v3723
    %3732 = vst [vmem:[#allocation2 + $0x620] sm:$0xff] %v3724
    %3733 = vst [vmem:[#allocation2 + $0x628] sm:$0xff] %v3725
    %3734 = vst [vmem:[#allocation2 + $0x630] sm:$0xff] %v3726
    %3735 = vst [vmem:[#allocation2 + $0x638] sm:$0xff] %v3727
    %v3736 = vld [vmem:[%s1678] ss:$8 sm:$0xf]
    %v3737 = vld [vmem:[%s1678] ss:$8 sm:$0xf0]
    %v3738 = vor.u32 %v3736, %v3737
    %v3740 = vperm.slane %v3738, 0
    %v3741 = vperm.slane %v3738, 1
    %v3742 = vperm.slane %v3738, 2
    %v3743 = vperm.slane %v3738, 3
    %v3744 = vperm.slane %v3738, 4
    %v3745 = vperm.slane %v3738, 5
    %v3746 = vperm.slane %v3738, 6
    %v3747 = vperm.slane %v3738, 7
    %v3756 = vmul.f32 %v2741, %v3740
    %v3757 = vmul.f32 %v2740, %v3741
    %v3758 = vmul.f32 %v2739, %v3742
    %v3759 = vmul.f32 %v2738, %v3743
    %v3760 = vmul.f32 %v2737, %v3744
    %v3761 = vmul.f32 %v2736, %v3745
    %v3762 = vmul.f32 %v2735, %v3746
    %v3763 = vmul.f32 %v2742, %v3747
    %3764 = vst [vmem:[#allocation2 + $0x640] sm:$0xff] %v3756
    %3765 = vst [vmem:[#allocation2 + $0x648] sm:$0xff] %v3757
    %3766 = vst [vmem:[#allocation2 + $0x650] sm:$0xff] %v3758
    %3767 = vst [vmem:[#allocation2 + $0x658] sm:$0xff] %v3759
    %3768 = vst [vmem:[#allocation2 + $0x660] sm:$0xff] %v3760
    %3769 = vst [vmem:[#allocation2 + $0x668] sm:$0xff] %v3761
    %3770 = vst [vmem:[#allocation2 + $0x670] sm:$0xff] %v3762
    %3771 = vst [vmem:[#allocation2 + $0x678] sm:$0xff] %v3763
    %v3772 = vld [vmem:[%s1715] ss:$8 sm:$0xf]
    %v3773 = vld [vmem:[%s1715] ss:$8 sm:$0xf0]
    %v3774 = vor.u32 %v3772, %v3773
    %v3776 = vperm.slane %v3774, 0
    %v3777 = vperm.slane %v3774, 1
    %v3778 = vperm.slane %v3774, 2
    %v3779 = vperm.slane %v3774, 3
    %v3780 = vperm.slane %v3774, 4
    %v3781 = vperm.slane %v3774, 5
    %v3782 = vperm.slane %v3774, 6
    %v3783 = vperm.slane %v3774, 7
    %v3792 = vmul.f32 %v2801, %v3776
    %v3793 = vmul.f32 %v2800, %v3777
    %v3794 = vmul.f32 %v2799, %v3778
    %v3795 = vmul.f32 %v2798, %v3779
    %v3796 = vmul.f32 %v2797, %v3780
    %v3797 = vmul.f32 %v2796, %v3781
    %v3798 = vmul.f32 %v2795, %v3782
    %v3799 = vmul.f32 %v2802, %v3783
    %3800 = vst [vmem:[#allocation2 + $0x680] sm:$0xff] %v3792
    %3801 = vst [vmem:[#allocation2 + $0x688] sm:$0xff] %v3793
    %3802 = vst [vmem:[#allocation2 + $0x690] sm:$0xff] %v3794
    %3803 = vst [vmem:[#allocation2 + $0x698] sm:$0xff] %v3795
    %3804 = vst [vmem:[#allocation2 + $0x6a0] sm:$0xff] %v3796
    %3805 = vst [vmem:[#allocation2 + $0x6a8] sm:$0xff] %v3797
    %3806 = vst [vmem:[#allocation2 + $0x6b0] sm:$0xff] %v3798
    %3807 = vst [vmem:[#allocation2 + $0x6b8] sm:$0xff] %v3799
    %v3808 = vld [vmem:[%s6 + $0x8] sm:$0xff]
    %v3809 = vld [vmem:[#allocation2 + $0x400] sm:$0xff]
    %v3810 = vld [vmem:[#allocation2 + $0x408] sm:$0xff]
    %v3811 = vld [vmem:[#allocation2 + $0x410] sm:$0xff]
    %v3812 = vld [vmem:[#allocation2 + $0x418] sm:$0xff]
    %v3813 = vld [vmem:[#allocation2 + $0x420] sm:$0xff]
    %v3814 = vld [vmem:[#allocation2 + $0x428] sm:$0xff]
    %v3815 = vld [vmem:[#allocation2 + $0x430] sm:$0xff]
    %v3816 = vld [vmem:[#allocation2 + $0x438] sm:$0xff]
    %v3817 = vld [vmem:[#allocation2 + $0x440] sm:$0xff]
    %v3818 = vld [vmem:[#allocation2 + $0x448] sm:$0xff]
    %v3819 = vld [vmem:[#allocation2 + $0x450] sm:$0xff]
    %v3820 = vld [vmem:[#allocation2 + $0x458] sm:$0xff]
    %v3821 = vld [vmem:[#allocation2 + $0x460] sm:$0xff]
    %v3822 = vld [vmem:[#allocation2 + $0x468] sm:$0xff]
    %v3823 = vld [vmem:[#allocation2 + $0x470] sm:$0xff]
    %v3824 = vld [vmem:[#allocation2 + $0x478] sm:$0xff]
    %v3825 = vld [vmem:[#allocation2 + $0x480] sm:$0xff]
    %v3826 = vld [vmem:[#allocation2 + $0x488] sm:$0xff]
    %v3827 = vld [vmem:[#allocation2 + $0x490] sm:$0xff]
    %v3828 = vld [vmem:[#allocation2 + $0x498] sm:$0xff]
    %v3829 = vld [vmem:[#allocation2 + $0x4a0] sm:$0xff]
    %v3830 = vld [vmem:[#allocation2 + $0x4a8] sm:$0xff]
    %v3831 = vld [vmem:[#allocation2 + $0x4b0] sm:$0xff]
    %v3832 = vld [vmem:[#allocation2 + $0x4b8] sm:$0xff]
    %v3833 = vld [vmem:[#allocation2 + $0x4c0] sm:$0xff]
    %v3834 = vld [vmem:[#allocation2 + $0x4c8] sm:$0xff]
    %v3835 = vld [vmem:[#allocation2 + $0x4d0] sm:$0xff]
    %v3836 = vld [vmem:[#allocation2 + $0x4d8] sm:$0xff]
    %v3837 = vld [vmem:[#allocation2 + $0x4e0] sm:$0xff]
    %v3838 = vld [vmem:[#allocation2 + $0x4e8] sm:$0xff]
    %v3839 = vld [vmem:[#allocation2 + $0x4f0] sm:$0xff]
    %v3840 = vld [vmem:[#allocation2 + $0x4f8] sm:$0xff]
    %v3841 = vld [vmem:[#allocation2 + $0x500] sm:$0xff]
    %v3842 = vld [vmem:[#allocation2 + $0x508] sm:$0xff]
    %v3843 = vld [vmem:[#allocation2 + $0x510] sm:$0xff]
    %v3844 = vld [vmem:[#allocation2 + $0x518] sm:$0xff]
    %v3845 = vld [vmem:[#allocation2 + $0x520] sm:$0xff]
    %v3846 = vld [vmem:[#allocation2 + $0x528] sm:$0xff]
    %v3847 = vld [vmem:[#allocation2 + $0x530] sm:$0xff]
    %v3848 = vld [vmem:[#allocation2 + $0x538] sm:$0xff]
    %v3849 = vld [vmem:[#allocation2 + $0x540] sm:$0xff]
    %v3850 = vld [vmem:[#allocation2 + $0x548] sm:$0xff]
    %v3851 = vld [vmem:[#allocation2 + $0x550] sm:$0xff]
    %v3852 = vld [vmem:[#allocation2 + $0x558] sm:$0xff]
    %v3853 = vld [vmem:[#allocation2 + $0x560] sm:$0xff]
    %v3854 = vld [vmem:[#allocation2 + $0x568] sm:$0xff]
    %v3855 = vld [vmem:[#allocation2 + $0x570] sm:$0xff]
    %v3856 = vld [vmem:[#allocation2 + $0x578] sm:$0xff]
    %v3857 = vld [vmem:[#allocation2 + $0x580] sm:$0xff]
    %v3858 = vld [vmem:[#allocation2 + $0x588] sm:$0xff]
    %v3859 = vld [vmem:[#allocation2 + $0x590] sm:$0xff]
    %v3860 = vld [vmem:[#allocation2 + $0x598] sm:$0xff]
    %v3861 = vld [vmem:[#allocation2 + $0x5a0] sm:$0xff]
    %v3862 = vld [vmem:[#allocation2 + $0x5a8] sm:$0xff]
    %v3863 = vld [vmem:[#allocation2 + $0x5b0] sm:$0xff]
    %v3864 = vld [vmem:[#allocation2 + $0x5b8] sm:$0xff]
    %v3865 = vld [vmem:[#allocation2 + $0x5c0] sm:$0xff]
    %v3866 = vld [vmem:[#allocation2 + $0x5c8] sm:$0xff]
    %v3867 = vld [vmem:[#allocation2 + $0x5d0] sm:$0xff]
    %v3868 = vld [vmem:[#allocation2 + $0x5d8] sm:$0xff]
    %v3869 = vld [vmem:[#allocation2 + $0x5e0] sm:$0xff]
    %v3870 = vld [vmem:[#allocation2 + $0x5e8] sm:$0xff]
    %v3871 = vld [vmem:[#allocation2 + $0x5f0] sm:$0xff]
    %v3872 = vld [vmem:[#allocation2 + $0x5f8] sm:$0xff]
    %v3873 = vld [vmem:[#allocation2 + $0x600] sm:$0xff]
    %v3874 = vld [vmem:[#allocation2 + $0x608] sm:$0xff]
    %v3875 = vld [vmem:[#allocation2 + $0x610] sm:$0xff]
    %v3876 = vld [vmem:[#allocation2 + $0x618] sm:$0xff]
    %v3877 = vld [vmem:[#allocation2 + $0x620] sm:$0xff]
    %v3878 = vld [vmem:[#allocation2 + $0x628] sm:$0xff]
    %v3879 = vld [vmem:[#allocation2 + $0x630] sm:$0xff]
    %v3880 = vld [vmem:[#allocation2 + $0x638] sm:$0xff]
    %v3881 = vld [vmem:[#allocation2 + $0x640] sm:$0xff]
    %v3882 = vld [vmem:[#allocation2 + $0x648] sm:$0xff]
    %v3883 = vld [vmem:[#allocation2 + $0x650] sm:$0xff]
    %v3884 = vld [vmem:[#allocation2 + $0x658] sm:$0xff]
    %v3885 = vld [vmem:[#allocation2 + $0x660] sm:$0xff]
    %v3886 = vld [vmem:[#allocation2 + $0x668] sm:$0xff]
    %v3887 = vld [vmem:[#allocation2 + $0x670] sm:$0xff]
    %v3888 = vld [vmem:[#allocation2 + $0x678] sm:$0xff]
    %v3889 = vld [vmem:[#allocation2 + $0x680] sm:$0xff]
    %v3890 = vld [vmem:[#allocation2 + $0x688] sm:$0xff]
    %v3891 = vld [vmem:[#allocation2 + $0x690] sm:$0xff]
    %v3892 = vld [vmem:[#allocation2 + $0x698] sm:$0xff]
    %v3893 = vld [vmem:[#allocation2 + $0x6a0] sm:$0xff]
    %v3894 = vld [vmem:[#allocation2 + $0x6a8] sm:$0xff]
    %v3895 = vld [vmem:[#allocation2 + $0x6b0] sm:$0xff]
    %v3896 = vld [vmem:[#allocation2 + $0x6b8] sm:$0xff]
    %v3897 = vld [vmem:[#allocation2 + $0x6c0] sm:$0xff]
    %v3898 = vld [vmem:[#allocation2 + $0x6c8] sm:$0xff]
    %v3899 = vld [vmem:[#allocation2 + $0x6d0] sm:$0xff]
    %v3900 = vld [vmem:[#allocation2 + $0x6d8] sm:$0xff]
    %v3901 = vld [vmem:[#allocation2 + $0x6e0] sm:$0xff]
    %v3902 = vld [vmem:[#allocation2 + $0x6e8] sm:$0xff]
    %v3903 = vld [vmem:[#allocation2 + $0x6f0] sm:$0xff]
    %v3904 = vld [vmem:[#allocation2 + $0x6f8] sm:$0xff]
    %v3905 = vld [vmem:[#allocation2 + $0x700] sm:$0xff]
    %v3906 = vld [vmem:[#allocation2 + $0x708] sm:$0xff]
    %v3907 = vld [vmem:[#allocation2 + $0x710] sm:$0xff]
    %v3908 = vld [vmem:[#allocation2 + $0x718] sm:$0xff]
    %v3909 = vld [vmem:[#allocation2 + $0x720] sm:$0xff]
    %v3910 = vld [vmem:[#allocation2 + $0x728] sm:$0xff]
    %v3911 = vld [vmem:[#allocation2 + $0x730] sm:$0xff]
    %v3912 = vld [vmem:[#allocation2 + $0x738] sm:$0xff]
    %v3913 = vld [vmem:[#allocation2 + $0x740] sm:$0xff]
    %v3914 = vld [vmem:[#allocation2 + $0x748] sm:$0xff]
    %v3915 = vld [vmem:[#allocation2 + $0x750] sm:$0xff]
    %v3916 = vld [vmem:[#allocation2 + $0x758] sm:$0xff]
    %v3917 = vld [vmem:[#allocation2 + $0x760] sm:$0xff]
    %v3918 = vld [vmem:[#allocation2 + $0x768] sm:$0xff]
    %v3919 = vld [vmem:[#allocation2 + $0x770] sm:$0xff]
    %v3920 = vld [vmem:[#allocation2 + $0x778] sm:$0xff]
    %v3921 = vld [vmem:[#allocation2 + $0x780] sm:$0xff]
    %v3922 = vld [vmem:[#allocation2 + $0x788] sm:$0xff]
    %v3923 = vld [vmem:[#allocation2 + $0x790] sm:$0xff]
    %v3924 = vld [vmem:[#allocation2 + $0x798] sm:$0xff]
    %v3925 = vld [vmem:[#allocation2 + $0x7a0] sm:$0xff]
    %v3926 = vld [vmem:[#allocation2 + $0x7a8] sm:$0xff]
    %v3927 = vld [vmem:[#allocation2 + $0x7b0] sm:$0xff]
    %v3928 = vld [vmem:[#allocation2 + $0x7b8] sm:$0xff]
    %v3929 = vld [vmem:[#allocation2 + $0x7c0] sm:$0xff]
    %v3930 = vld [vmem:[#allocation2 + $0x7c8] sm:$0xff]
    %v3931 = vld [vmem:[#allocation2 + $0x7d0] sm:$0xff]
    %v3932 = vld [vmem:[#allocation2 + $0x7d8] sm:$0xff]
    %v3933 = vld [vmem:[#allocation2 + $0x7e0] sm:$0xff]
    %v3934 = vld [vmem:[#allocation2 + $0x7e8] sm:$0xff]
    %v3935 = vld [vmem:[#allocation2 + $0x7f0] sm:$0xff]
    %v3936 = vld [vmem:[#allocation2 + $0x7f8] sm:$0xff]
    %3937 = vmatpush.msra.mxu0 %v3929
    %3938 = vmatpush.msra.mxu0 %v3921
    %3939 = vmatpush.msra.mxu0 %v3913
    %3940 = vmatpush.msra.mxu0 %v3905
    %3941 = vmatpush.msra.mxu0 %v3897
    %3942 = vmatpush.msra.mxu0 %v3889
    %3943 = vmatpush.msra.mxu0 %v3881
    %3944 = vmatpush.msra.mxu0 %v3873
    %3945 = vmatpush.msra.mxu0 %v3865
    %3946 = vmatpush.msra.mxu0 %v3857
    %3947 = vmatpush.msra.mxu0 %v3849
    %3948 = vmatpush.msra.mxu0 %v3841
    %3949 = vmatpush.msra.mxu0 %v3833
    %3950 = vmatpush.msra.mxu0 %v3825
    %3951 = vmatpush.msra.mxu0 %v3817
    %3952 = vmatpush.msra.mxu0 %v3809
    %3953 = vmatmul.f32.gmra.mxu0 %v3808
    %v3954 = vpop.f32.mrf.mxu0
    %v3955 = vadd.f32 0.0, %v3954
    %3956 = vdwg.mxu0
    %3957 = vmatpush.msra.mxu0 %v3930
    %3958 = vmatpush.msra.mxu0 %v3922
    %3959 = vmatpush.msra.mxu0 %v3914
    %3960 = vmatpush.msra.mxu0 %v3906
    %3961 = vmatpush.msra.mxu0 %v3898
    %3962 = vmatpush.msra.mxu0 %v3890
    %3963 = vmatpush.msra.mxu0 %v3882
    %3964 = vmatpush.msra.mxu0 %v3874
    %3965 = vmatpush.msra.mxu0 %v3866
    %3966 = vmatpush.msra.mxu0 %v3858
    %3967 = vmatpush.msra.mxu0 %v3850
    %3968 = vmatpush.msra.mxu0 %v3842
    %3969 = vmatpush.msra.mxu0 %v3834
    %3970 = vmatpush.msra.mxu0 %v3826
    %3971 = vmatpush.msra.mxu0 %v3818
    %3972 = vmatpush.msra.mxu0 %v3810
    %3973 = vmatmul.f32.gmra.mxu0 %v3808
    %v3974 = vpop.f32.mrf.mxu0
    %v3975 = vadd.f32 0.0, %v3974
    %3976 = vdwg.mxu0
    %3977 = vmatpush.msra.mxu0 %v3931
    %3978 = vmatpush.msra.mxu0 %v3923
    %3979 = vmatpush.msra.mxu0 %v3915
    %3980 = vmatpush.msra.mxu0 %v3907
    %3981 = vmatpush.msra.mxu0 %v3899
    %3982 = vmatpush.msra.mxu0 %v3891
    %3983 = vmatpush.msra.mxu0 %v3883
    %3984 = vmatpush.msra.mxu0 %v3875
    %3985 = vmatpush.msra.mxu0 %v3867
    %3986 = vmatpush.msra.mxu0 %v3859
    %3987 = vmatpush.msra.mxu0 %v3851
    %3988 = vmatpush.msra.mxu0 %v3843
    %3989 = vmatpush.msra.mxu0 %v3835
    %3990 = vmatpush.msra.mxu0 %v3827
    %3991 = vmatpush.msra.mxu0 %v3819
    %3992 = vmatpush.msra.mxu0 %v3811
    %3993 = vmatmul.f32.gmra.mxu0 %v3808
    %v3994 = vpop.f32.mrf.mxu0
    %v3995 = vadd.f32 0.0, %v3994
    %3996 = vdwg.mxu0
    %3997 = vmatpush.msra.mxu0 %v3932
    %3998 = vmatpush.msra.mxu0 %v3924
    %3999 = vmatpush.msra.mxu0 %v3916
    %4000 = vmatpush.msra.mxu0 %v3908
    %4001 = vmatpush.msra.mxu0 %v3900
    %4002 = vmatpush.msra.mxu0 %v3892
    %4003 = vmatpush.msra.mxu0 %v3884
    %4004 = vmatpush.msra.mxu0 %v3876
    %4005 = vmatpush.msra.mxu0 %v3868
    %4006 = vmatpush.msra.mxu0 %v3860
    %4007 = vmatpush.msra.mxu0 %v3852
    %4008 = vmatpush.msra.mxu0 %v3844
    %4009 = vmatpush.msra.mxu0 %v3836
    %4010 = vmatpush.msra.mxu0 %v3828
    %4011 = vmatpush.msra.mxu0 %v3820
    %4012 = vmatpush.msra.mxu0 %v3812
    %4013 = vmatmul.f32.gmra.mxu0 %v3808
    %v4014 = vpop.f32.mrf.mxu0
    %v4015 = vadd.f32 0.0, %v4014
    %4016 = vdwg.mxu0
    %4017 = vmatpush.msra.mxu0 %v3933
    %4018 = vmatpush.msra.mxu0 %v3925
    %4019 = vmatpush.msra.mxu0 %v3917
    %4020 = vmatpush.msra.mxu0 %v3909
    %4021 = vmatpush.msra.mxu0 %v3901
    %4022 = vmatpush.msra.mxu0 %v3893
    %4023 = vmatpush.msra.mxu0 %v3885
    %4024 = vmatpush.msra.mxu0 %v3877
    %4025 = vmatpush.msra.mxu0 %v3869
    %4026 = vmatpush.msra.mxu0 %v3861
    %4027 = vmatpush.msra.mxu0 %v3853
    %4028 = vmatpush.msra.mxu0 %v3845
    %4029 = vmatpush.msra.mxu0 %v3837
    %4030 = vmatpush.msra.mxu0 %v3829
    %4031 = vmatpush.msra.mxu0 %v3821
    %4032 = vmatpush.msra.mxu0 %v3813
    %4033 = vmatmul.f32.gmra.mxu0 %v3808
    %v4034 = vpop.f32.mrf.mxu0
    %v4035 = vadd.f32 0.0, %v4034
    %4036 = vdwg.mxu0
    %4037 = vmatpush.msra.mxu0 %v3934
    %4038 = vmatpush.msra.mxu0 %v3926
    %4039 = vmatpush.msra.mxu0 %v3918
    %4040 = vmatpush.msra.mxu0 %v3910
    %4041 = vmatpush.msra.mxu0 %v3902
    %4042 = vmatpush.msra.mxu0 %v3894
    %4043 = vmatpush.msra.mxu0 %v3886
    %4044 = vmatpush.msra.mxu0 %v3878
    %4045 = vmatpush.msra.mxu0 %v3870
    %4046 = vmatpush.msra.mxu0 %v3862
    %4047 = vmatpush.msra.mxu0 %v3854
    %4048 = vmatpush.msra.mxu0 %v3846
    %4049 = vmatpush.msra.mxu0 %v3838
    %4050 = vmatpush.msra.mxu0 %v3830
    %4051 = vmatpush.msra.mxu0 %v3822
    %4052 = vmatpush.msra.mxu0 %v3814
    %4053 = vmatmul.f32.gmra.mxu0 %v3808
    %v4054 = vpop.f32.mrf.mxu0
    %v4055 = vadd.f32 0.0, %v4054
    %4056 = vdwg.mxu0
    %4057 = vmatpush.msra.mxu0 %v3935
    %4058 = vmatpush.msra.mxu0 %v3927
    %4059 = vmatpush.msra.mxu0 %v3919
    %4060 = vmatpush.msra.mxu0 %v3911
    %4061 = vmatpush.msra.mxu0 %v3903
    %4062 = vmatpush.msra.mxu0 %v3895
    %4063 = vmatpush.msra.mxu0 %v3887
    %4064 = vmatpush.msra.mxu0 %v3879
    %4065 = vmatpush.msra.mxu0 %v3871
    %4066 = vmatpush.msra.mxu0 %v3863
    %4067 = vmatpush.msra.mxu0 %v3855
    %4068 = vmatpush.msra.mxu0 %v3847
    %4069 = vmatpush.msra.mxu0 %v3839
    %4070 = vmatpush.msra.mxu0 %v3831
    %4071 = vmatpush.msra.mxu0 %v3823
    %4072 = vmatpush.msra.mxu0 %v3815
    %4073 = vmatmul.f32.gmra.mxu0 %v3808
    %v4074 = vpop.f32.mrf.mxu0
    %v4075 = vadd.f32 0.0, %v4074
    %4076 = vdwg.mxu0
    %4077 = vmatpush.msra.mxu0 %v3936
    %4078 = vmatpush.msra.mxu0 %v3928
    %4079 = vmatpush.msra.mxu0 %v3920
    %4080 = vmatpush.msra.mxu0 %v3912
    %4081 = vmatpush.msra.mxu0 %v3904
    %4082 = vmatpush.msra.mxu0 %v3896
    %4083 = vmatpush.msra.mxu0 %v3888
    %4084 = vmatpush.msra.mxu0 %v3880
    %4085 = vmatpush.msra.mxu0 %v3872
    %4086 = vmatpush.msra.mxu0 %v3864
    %4087 = vmatpush.msra.mxu0 %v3856
    %4088 = vmatpush.msra.mxu0 %v3848
    %4089 = vmatpush.msra.mxu0 %v3840
    %4090 = vmatpush.msra.mxu0 %v3832
    %4091 = vmatpush.msra.mxu0 %v3824
    %4092 = vmatpush.msra.mxu0 %v3816
    %4093 = vmatmul.f32.gmra.mxu0 %v3808
    %v4094 = vpop.f32.mrf.mxu0
    %v4095 = vadd.f32 0.0, %v4094
    %4096 = vdwg.mxu0
    %4097 = vmatpush.msra.mxu0 %v3356
    %4098 = vmatpush.msra.mxu0 %v3348
    %4099 = vmatpush.msra.mxu0 %v3340
    %4100 = vmatpush.msra.mxu0 %v3332
    %4101 = vmatpush.msra.mxu0 %v3324
    %4102 = vmatpush.msra.mxu0 %v3316
    %4103 = vmatpush.msra.mxu0 %v3308
    %4104 = vmatpush.msra.mxu0 %v3300
    %4105 = vmatpush.msra.mxu0 %v3292
    %4106 = vmatpush.msra.mxu0 %v3284
    %4107 = vmatpush.msra.mxu0 %v3276
    %4108 = vmatpush.msra.mxu0 %v3268
    %4109 = vmatpush.msra.mxu0 %v3260
    %4110 = vmatpush.msra.mxu0 %v3252
    %4111 = vmatpush.msra.mxu0 %v3244
    %4112 = vmatpush.msra.mxu0 %v3236
    %4113 = vmatmul.f32.gmra.mxu0 %v3235
    %v4114 = vpop.f32.mrf.mxu0
    %v4115 = vadd.f32 %v3955, %v4114
    %4116 = vdwg.mxu0
    %4117 = vmatpush.msra.mxu0 %v3357
    %4118 = vmatpush.msra.mxu0 %v3349
    %4119 = vmatpush.msra.mxu0 %v3341
    %4120 = vmatpush.msra.mxu0 %v3333
    %4121 = vmatpush.msra.mxu0 %v3325
    %4122 = vmatpush.msra.mxu0 %v3317
    %4123 = vmatpush.msra.mxu0 %v3309
    %4124 = vmatpush.msra.mxu0 %v3301
    %4125 = vmatpush.msra.mxu0 %v3293
    %4126 = vmatpush.msra.mxu0 %v3285
    %4127 = vmatpush.msra.mxu0 %v3277
    %4128 = vmatpush.msra.mxu0 %v3269
    %4129 = vmatpush.msra.mxu0 %v3261
    %4130 = vmatpush.msra.mxu0 %v3253
    %4131 = vmatpush.msra.mxu0 %v3245
    %4132 = vmatpush.msra.mxu0 %v3237
    %4133 = vmatmul.f32.gmra.mxu0 %v3235
    %v4134 = vpop.f32.mrf.mxu0
    %v4135 = vadd.f32 %v3975, %v4134
    %4136 = vdwg.mxu0
    %4137 = vmatpush.msra.mxu0 %v3358
    %4138 = vmatpush.msra.mxu0 %v3350
    %4139 = vmatpush.msra.mxu0 %v3342
    %4140 = vmatpush.msra.mxu0 %v3334
    %4141 = vmatpush.msra.mxu0 %v3326
    %4142 = vmatpush.msra.mxu0 %v3318
    %4143 = vmatpush.msra.mxu0 %v3310
    %4144 = vmatpush.msra.mxu0 %v3302
    %4145 = vmatpush.msra.mxu0 %v3294
    %4146 = vmatpush.msra.mxu0 %v3286
    %4147 = vmatpush.msra.mxu0 %v3278
    %4148 = vmatpush.msra.mxu0 %v3270
    %4149 = vmatpush.msra.mxu0 %v3262
    %4150 = vmatpush.msra.mxu0 %v3254
    %4151 = vmatpush.msra.mxu0 %v3246
    %4152 = vmatpush.msra.mxu0 %v3238
    %4153 = vmatmul.f32.gmra.mxu0 %v3235
    %v4154 = vpop.f32.mrf.mxu0
    %v4155 = vadd.f32 %v3995, %v4154
    %4156 = vdwg.mxu0
    %4157 = vmatpush.msra.mxu0 %v3359
    %4158 = vmatpush.msra.mxu0 %v3351
    %4159 = vmatpush.msra.mxu0 %v3343
    %4160 = vmatpush.msra.mxu0 %v3335
    %4161 = vmatpush.msra.mxu0 %v3327
    %4162 = vmatpush.msra.mxu0 %v3319
    %4163 = vmatpush.msra.mxu0 %v3311
    %4164 = vmatpush.msra.mxu0 %v3303
    %4165 = vmatpush.msra.mxu0 %v3295
    %4166 = vmatpush.msra.mxu0 %v3287
    %4167 = vmatpush.msra.mxu0 %v3279
    %4168 = vmatpush.msra.mxu0 %v3271
    %4169 = vmatpush.msra.mxu0 %v3263
    %4170 = vmatpush.msra.mxu0 %v3255
    %4171 = vmatpush.msra.mxu0 %v3247
    %4172 = vmatpush.msra.mxu0 %v3239
    %4173 = vmatmul.f32.gmra.mxu0 %v3235
    %v4174 = vpop.f32.mrf.mxu0
    %v4175 = vadd.f32 %v4015, %v4174
    %4176 = vdwg.mxu0
    %4177 = vmatpush.msra.mxu0 %v3360
    %4178 = vmatpush.msra.mxu0 %v3352
    %4179 = vmatpush.msra.mxu0 %v3344
    %4180 = vmatpush.msra.mxu0 %v3336
    %4181 = vmatpush.msra.mxu0 %v3328
    %4182 = vmatpush.msra.mxu0 %v3320
    %4183 = vmatpush.msra.mxu0 %v3312
    %4184 = vmatpush.msra.mxu0 %v3304
    %4185 = vmatpush.msra.mxu0 %v3296
    %4186 = vmatpush.msra.mxu0 %v3288
    %4187 = vmatpush.msra.mxu0 %v3280
    %4188 = vmatpush.msra.mxu0 %v3272
    %4189 = vmatpush.msra.mxu0 %v3264
    %4190 = vmatpush.msra.mxu0 %v3256
    %4191 = vmatpush.msra.mxu0 %v3248
    %4192 = vmatpush.msra.mxu0 %v3240
    %4193 = vmatmul.f32.gmra.mxu0 %v3235
    %v4194 = vpop.f32.mrf.mxu0
    %v4195 = vadd.f32 %v4035, %v4194
    %4196 = vdwg.mxu0
    %4197 = vmatpush.msra.mxu0 %v3361
    %4198 = vmatpush.msra.mxu0 %v3353
    %4199 = vmatpush.msra.mxu0 %v3345
    %4200 = vmatpush.msra.mxu0 %v3337
    %4201 = vmatpush.msra.mxu0 %v3329
    %4202 = vmatpush.msra.mxu0 %v3321
    %4203 = vmatpush.msra.mxu0 %v3313
    %4204 = vmatpush.msra.mxu0 %v3305
    %4205 = vmatpush.msra.mxu0 %v3297
    %4206 = vmatpush.msra.mxu0 %v3289
    %4207 = vmatpush.msra.mxu0 %v3281
    %4208 = vmatpush.msra.mxu0 %v3273
    %4209 = vmatpush.msra.mxu0 %v3265
    %4210 = vmatpush.msra.mxu0 %v3257
    %4211 = vmatpush.msra.mxu0 %v3249
    %4212 = vmatpush.msra.mxu0 %v3241
    %4213 = vmatmul.f32.gmra.mxu0 %v3235
    %v4214 = vpop.f32.mrf.mxu0
    %v4215 = vadd.f32 %v4055, %v4214
    %4216 = vdwg.mxu0
    %4217 = vmatpush.msra.mxu0 %v3362
    %4218 = vmatpush.msra.mxu0 %v3354
    %4219 = vmatpush.msra.mxu0 %v3346
    %4220 = vmatpush.msra.mxu0 %v3338
    %4221 = vmatpush.msra.mxu0 %v3330
    %4222 = vmatpush.msra.mxu0 %v3322
    %4223 = vmatpush.msra.mxu0 %v3314
    %4224 = vmatpush.msra.mxu0 %v3306
    %4225 = vmatpush.msra.mxu0 %v3298
    %4226 = vmatpush.msra.mxu0 %v3290
    %4227 = vmatpush.msra.mxu0 %v3282
    %4228 = vmatpush.msra.mxu0 %v3274
    %4229 = vmatpush.msra.mxu0 %v3266
    %4230 = vmatpush.msra.mxu0 %v3258
    %4231 = vmatpush.msra.mxu0 %v3250
    %4232 = vmatpush.msra.mxu0 %v3242
    %4233 = vmatmul.f32.gmra.mxu0 %v3235
    %v4234 = vpop.f32.mrf.mxu0
    %v4235 = vadd.f32 %v4075, %v4234
    %4236 = vdwg.mxu0
    %4237 = vmatpush.msra.mxu0 %v3363
    %4238 = vmatpush.msra.mxu0 %v3355
    %4239 = vmatpush.msra.mxu0 %v3347
    %4240 = vmatpush.msra.mxu0 %v3339
    %4241 = vmatpush.msra.mxu0 %v3331
    %4242 = vmatpush.msra.mxu0 %v3323
    %4243 = vmatpush.msra.mxu0 %v3315
    %4244 = vmatpush.msra.mxu0 %v3307
    %4245 = vmatpush.msra.mxu0 %v3299
    %4246 = vmatpush.msra.mxu0 %v3291
    %4247 = vmatpush.msra.mxu0 %v3283
    %4248 = vmatpush.msra.mxu0 %v3275
    %4249 = vmatpush.msra.mxu0 %v3267
    %4250 = vmatpush.msra.mxu0 %v3259
    %4251 = vmatpush.msra.mxu0 %v3251
    %4252 = vmatpush.msra.mxu0 %v3243
    %4253 = vmatmul.f32.gmra.mxu0 %v3235
    %v4254 = vpop.f32.mrf.mxu0
    %v4255 = vadd.f32 %v4095, %v4254
    %4256 = vdwg.mxu0
    %v4257 = vld [vmem:[%s7] sm:$0xff]
    %4259 = vset.pattern.permute.xlu0 0
    %4260 = vperm.xlu0 %4259, %v4257
    %v4261 = vpop.permute.xlu0 %4260
    %v4263 = vadd.f32 %v4115, %v4261
    %v4264 = vadd.f32 %v4135, %v4261
    %v4265 = vadd.f32 %v4155, %v4261
    %v4266 = vadd.f32 %v4175, %v4261
    %v4267 = vadd.f32 %v4195, %v4261
    %v4268 = vadd.f32 %v4215, %v4261
    %v4269 = vadd.f32 %v4235, %v4261
    %v4270 = vadd.f32 %v4255, %v4261
    %v4271 = vadd.f32 %v4263, %v106
    %v4272 = vadd.f32 %v4264, %v107
    %v4273 = vadd.f32 %v4265, %v108
    %v4274 = vadd.f32 %v4266, %v109
    %v4275 = vadd.f32 %v4267, %v110
    %v4276 = vadd.f32 %v4268, %v111
    %v4277 = vadd.f32 %v4269, %v112
    %v4278 = vadd.f32 %v4270, %v113
    %4279 = vst [vmem:[#allocation8] sm:$0xff] %v4271
    %4280 = vst [vmem:[#allocation8 + $0x8] sm:$0xff] %v4272
    %4281 = vst [vmem:[#allocation8 + $0x10] sm:$0xff] %v4273
    %4282 = vst [vmem:[#allocation8 + $0x18] sm:$0xff] %v4274
    %4283 = vst [vmem:[#allocation8 + $0x20] sm:$0xff] %v4275
    %4284 = vst [vmem:[#allocation8 + $0x28] sm:$0xff] %v4276
    %4285 = vst [vmem:[#allocation8 + $0x30] sm:$0xff] %v4277
    %4286 = vst [vmem:[#allocation8 + $0x38] sm:$0xff] %v4278
    // Predicated region
    $region50: #{tpu_custom_call.1} parent=1 // pred_check
      _
    $region51: #{tpu_custom_call.1} parent=1 // pred_check_branch
      %4288 = sbr.rel (0) target = $region53
    $region52: #{tpu_custom_call.1} parent=1 // pred_region
      %4290 = vsyncadd [#allocation5], 0
      %s4292 = sshll.u32 [#allocation8], 4
      %s4293 = int_to_ptr.vmem [resolvable:$true] %s4292
      %s4294 = sshll.u32 %s10, 4
      %s4295 = int_to_ptr.hbm [resolvable:$true] %s4294
      %4297 = dma.vmem_to_hbm [thread:$0]  %s4293, 1024, %s4295, [#allocation5]
    $region53: #{tpu_custom_call.1} parent=1 // pred_fallthru
      _
    // Predicated region
    $region54: #{tpu_custom_call.1} parent=1 // pred_check
      _
    $region55: #{tpu_custom_call.1} parent=1 // pred_check_branch
      %4299 = sbr.rel (0) target = $region57
    $region56: #{tpu_custom_call.1} parent=1 // pred_region
      %4301 = dma.done [#allocation5], 1024
    $region57: #{tpu_custom_call.1} parent=1 // pred_fallthru
      _
    %4302 = vsyncpa [#allocation4], 1
    %4303 = vsyncpa [#allocation7], 1
    %4304 = vsyncpa [#allocation5], 1

</llo_original>
